<compile_context>
chip_gen: v7x
topology: tpu7x:2x2x1
jax: 0.10.0
libtpu: 0.0.40
codegen_flags: <defaults>
</compile_context>

<pallas_src>
import jax
import jax.numpy as jnp
from jax import lax
from jax.experimental import pallas as pl
from jax.experimental.pallas import tpu as pltpu


# ----------------------------- fused kernel -----------------------------
def _make_fused_kernel(n_branches, B, T, V):

    def kernel(*refs):
        xb_ref, wx_ref, bx_ref, whh_ref = refs[:4]
        conv_refs = refs[4:4 + 2 * n_branches]
        w1_ref, b1_ref, w2_ref, b2_ref, out_ref = refs[4 + 2 * n_branches:]

        # ---- hoisted LSTM input projection: one bf16 MXU pass covers both directions and all T ----
        # xb rows are time-major [x_t | x_{T-1-t}]; wx is block-diagonal, so row block i of xproj is
        # already the full per-step gate input for forward t=i and backward t=T-1-i (no per-step
        # select / slicing of two sources on the recurrence critical path).
        xproj = jnp.dot(xb_ref[...], wx_ref[...],
                        preferred_element_type=jnp.float32) + bx_ref[...]      # (T*B, 8V) f32

        whh = whh_ref[...]                     # (2V, 8V) bf16, block "diagonal" (fwd rows / bwd rows)

        h = jnp.zeros((B, 2 * V), jnp.float32)  # [h_fwd | h_bwd]
        c = jnp.zeros((B, 2 * V), jnp.float32)
        h_steps = []
        # Fully unrolled time loop: step i advances forward at t=i and backward at t=T-1-i; the two
        # independent recurrences share a single bf16 MXU push per step.
        for i in range(T):
            gates = xproj[i * B:(i + 1) * B, :] + jnp.dot(
                h.astype(jnp.bfloat16), whh, preferred_element_type=jnp.float32)   # (B, 8V)
            # gate column blocks: [i_f i_b f_f f_b o_f o_b g_f g_b] -> sigmoid only on first 6V,
            # tanh only on last 2V (halves EUP work on the serial chain).
            sg = jax.nn.sigmoid(gates[:, 0:6 * V])
            g_g = jnp.tanh(gates[:, 6 * V:8 * V])
            i_g = sg[:, 0:2 * V]
            f_g = sg[:, 2 * V:4 * V]
            o_g = sg[:, 4 * V:6 * V]
            c = f_g * c + i_g * g_g
            h = o_g * jnp.tanh(c)
            h_steps.append(h)                  # kept in registers; no per-step VMEM stores

        # ---- assemble the time-major bidirectional hidden sequence as a value (stack once) ----
        # row t*B + b  ==  [h_fwd(b, t) | h_bwd(b, t)]
        fwd_stack = jnp.concatenate([h_steps[t][:, 0:V] for t in range(T)], axis=0)        # (T*B, V)
        bwd_stack = jnp.concatenate([h_steps[T - 1 - t][:, V:2 * V] for t in range(T)], axis=0)
        hseq = jnp.concatenate([fwd_stack, bwd_stack], axis=1).astype(jnp.bfloat16)        # (T*B, 2V)

        # ---- conv branches (+ReLU), batched over B: one matmul per tap on a contiguous window ----
        # The torch (filter, position)-major flatten is absorbed by a one-time W1 row permutation in
        # the wrapper; here each branch is flattened per batch in (position, filter) order via value
        # slicing + lane concatenation (no scatter, no VMEM scratch).
        feat_parts = []
        for br in range(n_branches):
            cw_ref = conv_refs[2 * br]           # (K, 2V, F) tap-major bf16 conv weight
            cb = conv_refs[2 * br + 1][...]      # (1, F) f32 bias
            K, _, F = cw_ref.shape
            Lout = T - K + 1                     # stride == 1
            acc = jnp.zeros((Lout * B, F), jnp.float32)
            for k in range(K):
                acc = acc + jnp.dot(hseq[k * B:(k + Lout) * B, :], cw_ref[k],
                                    preferred_element_type=jnp.float32)
            acc = jnp.maximum(acc + cb, 0.0)     # (Lout*B, F), row l*B+b
            # per-batch rows in (l, f)-major order -> matches permuted W1 rows
            feat_parts.extend([acc[l * B:(l + 1) * B, :] for l in range(Lout)])
        feat = jnp.concatenate(feat_parts, axis=1).astype(jnp.bfloat16)   # (B, cnn_out), lane-dense

        # ---- 2-layer MLP (no nonlinearity in between; dropout = eval-mode identity) ----
        h1 = jnp.dot(feat, w1_ref[...], preferred_element_type=jnp.float32) + b1_ref[...]
        y = jnp.dot(h1.astype(jnp.bfloat16), w2_ref[...],
                    preferred_element_type=jnp.float32) + b2_ref[...]
        out_ref[...] = y

    return kernel


# ----------------------------- trace-time parameter re-layout -----------------------------
_GATE_ORDER = (0, 1, 3, 2)   # torch gate blocks [i, f, g, o] -> kernel order [i, f, o, g]


def _prepare_kernel_params(params, T, V, kernel_sizes, stride=1):
    lf = params['lstm1']

    def interleave(fwd, bwd):
        # fwd/bwd: (..., 4V) with torch gate blocks [i, f, g, o]
        # -> (..., 8V) with blocks [i_f i_b f_f f_b o_f o_b g_f g_b].
        blocks = []
        for g in _GATE_ORDER:
            blocks.append(fwd[..., g * V:(g + 1) * V])
            blocks.append(bwd[..., g * V:(g + 1) * V])
        return jnp.concatenate(blocks, axis=-1)

    def gate_block_diag(w_f_t, w_b_t):
        # w_f_t / w_b_t: (V, 4V).  Returns (2V, 8V): fwd rows feed fwd gate columns only,
        # bwd rows feed bwd gate columns only, gate blocks in kernel order.
        zero = jnp.zeros((V, V), jnp.float32)
        top, bot = [], []
        for g in _GATE_ORDER:
            top.extend([w_f_t[:, g * V:(g + 1) * V], zero])
            bot.extend([zero, w_b_t[:, g * V:(g + 1) * V]])
        return jnp.concatenate([jnp.concatenate(top, axis=1),
                                jnp.concatenate(bot, axis=1)], axis=0)

    wx2 = gate_block_diag(lf['wih_f'].T, lf['wih_b'].T).astype(jnp.bfloat16)   # (2V, 8V)
    whh = gate_block_diag(lf['whh_f'].T, lf['whh_b'].T).astype(jnp.bfloat16)   # (2V, 8V)
    bx = interleave(lf['b_f'], lf['b_b'])                                      # (1, 8V) f32

    convs, perm_chunks = [], []
    offset = 0
    for i, ks in enumerate(kernel_sizes):
        w = params['convs'][i]['w']                      # (F, 2V, K) torch Conv1d layout
        F = w.shape[0]
        Lout = (T - ks) // stride + 1
        convs.append((jnp.transpose(w, (2, 1, 0)).astype(jnp.bfloat16),        # (K, 2V, F)
                      params['convs'][i]['b']))
        # kernel flattens conv activations as (position, filter); torch flattens as (filter, position)
        perm_chunks.append(jnp.arange(F * Lout).reshape(F, Lout).T.reshape(-1) + offset)
        offset += F * Lout
    perm = jnp.concatenate(perm_chunks)

    mp = params['mlp']
    return {
        'wx2': wx2, 'bx': bx, 'whh': whh, 'convs': convs,
        'w1T': mp['w1'].T[perm, :].astype(jnp.bfloat16),   # (cnn_out, hidden), rows in kernel order
        'b1': mp['b1'],
        'w2T': mp['w2'].T.astype(jnp.bfloat16),
        'b2': mp['b2'],
        'cnn_out': offset,
    }


# ----------------------------- wrapper -----------------------------
def bilstm_cnn_forward(x, params, kernel_sizes, stride=1):
    """Forward pass of the bilstm_cnn module (eval mode), fused into a single Pallas kernel."""
    assert stride == 1  # TODO(synk): generic stride needs strided conv-window slicing in-kernel.
    B, T, V = x.shape
    kp = _prepare_kernel_params(params, T, V, kernel_sizes, stride)
    out_size = params['mlp']['w2'].shape[0]

    # Time-major paired input: row t*B + b holds [x[b, t] | x[b, T-1-t]]  (wrapper-level plumbing so
    # the hoisted block-diagonal projection yields per-step gate inputs for BOTH directions at once).
    xt = jnp.transpose(x, (1, 0, 2))                       # (T, B, V)
    x_both = jnp.concatenate([xt, xt[::-1]], axis=-1)      # (T, B, 2V)
    x_both = x_both.reshape(T * B, 2 * V).astype(jnp.bfloat16)

    inputs = [x_both, kp['wx2'], kp['bx'], kp['whh']]
    for cw, cb in kp['convs']:
        inputs.extend([cw, cb])
    inputs.extend([kp['w1T'], kp['b1'], kp['w2T'], kp['b2']])

    kernel = _make_fused_kernel(len(kernel_sizes), B, T, V)
    vmem = pl.BlockSpec(memory_space=pltpu.MemorySpace.VMEM)
    # All live data is a few KiB -- far under VMEM on every generation (incl. v7x's 64 MiB),
    # so no grid is needed at these shapes.
    # TODO(synk): for large B, add a grid over batch with dimension_semantics=("parallel",) to use
    # both v7x TensorCores and restore DMA/compute overlap via BlockSpec pipelining.
    return pl.pallas_call(
        kernel,
        out_shape=jax.ShapeDtypeStruct((B, out_size), jnp.float32),
        in_specs=[vmem] * len(inputs),
        out_specs=vmem,
    )(*inputs)


# ----------------------------- pure-JAX reference (PyTorch semantics) -----------------------------
def reference_forward(x, params, kernel_sizes, stride=1):
    B, T, V = x.shape
    lf = params['lstm1']
    hp = lax.Precision.HIGHEST   # scoped per-dot; no process-global precision config

    def run_dir(wih, whh, b, reverse):
        h = jnp.zeros((B, V), jnp.float32)
        c = jnp.zeros((B, V), jnp.float32)
        outs = [None] * T
        order = range(T - 1, -1, -1) if reverse else range(T)
        for t in order:
            gates = (jnp.dot(x[:, t, :], wih.T, precision=hp)
                     + jnp.dot(h, whh.T, precision=hp) + b)
            i_g = jax.nn.sigmoid(gates[:, 0:V])
            f_g = jax.nn.sigmoid(gates[:, V:2 * V])
            g_g = jnp.tanh(gates[:, 2 * V:3 * V])
            o_g = jax.nn.sigmoid(gates[:, 3 * V:4 * V])
            c = f_g * c + i_g * g_g
            h = o_g * jnp.tanh(c)
            outs[t] = h
        return jnp.stack(outs, axis=1)                   # (B, T, V)

    hf = run_dir(lf['wih_f'], lf['whh_f'], lf['b_f'], reverse=False)
    hb = run_dir(lf['wih_b'], lf['whh_b'], lf['b_b'], reverse=True)
    hcat = jnp.concatenate([hf, hb], axis=-1)            # (B, T, 2V)

    feats = []
    for i, ks in enumerate(kernel_sizes):
        w = params['convs'][i]['w']                      # (F, 2V, K)
        bconv = params['convs'][i]['b']                  # (1, F)
        Lout = (T - ks) // stride + 1
        win = jnp.stack([hcat[:, l * stride:l * stride + ks, :] for l in range(Lout)], axis=1)
        out = jnp.einsum('blkc,fck->bfl', win, w, precision=hp) + bconv.reshape(1, -1, 1)
        out = jnp.maximum(out, 0.0)                      # (B, F, Lout)
        feats.append(out.reshape(B, -1))                 # torch .view: (filter, position)-major
    feat = jnp.concatenate(feats, axis=1)

    mp = params['mlp']
    h1 = jnp.dot(feat, mp['w1'].T, precision=hp) + mp['b1']
    return jnp.dot(h1, mp['w2'].T, precision=hp) + mp['b2']


# ----------------------------- deterministic params (PyTorch layout) -----------------------------
def init_params(key, T, V, hidden_size, output_size, kernel_sizes, num_filters, stride=1):
    keys = jax.random.split(key, 6 + 2 * len(kernel_sizes) + 4)

    def rnd(k, shape, scale=0.1):
        return (scale * jax.random.normal(k, shape)).astype(jnp.float32)

    lstm1 = {
        'wih_f': rnd(keys[0], (4 * V, V)),
        'whh_f': rnd(keys[1], (4 * V, V)),
        'b_f':   rnd(keys[2], (1, 4 * V)),   # b_ih + b_hh combined
        'wih_b': rnd(keys[3], (4 * V, V)),
        'whh_b': rnd(keys[4], (4 * V, V)),
        'b_b':   rnd(keys[5], (1, 4 * V)),
    }
    convs = []
    cnn_output_size = 0
    for i, ks in enumerate(kernel_sizes):
        convs.append({
            'w': rnd(keys[6 + 2 * i], (num_filters, 2 * V, ks)),
            'b': rnd(keys[7 + 2 * i], (1, num_filters)),
        })
        cnn_output_size += ((T - ks) // stride + 1) * num_filters
    base = 6 + 2 * len(kernel_sizes)
    mlp_p = {
        'w1': rnd(keys[base + 0], (hidden_size, cnn_output_size)),
        'b1': rnd(keys[base + 1], (1, hidden_size)),
        'w2': rnd(keys[base + 2], (output_size, hidden_size)),
        'b2': rnd(keys[base + 3], (1, output_size)),
    }
    return {'lstm1': lstm1, 'convs': convs, 'mlp': mlp_p}


if __name__ == "__main__":
    # small shapes consistent with the module's forward
    B, T, V = 2, 16, 8                 # batch, input_length, vocab_size
    hidden_size, output_size = 32, 4
    kernel_sizes = [3, 5]
    num_filters = 8

    key = jax.random.PRNGKey(0)
    k_x, k_p = jax.random.split(key)
    x = jax.random.normal(k_x, (B, T, V), dtype=jnp.float32)
    params = init_params(k_p, T, V, hidden_size, output_size, kernel_sizes, num_filters)

    fwd = jax.jit(lambda xx: bilstm_cnn_forward(xx, params, kernel_sizes))
    y = fwd(x)
    jax.block_until_ready(y)
    assert y.shape == (B, output_size)

    # Tolerance check vs. the f32 HIGHEST-precision golden reference.  The kernel now uses bf16
    # matmul operands with f32 accumulation (single-pass MXU, per the perf review), so the bound is
    # widened to 5e-2; structural bugs (gate order, W1 permutation, conv taps) produce O(0.1+) errors
    # and are still caught.
    y_ref = reference_forward(x, params, kernel_sizes)
    err = float(jnp.max(jnp.abs(y - y_ref)))
    assert err < 5e-2, f"kernel vs reference mismatch: max abs err {err}"
    print("KERNEL_OK")
</pallas_src>

<mosaic_0001>
module attributes {stable_mosaic.version = 11 : i64} {
  func.func @kernel(%arg0: memref<32x16xbf16, #tpu.memory_space<vmem>>, %arg1: memref<16x64xbf16, #tpu.memory_space<vmem>>, %arg2: memref<1x64xf32, #tpu.memory_space<vmem>>, %arg3: memref<16x64xbf16, #tpu.memory_space<vmem>>, %arg4: memref<3x16x8xbf16, #tpu.memory_space<vmem>>, %arg5: memref<1x8xf32, #tpu.memory_space<vmem>>, %arg6: memref<5x16x8xbf16, #tpu.memory_space<vmem>>, %arg7: memref<1x8xf32, #tpu.memory_space<vmem>>, %arg8: memref<208x32xbf16, #tpu.memory_space<vmem>>, %arg9: memref<1x32xf32, #tpu.memory_space<vmem>>, %arg10: memref<32x4xbf16, #tpu.memory_space<vmem>>, %arg11: memref<1x4xf32, #tpu.memory_space<vmem>>, %arg12: memref<2x4xf32, #tpu.memory_space<vmem>>) attributes {dimension_semantics = [], scalar_prefetch = 0 : i64, scratch_operands = 0 : i64, tpu.core_type = #tpu.core_type<tc>} {
    %c0 = arith.constant 0 : index
    %c0_0 = arith.constant 0 : index
    %0 = vector.load %arg0[%c0, %c0_0] : memref<32x16xbf16, #tpu.memory_space<vmem>>, vector<32x16xbf16>
    %c0_1 = arith.constant 0 : index
    %c0_2 = arith.constant 0 : index
    %1 = vector.load %arg1[%c0_1, %c0_2] : memref<16x64xbf16, #tpu.memory_space<vmem>>, vector<16x64xbf16>
    %cst = arith.constant dense<0.000000e+00> : vector<32x64xf32>
    %2 = tpu.matmul %0, %1, %cst {dimension_numbers = #tpu.dot_dimension_numbers<[1], [0], [0], [1], [0, 0, 1, 1], [], []>} : vector<32x16xbf16>, vector<16x64xbf16>, vector<32x64xf32> -> vector<32x64xf32>
    %c0_3 = arith.constant 0 : index
    %c0_4 = arith.constant 0 : index
    %3 = vector.load %arg2[%c0_3, %c0_4] : memref<1x64xf32, #tpu.memory_space<vmem>>, vector<1x64xf32>
    %4 = vector.broadcast %3 : vector<1x64xf32> to vector<32x64xf32>
    %5 = arith.addf %2, %4 : vector<32x64xf32>
    %c0_5 = arith.constant 0 : index
    %c0_6 = arith.constant 0 : index
    %6 = vector.load %arg3[%c0_5, %c0_6] : memref<16x64xbf16, #tpu.memory_space<vmem>>, vector<16x64xbf16>
    %cst_7 = arith.constant 0.000000e+00 : f32
    %7 = vector.broadcast %cst_7 : f32 to vector<2x16xf32>
    %cst_8 = arith.constant 0.000000e+00 : f32
    %8 = vector.broadcast %cst_8 : f32 to vector<2x16xf32>
    %9 = vector.extract_strided_slice %5 {offsets = [0, 0], sizes = [2, 64], strides = [1, 1]} : vector<32x64xf32> to vector<2x64xf32>
    %10 = arith.truncf %7 : vector<2x16xf32> to vector<2x16xbf16>
    %cst_9 = arith.constant dense<0.000000e+00> : vector<2x64xf32>
    %11 = tpu.matmul %10, %6, %cst_9 {dimension_numbers = #tpu.dot_dimension_numbers<[1], [0], [0], [1], [0, 0, 1, 1], [], []>} : vector<2x16xbf16>, vector<16x64xbf16>, vector<2x64xf32> -> vector<2x64xf32>
    %12 = arith.addf %9, %11 : vector<2x64xf32>
    %13 = vector.extract_strided_slice %12 {offsets = [0, 0], sizes = [2, 48], strides = [1, 1]} : vector<2x64xf32> to vector<2x48xf32>
    %14 = arith.negf %13 : vector<2x48xf32>
    %15 = math.exp %14 : vector<2x48xf32>
    %cst_10 = arith.constant 1.000000e+00 : f32
    %16 = vector.broadcast %cst_10 : f32 to vector<2x48xf32>
    %17 = arith.addf %16, %15 : vector<2x48xf32>
    %18 = arith.divf %16, %17 : vector<2x48xf32>
    %19 = vector.extract_strided_slice %12 {offsets = [0, 48], sizes = [2, 16], strides = [1, 1]} : vector<2x64xf32> to vector<2x16xf32>
    %20 = math.tanh %19 : vector<2x16xf32>
    %21 = vector.extract_strided_slice %18 {offsets = [0, 0], sizes = [2, 16], strides = [1, 1]} : vector<2x48xf32> to vector<2x16xf32>
    %22 = vector.extract_strided_slice %18 {offsets = [0, 16], sizes = [2, 16], strides = [1, 1]} : vector<2x48xf32> to vector<2x16xf32>
    %23 = vector.extract_strided_slice %18 {offsets = [0, 32], sizes = [2, 16], strides = [1, 1]} : vector<2x48xf32> to vector<2x16xf32>
    %24 = arith.mulf %22, %8 : vector<2x16xf32>
    %25 = arith.mulf %21, %20 : vector<2x16xf32>
    %26 = arith.addf %24, %25 : vector<2x16xf32>
    %27 = math.tanh %26 : vector<2x16xf32>
    %28 = arith.mulf %23, %27 : vector<2x16xf32>
    %29 = vector.extract_strided_slice %5 {offsets = [2, 0], sizes = [2, 64], strides = [1, 1]} : vector<32x64xf32> to vector<2x64xf32>
    %30 = arith.truncf %28 : vector<2x16xf32> to vector<2x16xbf16>
    %cst_11 = arith.constant dense<0.000000e+00> : vector<2x64xf32>
    %31 = tpu.matmul %30, %6, %cst_11 {dimension_numbers = #tpu.dot_dimension_numbers<[1], [0], [0], [1], [0, 0, 1, 1], [], []>} : vector<2x16xbf16>, vector<16x64xbf16>, vector<2x64xf32> -> vector<2x64xf32>
    %32 = arith.addf %29, %31 : vector<2x64xf32>
    %33 = vector.extract_strided_slice %32 {offsets = [0, 0], sizes = [2, 48], strides = [1, 1]} : vector<2x64xf32> to vector<2x48xf32>
    %34 = arith.negf %33 : vector<2x48xf32>
    %35 = math.exp %34 : vector<2x48xf32>
    %cst_12 = arith.constant 1.000000e+00 : f32
    %36 = vector.broadcast %cst_12 : f32 to vector<2x48xf32>
    %37 = arith.addf %36, %35 : vector<2x48xf32>
    %38 = arith.divf %36, %37 : vector<2x48xf32>
    %39 = vector.extract_strided_slice %32 {offsets = [0, 48], sizes = [2, 16], strides = [1, 1]} : vector<2x64xf32> to vector<2x16xf32>
    %40 = math.tanh %39 : vector<2x16xf32>
    %41 = vector.extract_strided_slice %38 {offsets = [0, 0], sizes = [2, 16], strides = [1, 1]} : vector<2x48xf32> to vector<2x16xf32>
    %42 = vector.extract_strided_slice %38 {offsets = [0, 16], sizes = [2, 16], strides = [1, 1]} : vector<2x48xf32> to vector<2x16xf32>
    %43 = vector.extract_strided_slice %38 {offsets = [0, 32], sizes = [2, 16], strides = [1, 1]} : vector<2x48xf32> to vector<2x16xf32>
    %44 = arith.mulf %42, %26 : vector<2x16xf32>
    %45 = arith.mulf %41, %40 : vector<2x16xf32>
    %46 = arith.addf %44, %45 : vector<2x16xf32>
    %47 = math.tanh %46 : vector<2x16xf32>
    %48 = arith.mulf %43, %47 : vector<2x16xf32>
    %49 = vector.extract_strided_slice %5 {offsets = [4, 0], sizes = [2, 64], strides = [1, 1]} : vector<32x64xf32> to vector<2x64xf32>
    %50 = arith.truncf %48 : vector<2x16xf32> to vector<2x16xbf16>
    %cst_13 = arith.constant dense<0.000000e+00> : vector<2x64xf32>
    %51 = tpu.matmul %50, %6, %cst_13 {dimension_numbers = #tpu.dot_dimension_numbers<[1], [0], [0], [1], [0, 0, 1, 1], [], []>} : vector<2x16xbf16>, vector<16x64xbf16>, vector<2x64xf32> -> vector<2x64xf32>
    %52 = arith.addf %49, %51 : vector<2x64xf32>
    %53 = vector.extract_strided_slice %52 {offsets = [0, 0], sizes = [2, 48], strides = [1, 1]} : vector<2x64xf32> to vector<2x48xf32>
    %54 = arith.negf %53 : vector<2x48xf32>
    %55 = math.exp %54 : vector<2x48xf32>
    %cst_14 = arith.constant 1.000000e+00 : f32
    %56 = vector.broadcast %cst_14 : f32 to vector<2x48xf32>
    %57 = arith.addf %56, %55 : vector<2x48xf32>
    %58 = arith.divf %56, %57 : vector<2x48xf32>
    %59 = vector.extract_strided_slice %52 {offsets = [0, 48], sizes = [2, 16], strides = [1, 1]} : vector<2x64xf32> to vector<2x16xf32>
    %60 = math.tanh %59 : vector<2x16xf32>
    %61 = vector.extract_strided_slice %58 {offsets = [0, 0], sizes = [2, 16], strides = [1, 1]} : vector<2x48xf32> to vector<2x16xf32>
    %62 = vector.extract_strided_slice %58 {offsets = [0, 16], sizes = [2, 16], strides = [1, 1]} : vector<2x48xf32> to vector<2x16xf32>
    %63 = vector.extract_strided_slice %58 {offsets = [0, 32], sizes = [2, 16], strides = [1, 1]} : vector<2x48xf32> to vector<2x16xf32>
    %64 = arith.mulf %62, %46 : vector<2x16xf32>
    %65 = arith.mulf %61, %60 : vector<2x16xf32>
    %66 = arith.addf %64, %65 : vector<2x16xf32>
    %67 = math.tanh %66 : vector<2x16xf32>
    %68 = arith.mulf %63, %67 : vector<2x16xf32>
    %69 = vector.extract_strided_slice %5 {offsets = [6, 0], sizes = [2, 64], strides = [1, 1]} : vector<32x64xf32> to vector<2x64xf32>
    %70 = arith.truncf %68 : vector<2x16xf32> to vector<2x16xbf16>
    %cst_15 = arith.constant dense<0.000000e+00> : vector<2x64xf32>
    %71 = tpu.matmul %70, %6, %cst_15 {dimension_numbers = #tpu.dot_dimension_numbers<[1], [0], [0], [1], [0, 0, 1, 1], [], []>} : vector<2x16xbf16>, vector<16x64xbf16>, vector<2x64xf32> -> vector<2x64xf32>
    %72 = arith.addf %69, %71 : vector<2x64xf32>
    %73 = vector.extract_strided_slice %72 {offsets = [0, 0], sizes = [2, 48], strides = [1, 1]} : vector<2x64xf32> to vector<2x48xf32>
    %74 = arith.negf %73 : vector<2x48xf32>
    %75 = math.exp %74 : vector<2x48xf32>
    %cst_16 = arith.constant 1.000000e+00 : f32
    %76 = vector.broadcast %cst_16 : f32 to vector<2x48xf32>
    %77 = arith.addf %76, %75 : vector<2x48xf32>
    %78 = arith.divf %76, %77 : vector<2x48xf32>
    %79 = vector.extract_strided_slice %72 {offsets = [0, 48], sizes = [2, 16], strides = [1, 1]} : vector<2x64xf32> to vector<2x16xf32>
    %80 = math.tanh %79 : vector<2x16xf32>
    %81 = vector.extract_strided_slice %78 {offsets = [0, 0], sizes = [2, 16], strides = [1, 1]} : vector<2x48xf32> to vector<2x16xf32>
    %82 = vector.extract_strided_slice %78 {offsets = [0, 16], sizes = [2, 16], strides = [1, 1]} : vector<2x48xf32> to vector<2x16xf32>
    %83 = vector.extract_strided_slice %78 {offsets = [0, 32], sizes = [2, 16], strides = [1, 1]} : vector<2x48xf32> to vector<2x16xf32>
    %84 = arith.mulf %82, %66 : vector<2x16xf32>
    %85 = arith.mulf %81, %80 : vector<2x16xf32>
    %86 = arith.addf %84, %85 : vector<2x16xf32>
    %87 = math.tanh %86 : vector<2x16xf32>
    %88 = arith.mulf %83, %87 : vector<2x16xf32>
    %89 = vector.extract_strided_slice %5 {offsets = [8, 0], sizes = [2, 64], strides = [1, 1]} : vector<32x64xf32> to vector<2x64xf32>
    %90 = arith.truncf %88 : vector<2x16xf32> to vector<2x16xbf16>
    %cst_17 = arith.constant dense<0.000000e+00> : vector<2x64xf32>
    %91 = tpu.matmul %90, %6, %cst_17 {dimension_numbers = #tpu.dot_dimension_numbers<[1], [0], [0], [1], [0, 0, 1, 1], [], []>} : vector<2x16xbf16>, vector<16x64xbf16>, vector<2x64xf32> -> vector<2x64xf32>
    %92 = arith.addf %89, %91 : vector<2x64xf32>
    %93 = vector.extract_strided_slice %92 {offsets = [0, 0], sizes = [2, 48], strides = [1, 1]} : vector<2x64xf32> to vector<2x48xf32>
    %94 = arith.negf %93 : vector<2x48xf32>
    %95 = math.exp %94 : vector<2x48xf32>
    %cst_18 = arith.constant 1.000000e+00 : f32
    %96 = vector.broadcast %cst_18 : f32 to vector<2x48xf32>
    %97 = arith.addf %96, %95 : vector<2x48xf32>
    %98 = arith.divf %96, %97 : vector<2x48xf32>
    %99 = vector.extract_strided_slice %92 {offsets = [0, 48], sizes = [2, 16], strides = [1, 1]} : vector<2x64xf32> to vector<2x16xf32>
    %100 = math.tanh %99 : vector<2x16xf32>
    %101 = vector.extract_strided_slice %98 {offsets = [0, 0], sizes = [2, 16], strides = [1, 1]} : vector<2x48xf32> to vector<2x16xf32>
    %102 = vector.extract_strided_slice %98 {offsets = [0, 16], sizes = [2, 16], strides = [1, 1]} : vector<2x48xf32> to vector<2x16xf32>
    %103 = vector.extract_strided_slice %98 {offsets = [0, 32], sizes = [2, 16], strides = [1, 1]} : vector<2x48xf32> to vector<2x16xf32>
    %104 = arith.mulf %102, %86 : vector<2x16xf32>
    %105 = arith.mulf %101, %100 : vector<2x16xf32>
    %106 = arith.addf %104, %105 : vector<2x16xf32>
    %107 = math.tanh %106 : vector<2x16xf32>
    %108 = arith.mulf %103, %107 : vector<2x16xf32>
    %109 = vector.extract_strided_slice %5 {offsets = [10, 0], sizes = [2, 64], strides = [1, 1]} : vector<32x64xf32> to vector<2x64xf32>
    %110 = arith.truncf %108 : vector<2x16xf32> to vector<2x16xbf16>
    %cst_19 = arith.constant dense<0.000000e+00> : vector<2x64xf32>
    %111 = tpu.matmul %110, %6, %cst_19 {dimension_numbers = #tpu.dot_dimension_numbers<[1], [0], [0], [1], [0, 0, 1, 1], [], []>} : vector<2x16xbf16>, vector<16x64xbf16>, vector<2x64xf32> -> vector<2x64xf32>
    %112 = arith.addf %109, %111 : vector<2x64xf32>
    %113 = vector.extract_strided_slice %112 {offsets = [0, 0], sizes = [2, 48], strides = [1, 1]} : vector<2x64xf32> to vector<2x48xf32>
    %114 = arith.negf %113 : vector<2x48xf32>
    %115 = math.exp %114 : vector<2x48xf32>
    %cst_20 = arith.constant 1.000000e+00 : f32
    %116 = vector.broadcast %cst_20 : f32 to vector<2x48xf32>
    %117 = arith.addf %116, %115 : vector<2x48xf32>
    %118 = arith.divf %116, %117 : vector<2x48xf32>
    %119 = vector.extract_strided_slice %112 {offsets = [0, 48], sizes = [2, 16], strides = [1, 1]} : vector<2x64xf32> to vector<2x16xf32>
    %120 = math.tanh %119 : vector<2x16xf32>
    %121 = vector.extract_strided_slice %118 {offsets = [0, 0], sizes = [2, 16], strides = [1, 1]} : vector<2x48xf32> to vector<2x16xf32>
    %122 = vector.extract_strided_slice %118 {offsets = [0, 16], sizes = [2, 16], strides = [1, 1]} : vector<2x48xf32> to vector<2x16xf32>
    %123 = vector.extract_strided_slice %118 {offsets = [0, 32], sizes = [2, 16], strides = [1, 1]} : vector<2x48xf32> to vector<2x16xf32>
    %124 = arith.mulf %122, %106 : vector<2x16xf32>
    %125 = arith.mulf %121, %120 : vector<2x16xf32>
    %126 = arith.addf %124, %125 : vector<2x16xf32>
    %127 = math.tanh %126 : vector<2x16xf32>
    %128 = arith.mulf %123, %127 : vector<2x16xf32>
    %129 = vector.extract_strided_slice %5 {offsets = [12, 0], sizes = [2, 64], strides = [1, 1]} : vector<32x64xf32> to vector<2x64xf32>
    %130 = arith.truncf %128 : vector<2x16xf32> to vector<2x16xbf16>
    %cst_21 = arith.constant dense<0.000000e+00> : vector<2x64xf32>
    %131 = tpu.matmul %130, %6, %cst_21 {dimension_numbers = #tpu.dot_dimension_numbers<[1], [0], [0], [1], [0, 0, 1, 1], [], []>} : vector<2x16xbf16>, vector<16x64xbf16>, vector<2x64xf32> -> vector<2x64xf32>
    %132 = arith.addf %129, %131 : vector<2x64xf32>
    %133 = vector.extract_strided_slice %132 {offsets = [0, 0], sizes = [2, 48], strides = [1, 1]} : vector<2x64xf32> to vector<2x48xf32>
    %134 = arith.negf %133 : vector<2x48xf32>
    %135 = math.exp %134 : vector<2x48xf32>
    %cst_22 = arith.constant 1.000000e+00 : f32
    %136 = vector.broadcast %cst_22 : f32 to vector<2x48xf32>
    %137 = arith.addf %136, %135 : vector<2x48xf32>
    %138 = arith.divf %136, %137 : vector<2x48xf32>
    %139 = vector.extract_strided_slice %132 {offsets = [0, 48], sizes = [2, 16], strides = [1, 1]} : vector<2x64xf32> to vector<2x16xf32>
    %140 = math.tanh %139 : vector<2x16xf32>
    %141 = vector.extract_strided_slice %138 {offsets = [0, 0], sizes = [2, 16], strides = [1, 1]} : vector<2x48xf32> to vector<2x16xf32>
    %142 = vector.extract_strided_slice %138 {offsets = [0, 16], sizes = [2, 16], strides = [1, 1]} : vector<2x48xf32> to vector<2x16xf32>
    %143 = vector.extract_strided_slice %138 {offsets = [0, 32], sizes = [2, 16], strides = [1, 1]} : vector<2x48xf32> to vector<2x16xf32>
    %144 = arith.mulf %142, %126 : vector<2x16xf32>
    %145 = arith.mulf %141, %140 : vector<2x16xf32>
    %146 = arith.addf %144, %145 : vector<2x16xf32>
    %147 = math.tanh %146 : vector<2x16xf32>
    %148 = arith.mulf %143, %147 : vector<2x16xf32>
    %149 = vector.extract_strided_slice %5 {offsets = [14, 0], sizes = [2, 64], strides = [1, 1]} : vector<32x64xf32> to vector<2x64xf32>
    %150 = arith.truncf %148 : vector<2x16xf32> to vector<2x16xbf16>
    %cst_23 = arith.constant dense<0.000000e+00> : vector<2x64xf32>
    %151 = tpu.matmul %150, %6, %cst_23 {dimension_numbers = #tpu.dot_dimension_numbers<[1], [0], [0], [1], [0, 0, 1, 1], [], []>} : vector<2x16xbf16>, vector<16x64xbf16>, vector<2x64xf32> -> vector<2x64xf32>
    %152 = arith.addf %149, %151 : vector<2x64xf32>
    %153 = vector.extract_strided_slice %152 {offsets = [0, 0], sizes = [2, 48], strides = [1, 1]} : vector<2x64xf32> to vector<2x48xf32>
    %154 = arith.negf %153 : vector<2x48xf32>
    %155 = math.exp %154 : vector<2x48xf32>
    %cst_24 = arith.constant 1.000000e+00 : f32
    %156 = vector.broadcast %cst_24 : f32 to vector<2x48xf32>
    %157 = arith.addf %156, %155 : vector<2x48xf32>
    %158 = arith.divf %156, %157 : vector<2x48xf32>
    %159 = vector.extract_strided_slice %152 {offsets = [0, 48], sizes = [2, 16], strides = [1, 1]} : vector<2x64xf32> to vector<2x16xf32>
    %160 = math.tanh %159 : vector<2x16xf32>
    %161 = vector.extract_strided_slice %158 {offsets = [0, 0], sizes = [2, 16], strides = [1, 1]} : vector<2x48xf32> to vector<2x16xf32>
    %162 = vector.extract_strided_slice %158 {offsets = [0, 16], sizes = [2, 16], strides = [1, 1]} : vector<2x48xf32> to vector<2x16xf32>
    %163 = vector.extract_strided_slice %158 {offsets = [0, 32], sizes = [2, 16], strides = [1, 1]} : vector<2x48xf32> to vector<2x16xf32>
    %164 = arith.mulf %162, %146 : vector<2x16xf32>
    %165 = arith.mulf %161, %160 : vector<2x16xf32>
    %166 = arith.addf %164, %165 : vector<2x16xf32>
    %167 = math.tanh %166 : vector<2x16xf32>
    %168 = arith.mulf %163, %167 : vector<2x16xf32>
    %169 = vector.extract_strided_slice %5 {offsets = [16, 0], sizes = [2, 64], strides = [1, 1]} : vector<32x64xf32> to vector<2x64xf32>
    %170 = arith.truncf %168 : vector<2x16xf32> to vector<2x16xbf16>
    %cst_25 = arith.constant dense<0.000000e+00> : vector<2x64xf32>
    %171 = tpu.matmul %170, %6, %cst_25 {dimension_numbers = #tpu.dot_dimension_numbers<[1], [0], [0], [1], [0, 0, 1, 1], [], []>} : vector<2x16xbf16>, vector<16x64xbf16>, vector<2x64xf32> -> vector<2x64xf32>
    %172 = arith.addf %169, %171 : vector<2x64xf32>
    %173 = vector.extract_strided_slice %172 {offsets = [0, 0], sizes = [2, 48], strides = [1, 1]} : vector<2x64xf32> to vector<2x48xf32>
    %174 = arith.negf %173 : vector<2x48xf32>
    %175 = math.exp %174 : vector<2x48xf32>
    %cst_26 = arith.constant 1.000000e+00 : f32
    %176 = vector.broadcast %cst_26 : f32 to vector<2x48xf32>
    %177 = arith.addf %176, %175 : vector<2x48xf32>
    %178 = arith.divf %176, %177 : vector<2x48xf32>
    %179 = vector.extract_strided_slice %172 {offsets = [0, 48], sizes = [2, 16], strides = [1, 1]} : vector<2x64xf32> to vector<2x16xf32>
    %180 = math.tanh %179 : vector<2x16xf32>
    %181 = vector.extract_strided_slice %178 {offsets = [0, 0], sizes = [2, 16], strides = [1, 1]} : vector<2x48xf32> to vector<2x16xf32>
    %182 = vector.extract_strided_slice %178 {offsets = [0, 16], sizes = [2, 16], strides = [1, 1]} : vector<2x48xf32> to vector<2x16xf32>
    %183 = vector.extract_strided_slice %178 {offsets = [0, 32], sizes = [2, 16], strides = [1, 1]} : vector<2x48xf32> to vector<2x16xf32>
    %184 = arith.mulf %182, %166 : vector<2x16xf32>
    %185 = arith.mulf %181, %180 : vector<2x16xf32>
    %186 = arith.addf %184, %185 : vector<2x16xf32>
    %187 = math.tanh %186 : vector<2x16xf32>
    %188 = arith.mulf %183, %187 : vector<2x16xf32>
    %189 = vector.extract_strided_slice %5 {offsets = [18, 0], sizes = [2, 64], strides = [1, 1]} : vector<32x64xf32> to vector<2x64xf32>
    %190 = arith.truncf %188 : vector<2x16xf32> to vector<2x16xbf16>
    %cst_27 = arith.constant dense<0.000000e+00> : vector<2x64xf32>
    %191 = tpu.matmul %190, %6, %cst_27 {dimension_numbers = #tpu.dot_dimension_numbers<[1], [0], [0], [1], [0, 0, 1, 1], [], []>} : vector<2x16xbf16>, vector<16x64xbf16>, vector<2x64xf32> -> vector<2x64xf32>
    %192 = arith.addf %189, %191 : vector<2x64xf32>
    %193 = vector.extract_strided_slice %192 {offsets = [0, 0], sizes = [2, 48], strides = [1, 1]} : vector<2x64xf32> to vector<2x48xf32>
    %194 = arith.negf %193 : vector<2x48xf32>
    %195 = math.exp %194 : vector<2x48xf32>
    %cst_28 = arith.constant 1.000000e+00 : f32
    %196 = vector.broadcast %cst_28 : f32 to vector<2x48xf32>
    %197 = arith.addf %196, %195 : vector<2x48xf32>
    %198 = arith.divf %196, %197 : vector<2x48xf32>
    %199 = vector.extract_strided_slice %192 {offsets = [0, 48], sizes = [2, 16], strides = [1, 1]} : vector<2x64xf32> to vector<2x16xf32>
    %200 = math.tanh %199 : vector<2x16xf32>
    %201 = vector.extract_strided_slice %198 {offsets = [0, 0], sizes = [2, 16], strides = [1, 1]} : vector<2x48xf32> to vector<2x16xf32>
    %202 = vector.extract_strided_slice %198 {offsets = [0, 16], sizes = [2, 16], strides = [1, 1]} : vector<2x48xf32> to vector<2x16xf32>
    %203 = vector.extract_strided_slice %198 {offsets = [0, 32], sizes = [2, 16], strides = [1, 1]} : vector<2x48xf32> to vector<2x16xf32>
    %204 = arith.mulf %202, %186 : vector<2x16xf32>
    %205 = arith.mulf %201, %200 : vector<2x16xf32>
    %206 = arith.addf %204, %205 : vector<2x16xf32>
    %207 = math.tanh %206 : vector<2x16xf32>
    %208 = arith.mulf %203, %207 : vector<2x16xf32>
    %209 = vector.extract_strided_slice %5 {offsets = [20, 0], sizes = [2, 64], strides = [1, 1]} : vector<32x64xf32> to vector<2x64xf32>
    %210 = arith.truncf %208 : vector<2x16xf32> to vector<2x16xbf16>
    %cst_29 = arith.constant dense<0.000000e+00> : vector<2x64xf32>
    %211 = tpu.matmul %210, %6, %cst_29 {dimension_numbers = #tpu.dot_dimension_numbers<[1], [0], [0], [1], [0, 0, 1, 1], [], []>} : vector<2x16xbf16>, vector<16x64xbf16>, vector<2x64xf32> -> vector<2x64xf32>
    %212 = arith.addf %209, %211 : vector<2x64xf32>
    %213 = vector.extract_strided_slice %212 {offsets = [0, 0], sizes = [2, 48], strides = [1, 1]} : vector<2x64xf32> to vector<2x48xf32>
    %214 = arith.negf %213 : vector<2x48xf32>
    %215 = math.exp %214 : vector<2x48xf32>
    %cst_30 = arith.constant 1.000000e+00 : f32
    %216 = vector.broadcast %cst_30 : f32 to vector<2x48xf32>
    %217 = arith.addf %216, %215 : vector<2x48xf32>
    %218 = arith.divf %216, %217 : vector<2x48xf32>
    %219 = vector.extract_strided_slice %212 {offsets = [0, 48], sizes = [2, 16], strides = [1, 1]} : vector<2x64xf32> to vector<2x16xf32>
    %220 = math.tanh %219 : vector<2x16xf32>
    %221 = vector.extract_strided_slice %218 {offsets = [0, 0], sizes = [2, 16], strides = [1, 1]} : vector<2x48xf32> to vector<2x16xf32>
    %222 = vector.extract_strided_slice %218 {offsets = [0, 16], sizes = [2, 16], strides = [1, 1]} : vector<2x48xf32> to vector<2x16xf32>
    %223 = vector.extract_strided_slice %218 {offsets = [0, 32], sizes = [2, 16], strides = [1, 1]} : vector<2x48xf32> to vector<2x16xf32>
    %224 = arith.mulf %222, %206 : vector<2x16xf32>
    %225 = arith.mulf %221, %220 : vector<2x16xf32>
    %226 = arith.addf %224, %225 : vector<2x16xf32>
    %227 = math.tanh %226 : vector<2x16xf32>
    %228 = arith.mulf %223, %227 : vector<2x16xf32>
    %229 = vector.extract_strided_slice %5 {offsets = [22, 0], sizes = [2, 64], strides = [1, 1]} : vector<32x64xf32> to vector<2x64xf32>
    %230 = arith.truncf %228 : vector<2x16xf32> to vector<2x16xbf16>
    %cst_31 = arith.constant dense<0.000000e+00> : vector<2x64xf32>
    %231 = tpu.matmul %230, %6, %cst_31 {dimension_numbers = #tpu.dot_dimension_numbers<[1], [0], [0], [1], [0, 0, 1, 1], [], []>} : vector<2x16xbf16>, vector<16x64xbf16>, vector<2x64xf32> -> vector<2x64xf32>
    %232 = arith.addf %229, %231 : vector<2x64xf32>
    %233 = vector.extract_strided_slice %232 {offsets = [0, 0], sizes = [2, 48], strides = [1, 1]} : vector<2x64xf32> to vector<2x48xf32>
    %234 = arith.negf %233 : vector<2x48xf32>
    %235 = math.exp %234 : vector<2x48xf32>
    %cst_32 = arith.constant 1.000000e+00 : f32
    %236 = vector.broadcast %cst_32 : f32 to vector<2x48xf32>
    %237 = arith.addf %236, %235 : vector<2x48xf32>
    %238 = arith.divf %236, %237 : vector<2x48xf32>
    %239 = vector.extract_strided_slice %232 {offsets = [0, 48], sizes = [2, 16], strides = [1, 1]} : vector<2x64xf32> to vector<2x16xf32>
    %240 = math.tanh %239 : vector<2x16xf32>
    %241 = vector.extract_strided_slice %238 {offsets = [0, 0], sizes = [2, 16], strides = [1, 1]} : vector<2x48xf32> to vector<2x16xf32>
    %242 = vector.extract_strided_slice %238 {offsets = [0, 16], sizes = [2, 16], strides = [1, 1]} : vector<2x48xf32> to vector<2x16xf32>
    %243 = vector.extract_strided_slice %238 {offsets = [0, 32], sizes = [2, 16], strides = [1, 1]} : vector<2x48xf32> to vector<2x16xf32>
    %244 = arith.mulf %242, %226 : vector<2x16xf32>
    %245 = arith.mulf %241, %240 : vector<2x16xf32>
    %246 = arith.addf %244, %245 : vector<2x16xf32>
    %247 = math.tanh %246 : vector<2x16xf32>
    %248 = arith.mulf %243, %247 : vector<2x16xf32>
    %249 = vector.extract_strided_slice %5 {offsets = [24, 0], sizes = [2, 64], strides = [1, 1]} : vector<32x64xf32> to vector<2x64xf32>
    %250 = arith.truncf %248 : vector<2x16xf32> to vector<2x16xbf16>
    %cst_33 = arith.constant dense<0.000000e+00> : vector<2x64xf32>
    %251 = tpu.matmul %250, %6, %cst_33 {dimension_numbers = #tpu.dot_dimension_numbers<[1], [0], [0], [1], [0, 0, 1, 1], [], []>} : vector<2x16xbf16>, vector<16x64xbf16>, vector<2x64xf32> -> vector<2x64xf32>
    %252 = arith.addf %249, %251 : vector<2x64xf32>
    %253 = vector.extract_strided_slice %252 {offsets = [0, 0], sizes = [2, 48], strides = [1, 1]} : vector<2x64xf32> to vector<2x48xf32>
    %254 = arith.negf %253 : vector<2x48xf32>
    %255 = math.exp %254 : vector<2x48xf32>
    %cst_34 = arith.constant 1.000000e+00 : f32
    %256 = vector.broadcast %cst_34 : f32 to vector<2x48xf32>
    %257 = arith.addf %256, %255 : vector<2x48xf32>
    %258 = arith.divf %256, %257 : vector<2x48xf32>
    %259 = vector.extract_strided_slice %252 {offsets = [0, 48], sizes = [2, 16], strides = [1, 1]} : vector<2x64xf32> to vector<2x16xf32>
    %260 = math.tanh %259 : vector<2x16xf32>
    %261 = vector.extract_strided_slice %258 {offsets = [0, 0], sizes = [2, 16], strides = [1, 1]} : vector<2x48xf32> to vector<2x16xf32>
    %262 = vector.extract_strided_slice %258 {offsets = [0, 16], sizes = [2, 16], strides = [1, 1]} : vector<2x48xf32> to vector<2x16xf32>
    %263 = vector.extract_strided_slice %258 {offsets = [0, 32], sizes = [2, 16], strides = [1, 1]} : vector<2x48xf32> to vector<2x16xf32>
    %264 = arith.mulf %262, %246 : vector<2x16xf32>
    %265 = arith.mulf %261, %260 : vector<2x16xf32>
    %266 = arith.addf %264, %265 : vector<2x16xf32>
    %267 = math.tanh %266 : vector<2x16xf32>
    %268 = arith.mulf %263, %267 : vector<2x16xf32>
    %269 = vector.extract_strided_slice %5 {offsets = [26, 0], sizes = [2, 64], strides = [1, 1]} : vector<32x64xf32> to vector<2x64xf32>
    %270 = arith.truncf %268 : vector<2x16xf32> to vector<2x16xbf16>
    %cst_35 = arith.constant dense<0.000000e+00> : vector<2x64xf32>
    %271 = tpu.matmul %270, %6, %cst_35 {dimension_numbers = #tpu.dot_dimension_numbers<[1], [0], [0], [1], [0, 0, 1, 1], [], []>} : vector<2x16xbf16>, vector<16x64xbf16>, vector<2x64xf32> -> vector<2x64xf32>
    %272 = arith.addf %269, %271 : vector<2x64xf32>
    %273 = vector.extract_strided_slice %272 {offsets = [0, 0], sizes = [2, 48], strides = [1, 1]} : vector<2x64xf32> to vector<2x48xf32>
    %274 = arith.negf %273 : vector<2x48xf32>
    %275 = math.exp %274 : vector<2x48xf32>
    %cst_36 = arith.constant 1.000000e+00 : f32
    %276 = vector.broadcast %cst_36 : f32 to vector<2x48xf32>
    %277 = arith.addf %276, %275 : vector<2x48xf32>
    %278 = arith.divf %276, %277 : vector<2x48xf32>
    %279 = vector.extract_strided_slice %272 {offsets = [0, 48], sizes = [2, 16], strides = [1, 1]} : vector<2x64xf32> to vector<2x16xf32>
    %280 = math.tanh %279 : vector<2x16xf32>
    %281 = vector.extract_strided_slice %278 {offsets = [0, 0], sizes = [2, 16], strides = [1, 1]} : vector<2x48xf32> to vector<2x16xf32>
    %282 = vector.extract_strided_slice %278 {offsets = [0, 16], sizes = [2, 16], strides = [1, 1]} : vector<2x48xf32> to vector<2x16xf32>
    %283 = vector.extract_strided_slice %278 {offsets = [0, 32], sizes = [2, 16], strides = [1, 1]} : vector<2x48xf32> to vector<2x16xf32>
    %284 = arith.mulf %282, %266 : vector<2x16xf32>
    %285 = arith.mulf %281, %280 : vector<2x16xf32>
    %286 = arith.addf %284, %285 : vector<2x16xf32>
    %287 = math.tanh %286 : vector<2x16xf32>
    %288 = arith.mulf %283, %287 : vector<2x16xf32>
    %289 = vector.extract_strided_slice %5 {offsets = [28, 0], sizes = [2, 64], strides = [1, 1]} : vector<32x64xf32> to vector<2x64xf32>
    %290 = arith.truncf %288 : vector<2x16xf32> to vector<2x16xbf16>
    %cst_37 = arith.constant dense<0.000000e+00> : vector<2x64xf32>
    %291 = tpu.matmul %290, %6, %cst_37 {dimension_numbers = #tpu.dot_dimension_numbers<[1], [0], [0], [1], [0, 0, 1, 1], [], []>} : vector<2x16xbf16>, vector<16x64xbf16>, vector<2x64xf32> -> vector<2x64xf32>
    %292 = arith.addf %289, %291 : vector<2x64xf32>
    %293 = vector.extract_strided_slice %292 {offsets = [0, 0], sizes = [2, 48], strides = [1, 1]} : vector<2x64xf32> to vector<2x48xf32>
    %294 = arith.negf %293 : vector<2x48xf32>
    %295 = math.exp %294 : vector<2x48xf32>
    %cst_38 = arith.constant 1.000000e+00 : f32
    %296 = vector.broadcast %cst_38 : f32 to vector<2x48xf32>
    %297 = arith.addf %296, %295 : vector<2x48xf32>
    %298 = arith.divf %296, %297 : vector<2x48xf32>
    %299 = vector.extract_strided_slice %292 {offsets = [0, 48], sizes = [2, 16], strides = [1, 1]} : vector<2x64xf32> to vector<2x16xf32>
    %300 = math.tanh %299 : vector<2x16xf32>
    %301 = vector.extract_strided_slice %298 {offsets = [0, 0], sizes = [2, 16], strides = [1, 1]} : vector<2x48xf32> to vector<2x16xf32>
    %302 = vector.extract_strided_slice %298 {offsets = [0, 16], sizes = [2, 16], strides = [1, 1]} : vector<2x48xf32> to vector<2x16xf32>
    %303 = vector.extract_strided_slice %298 {offsets = [0, 32], sizes = [2, 16], strides = [1, 1]} : vector<2x48xf32> to vector<2x16xf32>
    %304 = arith.mulf %302, %286 : vector<2x16xf32>
    %305 = arith.mulf %301, %300 : vector<2x16xf32>
    %306 = arith.addf %304, %305 : vector<2x16xf32>
    %307 = math.tanh %306 : vector<2x16xf32>
    %308 = arith.mulf %303, %307 : vector<2x16xf32>
    %309 = vector.extract_strided_slice %5 {offsets = [30, 0], sizes = [2, 64], strides = [1, 1]} : vector<32x64xf32> to vector<2x64xf32>
    %310 = arith.truncf %308 : vector<2x16xf32> to vector<2x16xbf16>
    %cst_39 = arith.constant dense<0.000000e+00> : vector<2x64xf32>
    %311 = tpu.matmul %310, %6, %cst_39 {dimension_numbers = #tpu.dot_dimension_numbers<[1], [0], [0], [1], [0, 0, 1, 1], [], []>} : vector<2x16xbf16>, vector<16x64xbf16>, vector<2x64xf32> -> vector<2x64xf32>
    %312 = arith.addf %309, %311 : vector<2x64xf32>
    %313 = vector.extract_strided_slice %312 {offsets = [0, 0], sizes = [2, 48], strides = [1, 1]} : vector<2x64xf32> to vector<2x48xf32>
    %314 = arith.negf %313 : vector<2x48xf32>
    %315 = math.exp %314 : vector<2x48xf32>
    %cst_40 = arith.constant 1.000000e+00 : f32
    %316 = vector.broadcast %cst_40 : f32 to vector<2x48xf32>
    %317 = arith.addf %316, %315 : vector<2x48xf32>
    %318 = arith.divf %316, %317 : vector<2x48xf32>
    %319 = vector.extract_strided_slice %312 {offsets = [0, 48], sizes = [2, 16], strides = [1, 1]} : vector<2x64xf32> to vector<2x16xf32>
    %320 = math.tanh %319 : vector<2x16xf32>
    %321 = vector.extract_strided_slice %318 {offsets = [0, 0], sizes = [2, 16], strides = [1, 1]} : vector<2x48xf32> to vector<2x16xf32>
    %322 = vector.extract_strided_slice %318 {offsets = [0, 16], sizes = [2, 16], strides = [1, 1]} : vector<2x48xf32> to vector<2x16xf32>
    %323 = vector.extract_strided_slice %318 {offsets = [0, 32], sizes = [2, 16], strides = [1, 1]} : vector<2x48xf32> to vector<2x16xf32>
    %324 = arith.mulf %322, %306 : vector<2x16xf32>
    %325 = arith.mulf %321, %320 : vector<2x16xf32>
    %326 = arith.addf %324, %325 : vector<2x16xf32>
    %327 = math.tanh %326 : vector<2x16xf32>
    %328 = arith.mulf %323, %327 : vector<2x16xf32>
    %329 = vector.extract_strided_slice %28 {offsets = [0, 0], sizes = [2, 8], strides = [1, 1]} : vector<2x16xf32> to vector<2x8xf32>
    %330 = vector.extract_strided_slice %48 {offsets = [0, 0], sizes = [2, 8], strides = [1, 1]} : vector<2x16xf32> to vector<2x8xf32>
    %331 = vector.extract_strided_slice %68 {offsets = [0, 0], sizes = [2, 8], strides = [1, 1]} : vector<2x16xf32> to vector<2x8xf32>
    %332 = vector.extract_strided_slice %88 {offsets = [0, 0], sizes = [2, 8], strides = [1, 1]} : vector<2x16xf32> to vector<2x8xf32>
    %333 = vector.extract_strided_slice %108 {offsets = [0, 0], sizes = [2, 8], strides = [1, 1]} : vector<2x16xf32> to vector<2x8xf32>
    %334 = vector.extract_strided_slice %128 {offsets = [0, 0], sizes = [2, 8], strides = [1, 1]} : vector<2x16xf32> to vector<2x8xf32>
    %335 = vector.extract_strided_slice %148 {offsets = [0, 0], sizes = [2, 8], strides = [1, 1]} : vector<2x16xf32> to vector<2x8xf32>
    %336 = vector.extract_strided_slice %168 {offsets = [0, 0], sizes = [2, 8], strides = [1, 1]} : vector<2x16xf32> to vector<2x8xf32>
    %337 = vector.extract_strided_slice %188 {offsets = [0, 0], sizes = [2, 8], strides = [1, 1]} : vector<2x16xf32> to vector<2x8xf32>
    %338 = vector.extract_strided_slice %208 {offsets = [0, 0], sizes = [2, 8], strides = [1, 1]} : vector<2x16xf32> to vector<2x8xf32>
    %339 = vector.extract_strided_slice %228 {offsets = [0, 0], sizes = [2, 8], strides = [1, 1]} : vector<2x16xf32> to vector<2x8xf32>
    %340 = vector.extract_strided_slice %248 {offsets = [0, 0], sizes = [2, 8], strides = [1, 1]} : vector<2x16xf32> to vector<2x8xf32>
    %341 = vector.extract_strided_slice %268 {offsets = [0, 0], sizes = [2, 8], strides = [1, 1]} : vector<2x16xf32> to vector<2x8xf32>
    %342 = vector.extract_strided_slice %288 {offsets = [0, 0], sizes = [2, 8], strides = [1, 1]} : vector<2x16xf32> to vector<2x8xf32>
    %343 = vector.extract_strided_slice %308 {offsets = [0, 0], sizes = [2, 8], strides = [1, 1]} : vector<2x16xf32> to vector<2x8xf32>
    %344 = vector.extract_strided_slice %328 {offsets = [0, 0], sizes = [2, 8], strides = [1, 1]} : vector<2x16xf32> to vector<2x8xf32>
    %345 = tpu.concatenate %329, %330, %331, %332, %333, %334, %335, %336, %337, %338, %339, %340, %341, %342, %343, %344 in 0 : vector<2x8xf32>, vector<2x8xf32>, vector<2x8xf32>, vector<2x8xf32>, vector<2x8xf32>, vector<2x8xf32>, vector<2x8xf32>, vector<2x8xf32>, vector<2x8xf32>, vector<2x8xf32>, vector<2x8xf32>, vector<2x8xf32>, vector<2x8xf32>, vector<2x8xf32>, vector<2x8xf32>, vector<2x8xf32> -> vector<32x8xf32>
    %346 = vector.extract_strided_slice %328 {offsets = [0, 8], sizes = [2, 8], strides = [1, 1]} : vector<2x16xf32> to vector<2x8xf32>
    %347 = vector.extract_strided_slice %308 {offsets = [0, 8], sizes = [2, 8], strides = [1, 1]} : vector<2x16xf32> to vector<2x8xf32>
    %348 = vector.extract_strided_slice %288 {offsets = [0, 8], sizes = [2, 8], strides = [1, 1]} : vector<2x16xf32> to vector<2x8xf32>
    %349 = vector.extract_strided_slice %268 {offsets = [0, 8], sizes = [2, 8], strides = [1, 1]} : vector<2x16xf32> to vector<2x8xf32>
    %350 = vector.extract_strided_slice %248 {offsets = [0, 8], sizes = [2, 8], strides = [1, 1]} : vector<2x16xf32> to vector<2x8xf32>
    %351 = vector.extract_strided_slice %228 {offsets = [0, 8], sizes = [2, 8], strides = [1, 1]} : vector<2x16xf32> to vector<2x8xf32>
    %352 = vector.extract_strided_slice %208 {offsets = [0, 8], sizes = [2, 8], strides = [1, 1]} : vector<2x16xf32> to vector<2x8xf32>
    %353 = vector.extract_strided_slice %188 {offsets = [0, 8], sizes = [2, 8], strides = [1, 1]} : vector<2x16xf32> to vector<2x8xf32>
    %354 = vector.extract_strided_slice %168 {offsets = [0, 8], sizes = [2, 8], strides = [1, 1]} : vector<2x16xf32> to vector<2x8xf32>
    %355 = vector.extract_strided_slice %148 {offsets = [0, 8], sizes = [2, 8], strides = [1, 1]} : vector<2x16xf32> to vector<2x8xf32>
    %356 = vector.extract_strided_slice %128 {offsets = [0, 8], sizes = [2, 8], strides = [1, 1]} : vector<2x16xf32> to vector<2x8xf32>
    %357 = vector.extract_strided_slice %108 {offsets = [0, 8], sizes = [2, 8], strides = [1, 1]} : vector<2x16xf32> to vector<2x8xf32>
    %358 = vector.extract_strided_slice %88 {offsets = [0, 8], sizes = [2, 8], strides = [1, 1]} : vector<2x16xf32> to vector<2x8xf32>
    %359 = vector.extract_strided_slice %68 {offsets = [0, 8], sizes = [2, 8], strides = [1, 1]} : vector<2x16xf32> to vector<2x8xf32>
    %360 = vector.extract_strided_slice %48 {offsets = [0, 8], sizes = [2, 8], strides = [1, 1]} : vector<2x16xf32> to vector<2x8xf32>
    %361 = vector.extract_strided_slice %28 {offsets = [0, 8], sizes = [2, 8], strides = [1, 1]} : vector<2x16xf32> to vector<2x8xf32>
    %362 = tpu.concatenate %346, %347, %348, %349, %350, %351, %352, %353, %354, %355, %356, %357, %358, %359, %360, %361 in 0 : vector<2x8xf32>, vector<2x8xf32>, vector<2x8xf32>, vector<2x8xf32>, vector<2x8xf32>, vector<2x8xf32>, vector<2x8xf32>, vector<2x8xf32>, vector<2x8xf32>, vector<2x8xf32>, vector<2x8xf32>, vector<2x8xf32>, vector<2x8xf32>, vector<2x8xf32>, vector<2x8xf32>, vector<2x8xf32> -> vector<32x8xf32>
    %363 = tpu.concatenate %345, %362 in 1 : vector<32x8xf32>, vector<32x8xf32> -> vector<32x16xf32>
    %364 = arith.truncf %363 : vector<32x16xf32> to vector<32x16xbf16>
    %c0_41 = arith.constant 0 : index
    %c0_42 = arith.constant 0 : index
    %365 = vector.load %arg5[%c0_41, %c0_42] : memref<1x8xf32, #tpu.memory_space<vmem>>, vector<1x8xf32>
    %cst_43 = arith.constant 0.000000e+00 : f32
    %366 = vector.broadcast %cst_43 : f32 to vector<28x8xf32>
    %367 = vector.extract_strided_slice %364 {offsets = [0, 0], sizes = [28, 16], strides = [1, 1]} : vector<32x16xbf16> to vector<28x16xbf16>
    %c0_44 = arith.constant 0 : index
    %c0_45 = arith.constant 0 : index
    %c0_46 = arith.constant 0 : index
    %368 = vector.load %arg4[%c0_44, %c0_45, %c0_46] : memref<3x16x8xbf16, #tpu.memory_space<vmem>>, vector<1x16x8xbf16>
    %369 = vector.shape_cast %368 : vector<1x16x8xbf16> to vector<16x8xbf16>
    %cst_47 = arith.constant dense<0.000000e+00> : vector<28x8xf32>
    %370 = tpu.matmul %367, %369, %cst_47 {dimension_numbers = #tpu.dot_dimension_numbers<[1], [0], [0], [1], [0, 0, 1, 1], [], []>} : vector<28x16xbf16>, vector<16x8xbf16>, vector<28x8xf32> -> vector<28x8xf32>
    %371 = arith.addf %366, %370 : vector<28x8xf32>
    %372 = vector.extract_strided_slice %364 {offsets = [2, 0], sizes = [28, 16], strides = [1, 1]} : vector<32x16xbf16> to vector<28x16xbf16>
    %c1 = arith.constant 1 : index
    %c0_48 = arith.constant 0 : index
    %c0_49 = arith.constant 0 : index
    %373 = vector.load %arg4[%c1, %c0_48, %c0_49] : memref<3x16x8xbf16, #tpu.memory_space<vmem>>, vector<1x16x8xbf16>
    %374 = vector.shape_cast %373 : vector<1x16x8xbf16> to vector<16x8xbf16>
    %cst_50 = arith.constant dense<0.000000e+00> : vector<28x8xf32>
    %375 = tpu.matmul %372, %374, %cst_50 {dimension_numbers = #tpu.dot_dimension_numbers<[1], [0], [0], [1], [0, 0, 1, 1], [], []>} : vector<28x16xbf16>, vector<16x8xbf16>, vector<28x8xf32> -> vector<28x8xf32>
    %376 = arith.addf %371, %375 : vector<28x8xf32>
    %377 = vector.extract_strided_slice %364 {offsets = [4, 0], sizes = [28, 16], strides = [1, 1]} : vector<32x16xbf16> to vector<28x16xbf16>
    %c2 = arith.constant 2 : index
    %c0_51 = arith.constant 0 : index
    %c0_52 = arith.constant 0 : index
    %378 = vector.load %arg4[%c2, %c0_51, %c0_52] : memref<3x16x8xbf16, #tpu.memory_space<vmem>>, vector<1x16x8xbf16>
    %379 = vector.shape_cast %378 : vector<1x16x8xbf16> to vector<16x8xbf16>
    %cst_53 = arith.constant dense<0.000000e+00> : vector<28x8xf32>
    %380 = tpu.matmul %377, %379, %cst_53 {dimension_numbers = #tpu.dot_dimension_numbers<[1], [0], [0], [1], [0, 0, 1, 1], [], []>} : vector<28x16xbf16>, vector<16x8xbf16>, vector<28x8xf32> -> vector<28x8xf32>
    %381 = arith.addf %376, %380 : vector<28x8xf32>
    %382 = vector.broadcast %365 : vector<1x8xf32> to vector<28x8xf32>
    %383 = arith.addf %381, %382 : vector<28x8xf32>
    %cst_54 = arith.constant 0.000000e+00 : f32
    %384 = vector.broadcast %cst_54 : f32 to vector<28x8xf32>
    %385 = arith.maximumf %383, %384 : vector<28x8xf32>
    %386 = vector.extract_strided_slice %385 {offsets = [0, 0], sizes = [2, 8], strides = [1, 1]} : vector<28x8xf32> to vector<2x8xf32>
    %387 = vector.extract_strided_slice %385 {offsets = [2, 0], sizes = [2, 8], strides = [1, 1]} : vector<28x8xf32> to vector<2x8xf32>
    %388 = vector.extract_strided_slice %385 {offsets = [4, 0], sizes = [2, 8], strides = [1, 1]} : vector<28x8xf32> to vector<2x8xf32>
    %389 = vector.extract_strided_slice %385 {offsets = [6, 0], sizes = [2, 8], strides = [1, 1]} : vector<28x8xf32> to vector<2x8xf32>
    %390 = vector.extract_strided_slice %385 {offsets = [8, 0], sizes = [2, 8], strides = [1, 1]} : vector<28x8xf32> to vector<2x8xf32>
    %391 = vector.extract_strided_slice %385 {offsets = [10, 0], sizes = [2, 8], strides = [1, 1]} : vector<28x8xf32> to vector<2x8xf32>
    %392 = vector.extract_strided_slice %385 {offsets = [12, 0], sizes = [2, 8], strides = [1, 1]} : vector<28x8xf32> to vector<2x8xf32>
    %393 = vector.extract_strided_slice %385 {offsets = [14, 0], sizes = [2, 8], strides = [1, 1]} : vector<28x8xf32> to vector<2x8xf32>
    %394 = vector.extract_strided_slice %385 {offsets = [16, 0], sizes = [2, 8], strides = [1, 1]} : vector<28x8xf32> to vector<2x8xf32>
    %395 = vector.extract_strided_slice %385 {offsets = [18, 0], sizes = [2, 8], strides = [1, 1]} : vector<28x8xf32> to vector<2x8xf32>
    %396 = vector.extract_strided_slice %385 {offsets = [20, 0], sizes = [2, 8], strides = [1, 1]} : vector<28x8xf32> to vector<2x8xf32>
    %397 = vector.extract_strided_slice %385 {offsets = [22, 0], sizes = [2, 8], strides = [1, 1]} : vector<28x8xf32> to vector<2x8xf32>
    %398 = vector.extract_strided_slice %385 {offsets = [24, 0], sizes = [2, 8], strides = [1, 1]} : vector<28x8xf32> to vector<2x8xf32>
    %399 = vector.extract_strided_slice %385 {offsets = [26, 0], sizes = [2, 8], strides = [1, 1]} : vector<28x8xf32> to vector<2x8xf32>
    %c0_55 = arith.constant 0 : index
    %c0_56 = arith.constant 0 : index
    %400 = vector.load %arg7[%c0_55, %c0_56] : memref<1x8xf32, #tpu.memory_space<vmem>>, vector<1x8xf32>
    %cst_57 = arith.constant 0.000000e+00 : f32
    %401 = vector.broadcast %cst_57 : f32 to vector<24x8xf32>
    %402 = vector.extract_strided_slice %364 {offsets = [0, 0], sizes = [24, 16], strides = [1, 1]} : vector<32x16xbf16> to vector<24x16xbf16>
    %c0_58 = arith.constant 0 : index
    %c0_59 = arith.constant 0 : index
    %c0_60 = arith.constant 0 : index
    %403 = vector.load %arg6[%c0_58, %c0_59, %c0_60] : memref<5x16x8xbf16, #tpu.memory_space<vmem>>, vector<1x16x8xbf16>
    %404 = vector.shape_cast %403 : vector<1x16x8xbf16> to vector<16x8xbf16>
    %cst_61 = arith.constant dense<0.000000e+00> : vector<24x8xf32>
    %405 = tpu.matmul %402, %404, %cst_61 {dimension_numbers = #tpu.dot_dimension_numbers<[1], [0], [0], [1], [0, 0, 1, 1], [], []>} : vector<24x16xbf16>, vector<16x8xbf16>, vector<24x8xf32> -> vector<24x8xf32>
    %406 = arith.addf %401, %405 : vector<24x8xf32>
    %407 = vector.extract_strided_slice %364 {offsets = [2, 0], sizes = [24, 16], strides = [1, 1]} : vector<32x16xbf16> to vector<24x16xbf16>
    %c1_62 = arith.constant 1 : index
    %c0_63 = arith.constant 0 : index
    %c0_64 = arith.constant 0 : index
    %408 = vector.load %arg6[%c1_62, %c0_63, %c0_64] : memref<5x16x8xbf16, #tpu.memory_space<vmem>>, vector<1x16x8xbf16>
    %409 = vector.shape_cast %408 : vector<1x16x8xbf16> to vector<16x8xbf16>
    %cst_65 = arith.constant dense<0.000000e+00> : vector<24x8xf32>
    %410 = tpu.matmul %407, %409, %cst_65 {dimension_numbers = #tpu.dot_dimension_numbers<[1], [0], [0], [1], [0, 0, 1, 1], [], []>} : vector<24x16xbf16>, vector<16x8xbf16>, vector<24x8xf32> -> vector<24x8xf32>
    %411 = arith.addf %406, %410 : vector<24x8xf32>
    %412 = vector.extract_strided_slice %364 {offsets = [4, 0], sizes = [24, 16], strides = [1, 1]} : vector<32x16xbf16> to vector<24x16xbf16>
    %c2_66 = arith.constant 2 : index
    %c0_67 = arith.constant 0 : index
    %c0_68 = arith.constant 0 : index
    %413 = vector.load %arg6[%c2_66, %c0_67, %c0_68] : memref<5x16x8xbf16, #tpu.memory_space<vmem>>, vector<1x16x8xbf16>
    %414 = vector.shape_cast %413 : vector<1x16x8xbf16> to vector<16x8xbf16>
    %cst_69 = arith.constant dense<0.000000e+00> : vector<24x8xf32>
    %415 = tpu.matmul %412, %414, %cst_69 {dimension_numbers = #tpu.dot_dimension_numbers<[1], [0], [0], [1], [0, 0, 1, 1], [], []>} : vector<24x16xbf16>, vector<16x8xbf16>, vector<24x8xf32> -> vector<24x8xf32>
    %416 = arith.addf %411, %415 : vector<24x8xf32>
    %417 = vector.extract_strided_slice %364 {offsets = [6, 0], sizes = [24, 16], strides = [1, 1]} : vector<32x16xbf16> to vector<24x16xbf16>
    %c3 = arith.constant 3 : index
    %c0_70 = arith.constant 0 : index
    %c0_71 = arith.constant 0 : index
    %418 = vector.load %arg6[%c3, %c0_70, %c0_71] : memref<5x16x8xbf16, #tpu.memory_space<vmem>>, vector<1x16x8xbf16>
    %419 = vector.shape_cast %418 : vector<1x16x8xbf16> to vector<16x8xbf16>
    %cst_72 = arith.constant dense<0.000000e+00> : vector<24x8xf32>
    %420 = tpu.matmul %417, %419, %cst_72 {dimension_numbers = #tpu.dot_dimension_numbers<[1], [0], [0], [1], [0, 0, 1, 1], [], []>} : vector<24x16xbf16>, vector<16x8xbf16>, vector<24x8xf32> -> vector<24x8xf32>
    %421 = arith.addf %416, %420 : vector<24x8xf32>
    %422 = vector.extract_strided_slice %364 {offsets = [8, 0], sizes = [24, 16], strides = [1, 1]} : vector<32x16xbf16> to vector<24x16xbf16>
    %c4 = arith.constant 4 : index
    %c0_73 = arith.constant 0 : index
    %c0_74 = arith.constant 0 : index
    %423 = vector.load %arg6[%c4, %c0_73, %c0_74] : memref<5x16x8xbf16, #tpu.memory_space<vmem>>, vector<1x16x8xbf16>
    %424 = vector.shape_cast %423 : vector<1x16x8xbf16> to vector<16x8xbf16>
    %cst_75 = arith.constant dense<0.000000e+00> : vector<24x8xf32>
    %425 = tpu.matmul %422, %424, %cst_75 {dimension_numbers = #tpu.dot_dimension_numbers<[1], [0], [0], [1], [0, 0, 1, 1], [], []>} : vector<24x16xbf16>, vector<16x8xbf16>, vector<24x8xf32> -> vector<24x8xf32>
    %426 = arith.addf %421, %425 : vector<24x8xf32>
    %427 = vector.broadcast %400 : vector<1x8xf32> to vector<24x8xf32>
    %428 = arith.addf %426, %427 : vector<24x8xf32>
    %cst_76 = arith.constant 0.000000e+00 : f32
    %429 = vector.broadcast %cst_76 : f32 to vector<24x8xf32>
    %430 = arith.maximumf %428, %429 : vector<24x8xf32>
    %431 = vector.extract_strided_slice %430 {offsets = [0, 0], sizes = [2, 8], strides = [1, 1]} : vector<24x8xf32> to vector<2x8xf32>
    %432 = vector.extract_strided_slice %430 {offsets = [2, 0], sizes = [2, 8], strides = [1, 1]} : vector<24x8xf32> to vector<2x8xf32>
    %433 = vector.extract_strided_slice %430 {offsets = [4, 0], sizes = [2, 8], strides = [1, 1]} : vector<24x8xf32> to vector<2x8xf32>
    %434 = vector.extract_strided_slice %430 {offsets = [6, 0], sizes = [2, 8], strides = [1, 1]} : vector<24x8xf32> to vector<2x8xf32>
    %435 = vector.extract_strided_slice %430 {offsets = [8, 0], sizes = [2, 8], strides = [1, 1]} : vector<24x8xf32> to vector<2x8xf32>
    %436 = vector.extract_strided_slice %430 {offsets = [10, 0], sizes = [2, 8], strides = [1, 1]} : vector<24x8xf32> to vector<2x8xf32>
    %437 = vector.extract_strided_slice %430 {offsets = [12, 0], sizes = [2, 8], strides = [1, 1]} : vector<24x8xf32> to vector<2x8xf32>
    %438 = vector.extract_strided_slice %430 {offsets = [14, 0], sizes = [2, 8], strides = [1, 1]} : vector<24x8xf32> to vector<2x8xf32>
    %439 = vector.extract_strided_slice %430 {offsets = [16, 0], sizes = [2, 8], strides = [1, 1]} : vector<24x8xf32> to vector<2x8xf32>
    %440 = vector.extract_strided_slice %430 {offsets = [18, 0], sizes = [2, 8], strides = [1, 1]} : vector<24x8xf32> to vector<2x8xf32>
    %441 = vector.extract_strided_slice %430 {offsets = [20, 0], sizes = [2, 8], strides = [1, 1]} : vector<24x8xf32> to vector<2x8xf32>
    %442 = vector.extract_strided_slice %430 {offsets = [22, 0], sizes = [2, 8], strides = [1, 1]} : vector<24x8xf32> to vector<2x8xf32>
    %443 = tpu.concatenate %386, %387, %388, %389, %390, %391, %392, %393, %394, %395, %396, %397, %398, %399, %431, %432 in 1 : vector<2x8xf32>, vector<2x8xf32>, vector<2x8xf32>, vector<2x8xf32>, vector<2x8xf32>, vector<2x8xf32>, vector<2x8xf32>, vector<2x8xf32>, vector<2x8xf32>, vector<2x8xf32>, vector<2x8xf32>, vector<2x8xf32>, vector<2x8xf32>, vector<2x8xf32>, vector<2x8xf32>, vector<2x8xf32> -> vector<2x128xf32>
    %444 = tpu.concatenate %433, %434, %435, %436, %437, %438, %439, %440, %441, %442 in 1 : vector<2x8xf32>, vector<2x8xf32>, vector<2x8xf32>, vector<2x8xf32>, vector<2x8xf32>, vector<2x8xf32>, vector<2x8xf32>, vector<2x8xf32>, vector<2x8xf32>, vector<2x8xf32> -> vector<2x80xf32>
    %445 = tpu.concatenate %443, %444 in 1 : vector<2x128xf32>, vector<2x80xf32> -> vector<2x208xf32>
    %446 = arith.truncf %445 : vector<2x208xf32> to vector<2x208xbf16>
    %c0_77 = arith.constant 0 : index
    %c0_78 = arith.constant 0 : index
    %447 = vector.load %arg8[%c0_77, %c0_78] : memref<208x32xbf16, #tpu.memory_space<vmem>>, vector<208x32xbf16>
    %cst_79 = arith.constant dense<0.000000e+00> : vector<2x32xf32>
    %448 = tpu.matmul %446, %447, %cst_79 {dimension_numbers = #tpu.dot_dimension_numbers<[1], [0], [0], [1], [0, 0, 1, 1], [], []>} : vector<2x208xbf16>, vector<208x32xbf16>, vector<2x32xf32> -> vector<2x32xf32>
    %c0_80 = arith.constant 0 : index
    %c0_81 = arith.constant 0 : index
    %449 = vector.load %arg9[%c0_80, %c0_81] : memref<1x32xf32, #tpu.memory_space<vmem>>, vector<1x32xf32>
    %450 = vector.broadcast %449 : vector<1x32xf32> to vector<2x32xf32>
    %451 = arith.addf %448, %450 : vector<2x32xf32>
    %452 = arith.truncf %451 : vector<2x32xf32> to vector<2x32xbf16>
    %c0_82 = arith.constant 0 : index
    %c0_83 = arith.constant 0 : index
    %453 = vector.load %arg10[%c0_82, %c0_83] : memref<32x4xbf16, #tpu.memory_space<vmem>>, vector<32x4xbf16>
    %cst_84 = arith.constant dense<0.000000e+00> : vector<2x4xf32>
    %454 = tpu.matmul %452, %453, %cst_84 {dimension_numbers = #tpu.dot_dimension_numbers<[1], [0], [0], [1], [0, 0, 1, 1], [], []>} : vector<2x32xbf16>, vector<32x4xbf16>, vector<2x4xf32> -> vector<2x4xf32>
    %c0_85 = arith.constant 0 : index
    %c0_86 = arith.constant 0 : index
    %455 = vector.load %arg11[%c0_85, %c0_86] : memref<1x4xf32, #tpu.memory_space<vmem>>, vector<1x4xf32>
    %456 = vector.broadcast %455 : vector<1x4xf32> to vector<2x4xf32>
    %457 = arith.addf %454, %456 : vector<2x4xf32>
    %c0_87 = arith.constant 0 : index
    %c0_88 = arith.constant 0 : index
    %458 = vector.load %arg12[%c0_87, %c0_88] : memref<2x4xf32, #tpu.memory_space<vmem>>, vector<2x4xf32>
    tpu.vector_store %arg12[%c0_87, %c0_88], %457 {strides = array<i32>} : memref<2x4xf32, #tpu.memory_space<vmem>>, vector<2x4xf32>,
    return
  }
}

</mosaic_0001>

<llo_original>
// kernel: _lambda_.1
$region0: #{_lambda_.1}
  #allocation0 [shape = 'u32[]', space=smem, size = 0x4, offset = 0x4, fixed_abs, tag = 'smem constant byte address 0x4 - core index']
  #allocation1 [shape = 'u32[144,128]{1,0:T(1,128)}', space=vmem, size = 0x12000, scoped, tag = 'internal scratch']
  %s0 = inlined_call_operand.vmem [shape: bf16[32,16], index: 0, kind: input, shape index: {}]
  %s1 = inlined_call_operand.vmem [shape: bf16[16,64], index: 1, kind: input, shape index: {}]
  %s2 = inlined_call_operand.vmem [shape: f32[1,64], index: 2, kind: input, shape index: {}]
  %s3 = inlined_call_operand.vmem [shape: bf16[16,64], index: 3, kind: input, shape index: {}]
  %s4 = inlined_call_operand.vmem [shape: bf16[3,16,8], index: 4, kind: input, shape index: {}]
  %s5 = inlined_call_operand.vmem [shape: f32[1,8], index: 5, kind: input, shape index: {}]
  %s6 = inlined_call_operand.vmem [shape: bf16[5,16,8], index: 6, kind: input, shape index: {}]
  %s7 = inlined_call_operand.vmem [shape: f32[1,8], index: 7, kind: input, shape index: {}]
  %s8 = inlined_call_operand.vmem [shape: bf16[208,32], index: 8, kind: input, shape index: {}]
  %s9 = inlined_call_operand.vmem [shape: f32[1,32], index: 9, kind: input, shape index: {}]
  %s10 = inlined_call_operand.vmem [shape: bf16[32,4], index: 10, kind: input, shape index: {}]
  %s11 = inlined_call_operand.vmem [shape: f32[1,4], index: 11, kind: input, shape index: {}]
  %s12 = inlined_call_operand.hbm [shape: f32[2,4], index: 12, kind: output, shape index: {}]
  %s13 = sld [smem:[#allocation0]]
  $region58: #{_lambda_.1} parent=0
    _
  %s15 = ssub.s32 1, %s13
  %s16 = scalar_select 0, %s15, %s13
  $region1: #{_lambda_.1} parent=0
    #allocation2 [shape = 'u8[1024]{0}', space=vmem, size = 0x400, scoped, tag = 'output window, operand 0, single buffered']
    #allocation3 [shape = 's32[1]{0}', space=sflag, size = 0x4, scoped, tag = 'scoped memory for _lambda_.1']
    %17 = vsyncpa [#allocation3], 0
    // Predicated region
    $region2: #{_lambda_.1} parent=1 // pred_check
      _
    $region3: #{_lambda_.1} parent=1 // pred_check_branch
      %19 = sbr.rel (0) target = $region5
    $region4: #{_lambda_.1} parent=1 // pred_region
      _
    $region5: #{_lambda_.1} parent=1 // pred_fallthru
      _
    // Predicated region
    $region6: #{_lambda_.1} parent=1 // pred_check
      _
    $region7: #{_lambda_.1} parent=1 // pred_check_branch
      %21 = sbr.rel (0) target = $region9
    $region8: #{_lambda_.1} parent=1 // pred_region
      _
    $region9: #{_lambda_.1} parent=1 // pred_fallthru
      _
    // Predicated region
    $region10: #{_lambda_.1} parent=1 // pred_check
      _
    $region11: #{_lambda_.1} parent=1 // pred_check_branch
      %23 = sbr.rel (0) target = $region13
    $region12: #{_lambda_.1} parent=1 // pred_region
      _
    $region13: #{_lambda_.1} parent=1 // pred_fallthru
      _
    // Predicated region
    $region14: #{_lambda_.1} parent=1 // pred_check
      _
    $region15: #{_lambda_.1} parent=1 // pred_check_branch
      %25 = sbr.rel (0) target = $region17
    $region16: #{_lambda_.1} parent=1 // pred_region
      _
    $region17: #{_lambda_.1} parent=1 // pred_fallthru
      _
    // Predicated region
    $region18: #{_lambda_.1} parent=1 // pred_check
      _
    $region19: #{_lambda_.1} parent=1 // pred_check_branch
      %27 = sbr.rel (0) target = $region21
    $region20: #{_lambda_.1} parent=1 // pred_region
      _
    $region21: #{_lambda_.1} parent=1 // pred_fallthru
      _
    // Predicated region
    $region22: #{_lambda_.1} parent=1 // pred_check
      _
    $region23: #{_lambda_.1} parent=1 // pred_check_branch
      %29 = sbr.rel (0) target = $region25
    $region24: #{_lambda_.1} parent=1 // pred_region
      _
    $region25: #{_lambda_.1} parent=1 // pred_fallthru
      _
    // Predicated region
    $region26: #{_lambda_.1} parent=1 // pred_check
      _
    $region27: #{_lambda_.1} parent=1 // pred_check_branch
      %31 = sbr.rel (0) target = $region29
    $region28: #{_lambda_.1} parent=1 // pred_region
      _
    $region29: #{_lambda_.1} parent=1 // pred_fallthru
      _
    // Predicated region
    $region30: #{_lambda_.1} parent=1 // pred_check
      _
    $region31: #{_lambda_.1} parent=1 // pred_check_branch
      %33 = sbr.rel (0) target = $region33
    $region32: #{_lambda_.1} parent=1 // pred_region
      _
    $region33: #{_lambda_.1} parent=1 // pred_fallthru
      _
    // Predicated region
    $region34: #{_lambda_.1} parent=1 // pred_check
      _
    $region35: #{_lambda_.1} parent=1 // pred_check_branch
      %35 = sbr.rel (0) target = $region37
    $region36: #{_lambda_.1} parent=1 // pred_region
      _
    $region37: #{_lambda_.1} parent=1 // pred_fallthru
      _
    // Predicated region
    $region38: #{_lambda_.1} parent=1 // pred_check
      _
    $region39: #{_lambda_.1} parent=1 // pred_check_branch
      %37 = sbr.rel (0) target = $region41
    $region40: #{_lambda_.1} parent=1 // pred_region
      _
    $region41: #{_lambda_.1} parent=1 // pred_fallthru
      _
    // Predicated region
    $region42: #{_lambda_.1} parent=1 // pred_check
      _
    $region43: #{_lambda_.1} parent=1 // pred_check_branch
      %39 = sbr.rel (0) target = $region45
    $region44: #{_lambda_.1} parent=1 // pred_region
      _
    $region45: #{_lambda_.1} parent=1 // pred_fallthru
      _
    // Predicated region
    $region46: #{_lambda_.1} parent=1 // pred_check
      _
    $region47: #{_lambda_.1} parent=1 // pred_check_branch
      %41 = sbr.rel (0) target = $region49
    $region48: #{_lambda_.1} parent=1 // pred_region
      _
    $region49: #{_lambda_.1} parent=1 // pred_fallthru
      _
    %v43 = vld [vmem:[%s0] sm:$0xf]
    %v44 = vld [vmem:[%s0 + $0x4] sm:$0xf]
    %v45 = vld [vmem:[%s0 + $0x8] sm:$0xf]
    %v46 = vld [vmem:[%s0 + $0xc] sm:$0xf]
    %v47 = vld [vmem:[%s1] sm:$0xf]
    %v48 = vld [vmem:[%s1 + $0x4] sm:$0xf]
    %v49 = vld [vmem:[%s2] sm:$0x1]
    %v51 = vlaneseq
    %v52 = vshrl.u32 %v51, 7
    %v53 = vsub.s32 0, %v52
    %v54 = vrot.slane %v49, %v53
    %v60 = vunpack.c.l.b16 %v43
    %v61 = vunpack.c.l.b16 %v44
    %v62 = vunpack.c.l.b16 %v45
    %v63 = vunpack.c.l.b16 %v46
    %v64 = vpack.c.b16 %v61, %v60
    %v65 = vpack.c.b16 %v63, %v62
    %v68 = vunpack.c.l.b16 %v47
    %v69 = vunpack.c.l.b16 %v48
    %v70 = vpack.c.b16 %v69, %v68
    %vm72 = vcmask 130048
    %v74 = vsel %vm72, %v64, 0
    %v77 = vsel %vm72, %v65, 0
    %79 = vmatprep.subr.bf16.mxu0 0
    %80 = vmatpush1.bf16.msra.mxu0 %v70
    %81 = vmatprep.subr.bf16.mxu0 0
    %82 = vmatpush1.bf16.msra.mxu0 0
    %83 = vmatprep.subr.bf16.mxu0 0
    %84 = vmatpush1.bf16.msra.mxu0 0
    %85 = vmatprep.subr.bf16.mxu0 0
    %86 = vmatpush1.bf16.msra.mxu0 0
    %87 = vmatprep.subr.bf16.mxu0 0
    %88 = vmatpush1.bf16.msra.mxu0 0
    %89 = vmatprep.subr.bf16.mxu0 0
    %90 = vmatpush1.bf16.msra.mxu0 0
    %91 = vmatprep.subr.bf16.mxu0 0
    %92 = vmatpush1.bf16.msra.mxu0 0
    %93 = vmatprep.subr.bf16.mxu0 0
    %94 = vmatpush1.bf16.msra.mxu0 0
    %95 = vmatprep.subr.bf16.mxu0 0
    %96 = vmatpush1.bf16.msra.mxu0 0
    %97 = vmatprep.subr.bf16.mxu0 0
    %98 = vmatpush1.bf16.msra.mxu0 0
    %99 = vmatprep.subr.bf16.mxu0 0
    %100 = vmatpush1.bf16.msra.mxu0 0
    %101 = vmatprep.subr.bf16.mxu0 0
    %102 = vmatpush1.bf16.msra.mxu0 0
    %103 = vmatprep.subr.bf16.mxu0 0
    %104 = vmatpush1.bf16.msra.mxu0 0
    %105 = vmatprep.subr.bf16.mxu0 0
    %106 = vmatpush1.bf16.msra.mxu0 0
    %107 = vmatprep.subr.bf16.mxu0 0
    %108 = vmatpush1.bf16.msra.mxu0 0
    %109 = vmatprep.subr.bf16.mxu0 0
    %110 = vmatpush1.bf16.msra.mxu0 0
    %111 = vmatprep.mubr.bf16.mxu0 0
    %112 = vmatmul.mubr.bf16.gmra.mrb[0].mxu0 %v74
    %v113 = vpop.f32.mrb[0].mxu0
    %v114 = vadd.f32 %v54, %v113
    %v115 = vpop.f32.mrb[0].mxu0
    %v116 = vpop.f32.mrb[0].mxu0
    %v117 = vadd.f32 %v54, %v116
    %v118 = vpop.f32.mrb[0].mxu0
    %119 = vmatprep.mubr.bf16.mxu0 0
    %120 = vmatmul.mubr.bf16.gmra.mrb[0].mxu0 %v77
    %v121 = vpop.f32.mrb[0].mxu0
    %v122 = vadd.f32 %v54, %v121
    %v123 = vpop.f32.mrb[0].mxu0
    %v124 = vpop.f32.mrb[0].mxu0
    %v125 = vadd.f32 %v54, %v124
    %v126 = vpop.f32.mrb[0].mxu0
    %127 = vdwg.mxu0
    %v128 = vld [vmem:[%s3] sm:$0xf]
    %v129 = vld [vmem:[%s3 + $0x4] sm:$0xf]
    %v132 = vunpack.c.l.b16 %v128
    %v133 = vunpack.c.l.b16 %v129
    %v134 = vpack.c.b16 %v133, %v132
    %v137 = vsel %vm72, 0, 0
    %139 = vmatprep.subr.bf16.mxu0 0
    %140 = vmatpush1.bf16.msra.mxu0 %v134
    %141 = vmatprep.subr.bf16.mxu0 0
    %142 = vmatpush1.bf16.msra.mxu0 0
    %143 = vmatprep.subr.bf16.mxu0 0
    %144 = vmatpush1.bf16.msra.mxu0 0
    %145 = vmatprep.subr.bf16.mxu0 0
    %146 = vmatpush1.bf16.msra.mxu0 0
    %147 = vmatprep.subr.bf16.mxu0 0
    %148 = vmatpush1.bf16.msra.mxu0 0
    %149 = vmatprep.subr.bf16.mxu0 0
    %150 = vmatpush1.bf16.msra.mxu0 0
    %151 = vmatprep.subr.bf16.mxu0 0
    %152 = vmatpush1.bf16.msra.mxu0 0
    %153 = vmatprep.subr.bf16.mxu0 0
    %154 = vmatpush1.bf16.msra.mxu0 0
    %155 = vmatprep.subr.bf16.mxu0 0
    %156 = vmatpush1.bf16.msra.mxu0 0
    %157 = vmatprep.subr.bf16.mxu0 0
    %158 = vmatpush1.bf16.msra.mxu0 0
    %159 = vmatprep.subr.bf16.mxu0 0
    %160 = vmatpush1.bf16.msra.mxu0 0
    %161 = vmatprep.subr.bf16.mxu0 0
    %162 = vmatpush1.bf16.msra.mxu0 0
    %163 = vmatprep.subr.bf16.mxu0 0
    %164 = vmatpush1.bf16.msra.mxu0 0
    %165 = vmatprep.subr.bf16.mxu0 0
    %166 = vmatpush1.bf16.msra.mxu0 0
    %167 = vmatprep.subr.bf16.mxu0 0
    %168 = vmatpush1.bf16.msra.mxu0 0
    %169 = vmatprep.subr.bf16.mxu0 0
    %170 = vmatpush1.bf16.msra.mxu0 0
    %171 = vmatprep.mubr.bf16.mxu0 0
    %172 = vmatmul.mubr.bf16.gmra.mrb[0].mxu0 %v137
    %v173 = vpop.f32.mrb[0].mxu0
    %v174 = vadd.f32 0.0, %v173
    %v175 = vpop.f32.mrb[0].mxu0
    %v176 = vpop.f32.mrb[0].mxu0
    %v177 = vpop.f32.mrb[0].mxu0
    %178 = vdwg.mxu0
    %v179 = vadd.f32 %v114, %v174
    %v180 = vxor.u32 %v179, 2147483648
    %v181 = vmul.f32 %v180, 1.442695
    %v182 = vpow.pop %v181
    %v183 = vadd.f32 %v182, 1.0
    %v184 = vrcp.pop %v183
    %v185 = vmul.f32 1.0, %v184
    %v186 = vtanh.pop %v179
    %v187 = vmul.f32 %v185, 0.0
    %189 = vrot.lane.b32.xlu0 %v186, 80
    %v190 = vpop.permute.xlu0 %189
    %v192 = vmul.f32 %v185, %v190
    %194 = vrot.lane.b32.xlu0 %v192, 16
    %v195 = vpop.permute.xlu0 %194
    %v197 = vadd.f32 %v187, %v195
    %v198 = vtanh.pop %v197
    %200 = vrot.lane.b32.xlu0 %v198, 16
    %v201 = vpop.permute.xlu0 %200
    %v203 = vmul.f32 %v185, %v201
    %v204 = vpack.c.bf16 %v203, %v203
    %206 = vrot.lane.b32.xlu0 %v204, 96
    %v207 = vpop.permute.xlu0 %206
    %v209 = vsel %vm72, %v207, 0
    %211 = vmatprep.subr.bf16.mxu0 0
    %212 = vmatpush1.bf16.msra.mxu0 %v134
    %213 = vmatprep.subr.bf16.mxu0 0
    %214 = vmatpush1.bf16.msra.mxu0 0
    %215 = vmatprep.subr.bf16.mxu0 0
    %216 = vmatpush1.bf16.msra.mxu0 0
    %217 = vmatprep.subr.bf16.mxu0 0
    %218 = vmatpush1.bf16.msra.mxu0 0
    %219 = vmatprep.subr.bf16.mxu0 0
    %220 = vmatpush1.bf16.msra.mxu0 0
    %221 = vmatprep.subr.bf16.mxu0 0
    %222 = vmatpush1.bf16.msra.mxu0 0
    %223 = vmatprep.subr.bf16.mxu0 0
    %224 = vmatpush1.bf16.msra.mxu0 0
    %225 = vmatprep.subr.bf16.mxu0 0
    %226 = vmatpush1.bf16.msra.mxu0 0
    %227 = vmatprep.subr.bf16.mxu0 0
    %228 = vmatpush1.bf16.msra.mxu0 0
    %229 = vmatprep.subr.bf16.mxu0 0
    %230 = vmatpush1.bf16.msra.mxu0 0
    %231 = vmatprep.subr.bf16.mxu0 0
    %232 = vmatpush1.bf16.msra.mxu0 0
    %233 = vmatprep.subr.bf16.mxu0 0
    %234 = vmatpush1.bf16.msra.mxu0 0
    %235 = vmatprep.subr.bf16.mxu0 0
    %236 = vmatpush1.bf16.msra.mxu0 0
    %237 = vmatprep.subr.bf16.mxu0 0
    %238 = vmatpush1.bf16.msra.mxu0 0
    %239 = vmatprep.subr.bf16.mxu0 0
    %240 = vmatpush1.bf16.msra.mxu0 0
    %241 = vmatprep.subr.bf16.mxu0 0
    %242 = vmatpush1.bf16.msra.mxu0 0
    %243 = vmatprep.mubr.bf16.mxu0 0
    %244 = vmatmul.mubr.bf16.gmra.mrb[0].mxu0 %v209
    %v245 = vpop.f32.mrb[0].mxu0
    %v246 = vadd.f32 0.0, %v245
    %v247 = vpop.f32.mrb[0].mxu0
    %v248 = vpop.f32.mrb[0].mxu0
    %v249 = vpop.f32.mrb[0].mxu0
    %250 = vdwg.mxu0
    %v252 = vrot.slane %v246, 6
    %v254 = vadd.f32 %v114, %v252
    %v255 = vxor.u32 %v254, 2147483648
    %v256 = vmul.f32 %v255, 1.442695
    %v257 = vpow.pop %v256
    %v258 = vadd.f32 %v257, 1.0
    %v259 = vrcp.pop %v258
    %v260 = vmul.f32 1.0, %v259
    %v261 = vtanh.pop %v254
    %v263 = vrot.slane %v197, 6
    %v265 = vmul.f32 %v260, %v263
    %267 = vrot.lane.b32.xlu0 %v261, 80
    %v268 = vpop.permute.xlu0 %267
    %v270 = vmul.f32 %v260, %v268
    %272 = vrot.lane.b32.xlu0 %v270, 16
    %v273 = vpop.permute.xlu0 %272
    %v275 = vadd.f32 %v265, %v273
    %v276 = vtanh.pop %v275
    %278 = vrot.lane.b32.xlu0 %v276, 16
    %v279 = vpop.permute.xlu0 %278
    %v281 = vmul.f32 %v260, %v279
    %v282 = vpack.c.bf16 %v281, %v281
    %v284 = vrot.slane %v282, 1
    %285 = vrot.lane.b32.xlu0 %v284, 96
    %v286 = vpop.permute.xlu0 %285
    %v288 = vsel %vm72, %v286, 0
    %290 = vmatprep.subr.bf16.mxu0 0
    %291 = vmatpush1.bf16.msra.mxu0 %v134
    %292 = vmatprep.subr.bf16.mxu0 0
    %293 = vmatpush1.bf16.msra.mxu0 0
    %294 = vmatprep.subr.bf16.mxu0 0
    %295 = vmatpush1.bf16.msra.mxu0 0
    %296 = vmatprep.subr.bf16.mxu0 0
    %297 = vmatpush1.bf16.msra.mxu0 0
    %298 = vmatprep.subr.bf16.mxu0 0
    %299 = vmatpush1.bf16.msra.mxu0 0
    %300 = vmatprep.subr.bf16.mxu0 0
    %301 = vmatpush1.bf16.msra.mxu0 0
    %302 = vmatprep.subr.bf16.mxu0 0
    %303 = vmatpush1.bf16.msra.mxu0 0
    %304 = vmatprep.subr.bf16.mxu0 0
    %305 = vmatpush1.bf16.msra.mxu0 0
    %306 = vmatprep.subr.bf16.mxu0 0
    %307 = vmatpush1.bf16.msra.mxu0 0
    %308 = vmatprep.subr.bf16.mxu0 0
    %309 = vmatpush1.bf16.msra.mxu0 0
    %310 = vmatprep.subr.bf16.mxu0 0
    %311 = vmatpush1.bf16.msra.mxu0 0
    %312 = vmatprep.subr.bf16.mxu0 0
    %313 = vmatpush1.bf16.msra.mxu0 0
    %314 = vmatprep.subr.bf16.mxu0 0
    %315 = vmatpush1.bf16.msra.mxu0 0
    %316 = vmatprep.subr.bf16.mxu0 0
    %317 = vmatpush1.bf16.msra.mxu0 0
    %318 = vmatprep.subr.bf16.mxu0 0
    %319 = vmatpush1.bf16.msra.mxu0 0
    %320 = vmatprep.subr.bf16.mxu0 0
    %321 = vmatpush1.bf16.msra.mxu0 0
    %322 = vmatprep.mubr.bf16.mxu0 0
    %323 = vmatmul.mubr.bf16.gmra.mrb[0].mxu0 %v288
    %v324 = vpop.f32.mrb[0].mxu0
    %v325 = vadd.f32 0.0, %v324
    %v326 = vpop.f32.mrb[0].mxu0
    %v327 = vpop.f32.mrb[0].mxu0
    %v328 = vpop.f32.mrb[0].mxu0
    %329 = vdwg.mxu0
    %v331 = vrot.slane %v325, 4
    %v333 = vadd.f32 %v114, %v331
    %v334 = vxor.u32 %v333, 2147483648
    %v335 = vmul.f32 %v334, 1.442695
    %v336 = vpow.pop %v335
    %v337 = vadd.f32 %v336, 1.0
    %v338 = vrcp.pop %v337
    %v339 = vmul.f32 1.0, %v338
    %v340 = vtanh.pop %v333
    %v342 = vrot.slane %v275, 6
    %v344 = vmul.f32 %v339, %v342
    %346 = vrot.lane.b32.xlu0 %v340, 80
    %v347 = vpop.permute.xlu0 %346
    %v349 = vmul.f32 %v339, %v347
    %351 = vrot.lane.b32.xlu0 %v349, 16
    %v352 = vpop.permute.xlu0 %351
    %v354 = vadd.f32 %v344, %v352
    %v355 = vtanh.pop %v354
    %357 = vrot.lane.b32.xlu0 %v355, 16
    %v358 = vpop.permute.xlu0 %357
    %v360 = vmul.f32 %v339, %v358
    %v361 = vpack.c.bf16 %v360, %v360
    %v363 = vrot.slane %v361, 2
    %364 = vrot.lane.b32.xlu0 %v363, 96
    %v365 = vpop.permute.xlu0 %364
    %v367 = vsel %vm72, %v365, 0
    %369 = vmatprep.subr.bf16.mxu0 0
    %370 = vmatpush1.bf16.msra.mxu0 %v134
    %371 = vmatprep.subr.bf16.mxu0 0
    %372 = vmatpush1.bf16.msra.mxu0 0
    %373 = vmatprep.subr.bf16.mxu0 0
    %374 = vmatpush1.bf16.msra.mxu0 0
    %375 = vmatprep.subr.bf16.mxu0 0
    %376 = vmatpush1.bf16.msra.mxu0 0
    %377 = vmatprep.subr.bf16.mxu0 0
    %378 = vmatpush1.bf16.msra.mxu0 0
    %379 = vmatprep.subr.bf16.mxu0 0
    %380 = vmatpush1.bf16.msra.mxu0 0
    %381 = vmatprep.subr.bf16.mxu0 0
    %382 = vmatpush1.bf16.msra.mxu0 0
    %383 = vmatprep.subr.bf16.mxu0 0
    %384 = vmatpush1.bf16.msra.mxu0 0
    %385 = vmatprep.subr.bf16.mxu0 0
    %386 = vmatpush1.bf16.msra.mxu0 0
    %387 = vmatprep.subr.bf16.mxu0 0
    %388 = vmatpush1.bf16.msra.mxu0 0
    %389 = vmatprep.subr.bf16.mxu0 0
    %390 = vmatpush1.bf16.msra.mxu0 0
    %391 = vmatprep.subr.bf16.mxu0 0
    %392 = vmatpush1.bf16.msra.mxu0 0
    %393 = vmatprep.subr.bf16.mxu0 0
    %394 = vmatpush1.bf16.msra.mxu0 0
    %395 = vmatprep.subr.bf16.mxu0 0
    %396 = vmatpush1.bf16.msra.mxu0 0
    %397 = vmatprep.subr.bf16.mxu0 0
    %398 = vmatpush1.bf16.msra.mxu0 0
    %399 = vmatprep.subr.bf16.mxu0 0
    %400 = vmatpush1.bf16.msra.mxu0 0
    %401 = vmatprep.mubr.bf16.mxu0 0
    %402 = vmatmul.mubr.bf16.gmra.mrb[0].mxu0 %v367
    %v403 = vpop.f32.mrb[0].mxu0
    %v404 = vadd.f32 0.0, %v403
    %v405 = vpop.f32.mrb[0].mxu0
    %v406 = vpop.f32.mrb[0].mxu0
    %v407 = vpop.f32.mrb[0].mxu0
    %408 = vdwg.mxu0
    %v410 = vrot.slane %v404, 2
    %v412 = vadd.f32 %v114, %v410
    %v413 = vxor.u32 %v412, 2147483648
    %v414 = vmul.f32 %v413, 1.442695
    %v415 = vpow.pop %v414
    %v416 = vadd.f32 %v415, 1.0
    %v417 = vrcp.pop %v416
    %v418 = vmul.f32 1.0, %v417
    %v419 = vtanh.pop %v412
    %v421 = vrot.slane %v354, 6
    %v423 = vmul.f32 %v418, %v421
    %425 = vrot.lane.b32.xlu0 %v419, 80
    %v426 = vpop.permute.xlu0 %425
    %v428 = vmul.f32 %v418, %v426
    %430 = vrot.lane.b32.xlu0 %v428, 16
    %v431 = vpop.permute.xlu0 %430
    %v433 = vadd.f32 %v423, %v431
    %v434 = vtanh.pop %v433
    %436 = vrot.lane.b32.xlu0 %v434, 16
    %v437 = vpop.permute.xlu0 %436
    %v439 = vmul.f32 %v418, %v437
    %v440 = vpack.c.bf16 %v439, %v439
    %v442 = vrot.slane %v440, 3
    %443 = vrot.lane.b32.xlu0 %v442, 96
    %v444 = vpop.permute.xlu0 %443
    %v446 = vsel %vm72, %v444, 0
    %448 = vmatprep.subr.bf16.mxu0 0
    %449 = vmatpush1.bf16.msra.mxu0 %v134
    %450 = vmatprep.subr.bf16.mxu0 0
    %451 = vmatpush1.bf16.msra.mxu0 0
    %452 = vmatprep.subr.bf16.mxu0 0
    %453 = vmatpush1.bf16.msra.mxu0 0
    %454 = vmatprep.subr.bf16.mxu0 0
    %455 = vmatpush1.bf16.msra.mxu0 0
    %456 = vmatprep.subr.bf16.mxu0 0
    %457 = vmatpush1.bf16.msra.mxu0 0
    %458 = vmatprep.subr.bf16.mxu0 0
    %459 = vmatpush1.bf16.msra.mxu0 0
    %460 = vmatprep.subr.bf16.mxu0 0
    %461 = vmatpush1.bf16.msra.mxu0 0
    %462 = vmatprep.subr.bf16.mxu0 0
    %463 = vmatpush1.bf16.msra.mxu0 0
    %464 = vmatprep.subr.bf16.mxu0 0
    %465 = vmatpush1.bf16.msra.mxu0 0
    %466 = vmatprep.subr.bf16.mxu0 0
    %467 = vmatpush1.bf16.msra.mxu0 0
    %468 = vmatprep.subr.bf16.mxu0 0
    %469 = vmatpush1.bf16.msra.mxu0 0
    %470 = vmatprep.subr.bf16.mxu0 0
    %471 = vmatpush1.bf16.msra.mxu0 0
    %472 = vmatprep.subr.bf16.mxu0 0
    %473 = vmatpush1.bf16.msra.mxu0 0
    %474 = vmatprep.subr.bf16.mxu0 0
    %475 = vmatpush1.bf16.msra.mxu0 0
    %476 = vmatprep.subr.bf16.mxu0 0
    %477 = vmatpush1.bf16.msra.mxu0 0
    %478 = vmatprep.subr.bf16.mxu0 0
    %479 = vmatpush1.bf16.msra.mxu0 0
    %480 = vmatprep.mubr.bf16.mxu0 0
    %481 = vmatmul.mubr.bf16.gmra.mrb[0].mxu0 %v446
    %v482 = vpop.f32.mrb[0].mxu0
    %v483 = vadd.f32 0.0, %v482
    %v484 = vpop.f32.mrb[0].mxu0
    %v485 = vpop.f32.mrb[0].mxu0
    %v486 = vpop.f32.mrb[0].mxu0
    %487 = vdwg.mxu0
    %v488 = vadd.f32 %v117, %v483
    %v489 = vxor.u32 %v488, 2147483648
    %v490 = vmul.f32 %v489, 1.442695
    %v491 = vpow.pop %v490
    %v492 = vadd.f32 %v491, 1.0
    %v493 = vrcp.pop %v492
    %v494 = vmul.f32 1.0, %v493
    %v495 = vtanh.pop %v488
    %v497 = vrot.slane %v433, 6
    %v499 = vmul.f32 %v494, %v497
    %501 = vrot.lane.b32.xlu0 %v495, 80
    %v502 = vpop.permute.xlu0 %501
    %v504 = vmul.f32 %v494, %v502
    %506 = vrot.lane.b32.xlu0 %v504, 16
    %v507 = vpop.permute.xlu0 %506
    %v509 = vadd.f32 %v499, %v507
    %v510 = vtanh.pop %v509
    %512 = vrot.lane.b32.xlu0 %v510, 16
    %v513 = vpop.permute.xlu0 %512
    %v515 = vmul.f32 %v494, %v513
    %v516 = vpack.c.bf16 %v515, %v515
    %518 = vrot.lane.b32.xlu0 %v516, 96
    %v519 = vpop.permute.xlu0 %518
    %v521 = vsel %vm72, %v519, 0
    %523 = vmatprep.subr.bf16.mxu0 0
    %524 = vmatpush1.bf16.msra.mxu0 %v134
    %525 = vmatprep.subr.bf16.mxu0 0
    %526 = vmatpush1.bf16.msra.mxu0 0
    %527 = vmatprep.subr.bf16.mxu0 0
    %528 = vmatpush1.bf16.msra.mxu0 0
    %529 = vmatprep.subr.bf16.mxu0 0
    %530 = vmatpush1.bf16.msra.mxu0 0
    %531 = vmatprep.subr.bf16.mxu0 0
    %532 = vmatpush1.bf16.msra.mxu0 0
    %533 = vmatprep.subr.bf16.mxu0 0
    %534 = vmatpush1.bf16.msra.mxu0 0
    %535 = vmatprep.subr.bf16.mxu0 0
    %536 = vmatpush1.bf16.msra.mxu0 0
    %537 = vmatprep.subr.bf16.mxu0 0
    %538 = vmatpush1.bf16.msra.mxu0 0
    %539 = vmatprep.subr.bf16.mxu0 0
    %540 = vmatpush1.bf16.msra.mxu0 0
    %541 = vmatprep.subr.bf16.mxu0 0
    %542 = vmatpush1.bf16.msra.mxu0 0
    %543 = vmatprep.subr.bf16.mxu0 0
    %544 = vmatpush1.bf16.msra.mxu0 0
    %545 = vmatprep.subr.bf16.mxu0 0
    %546 = vmatpush1.bf16.msra.mxu0 0
    %547 = vmatprep.subr.bf16.mxu0 0
    %548 = vmatpush1.bf16.msra.mxu0 0
    %549 = vmatprep.subr.bf16.mxu0 0
    %550 = vmatpush1.bf16.msra.mxu0 0
    %551 = vmatprep.subr.bf16.mxu0 0
    %552 = vmatpush1.bf16.msra.mxu0 0
    %553 = vmatprep.subr.bf16.mxu0 0
    %554 = vmatpush1.bf16.msra.mxu0 0
    %555 = vmatprep.mubr.bf16.mxu0 0
    %556 = vmatmul.mubr.bf16.gmra.mrb[0].mxu0 %v521
    %v557 = vpop.f32.mrb[0].mxu0
    %v558 = vadd.f32 0.0, %v557
    %v559 = vpop.f32.mrb[0].mxu0
    %v560 = vpop.f32.mrb[0].mxu0
    %v561 = vpop.f32.mrb[0].mxu0
    %562 = vdwg.mxu0
    %v564 = vrot.slane %v558, 6
    %v566 = vadd.f32 %v117, %v564
    %v567 = vxor.u32 %v566, 2147483648
    %v568 = vmul.f32 %v567, 1.442695
    %v569 = vpow.pop %v568
    %v570 = vadd.f32 %v569, 1.0
    %v571 = vrcp.pop %v570
    %v572 = vmul.f32 1.0, %v571
    %v573 = vtanh.pop %v566
    %v575 = vrot.slane %v509, 6
    %v577 = vmul.f32 %v572, %v575
    %579 = vrot.lane.b32.xlu0 %v573, 80
    %v580 = vpop.permute.xlu0 %579
    %v582 = vmul.f32 %v572, %v580
    %584 = vrot.lane.b32.xlu0 %v582, 16
    %v585 = vpop.permute.xlu0 %584
    %v587 = vadd.f32 %v577, %v585
    %v588 = vtanh.pop %v587
    %590 = vrot.lane.b32.xlu0 %v588, 16
    %v591 = vpop.permute.xlu0 %590
    %v593 = vmul.f32 %v572, %v591
    %v594 = vpack.c.bf16 %v593, %v593
    %v596 = vrot.slane %v594, 1
    %597 = vrot.lane.b32.xlu0 %v596, 96
    %v598 = vpop.permute.xlu0 %597
    %v600 = vsel %vm72, %v598, 0
    %602 = vmatprep.subr.bf16.mxu0 0
    %603 = vmatpush1.bf16.msra.mxu0 %v134
    %604 = vmatprep.subr.bf16.mxu0 0
    %605 = vmatpush1.bf16.msra.mxu0 0
    %606 = vmatprep.subr.bf16.mxu0 0
    %607 = vmatpush1.bf16.msra.mxu0 0
    %608 = vmatprep.subr.bf16.mxu0 0
    %609 = vmatpush1.bf16.msra.mxu0 0
    %610 = vmatprep.subr.bf16.mxu0 0
    %611 = vmatpush1.bf16.msra.mxu0 0
    %612 = vmatprep.subr.bf16.mxu0 0
    %613 = vmatpush1.bf16.msra.mxu0 0
    %614 = vmatprep.subr.bf16.mxu0 0
    %615 = vmatpush1.bf16.msra.mxu0 0
    %616 = vmatprep.subr.bf16.mxu0 0
    %617 = vmatpush1.bf16.msra.mxu0 0
    %618 = vmatprep.subr.bf16.mxu0 0
    %619 = vmatpush1.bf16.msra.mxu0 0
    %620 = vmatprep.subr.bf16.mxu0 0
    %621 = vmatpush1.bf16.msra.mxu0 0
    %622 = vmatprep.subr.bf16.mxu0 0
    %623 = vmatpush1.bf16.msra.mxu0 0
    %624 = vmatprep.subr.bf16.mxu0 0
    %625 = vmatpush1.bf16.msra.mxu0 0
    %626 = vmatprep.subr.bf16.mxu0 0
    %627 = vmatpush1.bf16.msra.mxu0 0
    %628 = vmatprep.subr.bf16.mxu0 0
    %629 = vmatpush1.bf16.msra.mxu0 0
    %630 = vmatprep.subr.bf16.mxu0 0
    %631 = vmatpush1.bf16.msra.mxu0 0
    %632 = vmatprep.subr.bf16.mxu0 0
    %633 = vmatpush1.bf16.msra.mxu0 0
    %634 = vmatprep.mubr.bf16.mxu0 0
    %635 = vmatmul.mubr.bf16.gmra.mrb[0].mxu0 %v600
    %v636 = vpop.f32.mrb[0].mxu0
    %v637 = vadd.f32 0.0, %v636
    %v638 = vpop.f32.mrb[0].mxu0
    %v639 = vpop.f32.mrb[0].mxu0
    %v640 = vpop.f32.mrb[0].mxu0
    %641 = vdwg.mxu0
    %v643 = vrot.slane %v637, 4
    %v645 = vadd.f32 %v117, %v643
    %v646 = vxor.u32 %v645, 2147483648
    %v647 = vmul.f32 %v646, 1.442695
    %v648 = vpow.pop %v647
    %v649 = vadd.f32 %v648, 1.0
    %v650 = vrcp.pop %v649
    %v651 = vmul.f32 1.0, %v650
    %v652 = vtanh.pop %v645
    %v654 = vrot.slane %v587, 6
    %v656 = vmul.f32 %v651, %v654
    %658 = vrot.lane.b32.xlu0 %v652, 80
    %v659 = vpop.permute.xlu0 %658
    %v661 = vmul.f32 %v651, %v659
    %663 = vrot.lane.b32.xlu0 %v661, 16
    %v664 = vpop.permute.xlu0 %663
    %v666 = vadd.f32 %v656, %v664
    %v667 = vtanh.pop %v666
    %669 = vrot.lane.b32.xlu0 %v667, 16
    %v670 = vpop.permute.xlu0 %669
    %v672 = vmul.f32 %v651, %v670
    %v673 = vpack.c.bf16 %v672, %v672
    %v675 = vrot.slane %v673, 2
    %676 = vrot.lane.b32.xlu0 %v675, 96
    %v677 = vpop.permute.xlu0 %676
    %v679 = vsel %vm72, %v677, 0
    %681 = vmatprep.subr.bf16.mxu0 0
    %682 = vmatpush1.bf16.msra.mxu0 %v134
    %683 = vmatprep.subr.bf16.mxu0 0
    %684 = vmatpush1.bf16.msra.mxu0 0
    %685 = vmatprep.subr.bf16.mxu0 0
    %686 = vmatpush1.bf16.msra.mxu0 0
    %687 = vmatprep.subr.bf16.mxu0 0
    %688 = vmatpush1.bf16.msra.mxu0 0
    %689 = vmatprep.subr.bf16.mxu0 0
    %690 = vmatpush1.bf16.msra.mxu0 0
    %691 = vmatprep.subr.bf16.mxu0 0
    %692 = vmatpush1.bf16.msra.mxu0 0
    %693 = vmatprep.subr.bf16.mxu0 0
    %694 = vmatpush1.bf16.msra.mxu0 0
    %695 = vmatprep.subr.bf16.mxu0 0
    %696 = vmatpush1.bf16.msra.mxu0 0
    %697 = vmatprep.subr.bf16.mxu0 0
    %698 = vmatpush1.bf16.msra.mxu0 0
    %699 = vmatprep.subr.bf16.mxu0 0
    %700 = vmatpush1.bf16.msra.mxu0 0
    %701 = vmatprep.subr.bf16.mxu0 0
    %702 = vmatpush1.bf16.msra.mxu0 0
    %703 = vmatprep.subr.bf16.mxu0 0
    %704 = vmatpush1.bf16.msra.mxu0 0
    %705 = vmatprep.subr.bf16.mxu0 0
    %706 = vmatpush1.bf16.msra.mxu0 0
    %707 = vmatprep.subr.bf16.mxu0 0
    %708 = vmatpush1.bf16.msra.mxu0 0
    %709 = vmatprep.subr.bf16.mxu0 0
    %710 = vmatpush1.bf16.msra.mxu0 0
    %711 = vmatprep.subr.bf16.mxu0 0
    %712 = vmatpush1.bf16.msra.mxu0 0
    %713 = vmatprep.mubr.bf16.mxu0 0
    %714 = vmatmul.mubr.bf16.gmra.mrb[0].mxu0 %v679
    %v715 = vpop.f32.mrb[0].mxu0
    %v716 = vadd.f32 0.0, %v715
    %v717 = vpop.f32.mrb[0].mxu0
    %v718 = vpop.f32.mrb[0].mxu0
    %v719 = vpop.f32.mrb[0].mxu0
    %720 = vdwg.mxu0
    %v722 = vrot.slane %v716, 2
    %v724 = vadd.f32 %v117, %v722
    %v725 = vxor.u32 %v724, 2147483648
    %v726 = vmul.f32 %v725, 1.442695
    %v727 = vpow.pop %v726
    %v728 = vadd.f32 %v727, 1.0
    %v729 = vrcp.pop %v728
    %v730 = vmul.f32 1.0, %v729
    %v731 = vtanh.pop %v724
    %v733 = vrot.slane %v666, 6
    %v735 = vmul.f32 %v730, %v733
    %737 = vrot.lane.b32.xlu0 %v731, 80
    %v738 = vpop.permute.xlu0 %737
    %v740 = vmul.f32 %v730, %v738
    %742 = vrot.lane.b32.xlu0 %v740, 16
    %v743 = vpop.permute.xlu0 %742
    %v745 = vadd.f32 %v735, %v743
    %v746 = vtanh.pop %v745
    %748 = vrot.lane.b32.xlu0 %v746, 16
    %v749 = vpop.permute.xlu0 %748
    %v751 = vmul.f32 %v730, %v749
    %v752 = vpack.c.bf16 %v751, %v751
    %v754 = vrot.slane %v752, 3
    %755 = vrot.lane.b32.xlu0 %v754, 96
    %v756 = vpop.permute.xlu0 %755
    %v758 = vsel %vm72, %v756, 0
    %760 = vmatprep.subr.bf16.mxu0 0
    %761 = vmatpush1.bf16.msra.mxu0 %v134
    %762 = vmatprep.subr.bf16.mxu0 0
    %763 = vmatpush1.bf16.msra.mxu0 0
    %764 = vmatprep.subr.bf16.mxu0 0
    %765 = vmatpush1.bf16.msra.mxu0 0
    %766 = vmatprep.subr.bf16.mxu0 0
    %767 = vmatpush1.bf16.msra.mxu0 0
    %768 = vmatprep.subr.bf16.mxu0 0
    %769 = vmatpush1.bf16.msra.mxu0 0
    %770 = vmatprep.subr.bf16.mxu0 0
    %771 = vmatpush1.bf16.msra.mxu0 0
    %772 = vmatprep.subr.bf16.mxu0 0
    %773 = vmatpush1.bf16.msra.mxu0 0
    %774 = vmatprep.subr.bf16.mxu0 0
    %775 = vmatpush1.bf16.msra.mxu0 0
    %776 = vmatprep.subr.bf16.mxu0 0
    %777 = vmatpush1.bf16.msra.mxu0 0
    %778 = vmatprep.subr.bf16.mxu0 0
    %779 = vmatpush1.bf16.msra.mxu0 0
    %780 = vmatprep.subr.bf16.mxu0 0
    %781 = vmatpush1.bf16.msra.mxu0 0
    %782 = vmatprep.subr.bf16.mxu0 0
    %783 = vmatpush1.bf16.msra.mxu0 0
    %784 = vmatprep.subr.bf16.mxu0 0
    %785 = vmatpush1.bf16.msra.mxu0 0
    %786 = vmatprep.subr.bf16.mxu0 0
    %787 = vmatpush1.bf16.msra.mxu0 0
    %788 = vmatprep.subr.bf16.mxu0 0
    %789 = vmatpush1.bf16.msra.mxu0 0
    %790 = vmatprep.subr.bf16.mxu0 0
    %791 = vmatpush1.bf16.msra.mxu0 0
    %792 = vmatprep.mubr.bf16.mxu0 0
    %793 = vmatmul.mubr.bf16.gmra.mrb[0].mxu0 %v758
    %v794 = vpop.f32.mrb[0].mxu0
    %v795 = vadd.f32 0.0, %v794
    %v796 = vpop.f32.mrb[0].mxu0
    %v797 = vpop.f32.mrb[0].mxu0
    %v798 = vpop.f32.mrb[0].mxu0
    %799 = vdwg.mxu0
    %v800 = vadd.f32 %v122, %v795
    %v801 = vxor.u32 %v800, 2147483648
    %v802 = vmul.f32 %v801, 1.442695
    %v803 = vpow.pop %v802
    %v804 = vadd.f32 %v803, 1.0
    %v805 = vrcp.pop %v804
    %v806 = vmul.f32 1.0, %v805
    %v807 = vtanh.pop %v800
    %v809 = vrot.slane %v745, 6
    %v811 = vmul.f32 %v806, %v809
    %813 = vrot.lane.b32.xlu0 %v807, 80
    %v814 = vpop.permute.xlu0 %813
    %v816 = vmul.f32 %v806, %v814
    %818 = vrot.lane.b32.xlu0 %v816, 16
    %v819 = vpop.permute.xlu0 %818
    %v821 = vadd.f32 %v811, %v819
    %v822 = vtanh.pop %v821
    %824 = vrot.lane.b32.xlu0 %v822, 16
    %v825 = vpop.permute.xlu0 %824
    %v827 = vmul.f32 %v806, %v825
    %v828 = vpack.c.bf16 %v827, %v827
    %830 = vrot.lane.b32.xlu0 %v828, 96
    %v831 = vpop.permute.xlu0 %830
    %v833 = vsel %vm72, %v831, 0
    %835 = vmatprep.subr.bf16.mxu0 0
    %836 = vmatpush1.bf16.msra.mxu0 %v134
    %837 = vmatprep.subr.bf16.mxu0 0
    %838 = vmatpush1.bf16.msra.mxu0 0
    %839 = vmatprep.subr.bf16.mxu0 0
    %840 = vmatpush1.bf16.msra.mxu0 0
    %841 = vmatprep.subr.bf16.mxu0 0
    %842 = vmatpush1.bf16.msra.mxu0 0
    %843 = vmatprep.subr.bf16.mxu0 0
    %844 = vmatpush1.bf16.msra.mxu0 0
    %845 = vmatprep.subr.bf16.mxu0 0
    %846 = vmatpush1.bf16.msra.mxu0 0
    %847 = vmatprep.subr.bf16.mxu0 0
    %848 = vmatpush1.bf16.msra.mxu0 0
    %849 = vmatprep.subr.bf16.mxu0 0
    %850 = vmatpush1.bf16.msra.mxu0 0
    %851 = vmatprep.subr.bf16.mxu0 0
    %852 = vmatpush1.bf16.msra.mxu0 0
    %853 = vmatprep.subr.bf16.mxu0 0
    %854 = vmatpush1.bf16.msra.mxu0 0
    %855 = vmatprep.subr.bf16.mxu0 0
    %856 = vmatpush1.bf16.msra.mxu0 0
    %857 = vmatprep.subr.bf16.mxu0 0
    %858 = vmatpush1.bf16.msra.mxu0 0
    %859 = vmatprep.subr.bf16.mxu0 0
    %860 = vmatpush1.bf16.msra.mxu0 0
    %861 = vmatprep.subr.bf16.mxu0 0
    %862 = vmatpush1.bf16.msra.mxu0 0
    %863 = vmatprep.subr.bf16.mxu0 0
    %864 = vmatpush1.bf16.msra.mxu0 0
    %865 = vmatprep.subr.bf16.mxu0 0
    %866 = vmatpush1.bf16.msra.mxu0 0
    %867 = vmatprep.mubr.bf16.mxu0 0
    %868 = vmatmul.mubr.bf16.gmra.mrb[0].mxu0 %v833
    %v869 = vpop.f32.mrb[0].mxu0
    %v870 = vadd.f32 0.0, %v869
    %v871 = vpop.f32.mrb[0].mxu0
    %v872 = vpop.f32.mrb[0].mxu0
    %v873 = vpop.f32.mrb[0].mxu0
    %874 = vdwg.mxu0
    %v876 = vrot.slane %v870, 6
    %v878 = vadd.f32 %v122, %v876
    %v879 = vxor.u32 %v878, 2147483648
    %v880 = vmul.f32 %v879, 1.442695
    %v881 = vpow.pop %v880
    %v882 = vadd.f32 %v881, 1.0
    %v883 = vrcp.pop %v882
    %v884 = vmul.f32 1.0, %v883
    %v885 = vtanh.pop %v878
    %v887 = vrot.slane %v821, 6
    %v889 = vmul.f32 %v884, %v887
    %891 = vrot.lane.b32.xlu0 %v885, 80
    %v892 = vpop.permute.xlu0 %891
    %v894 = vmul.f32 %v884, %v892
    %896 = vrot.lane.b32.xlu0 %v894, 16
    %v897 = vpop.permute.xlu0 %896
    %v899 = vadd.f32 %v889, %v897
    %v900 = vtanh.pop %v899
    %902 = vrot.lane.b32.xlu0 %v900, 16
    %v903 = vpop.permute.xlu0 %902
    %v905 = vmul.f32 %v884, %v903
    %v906 = vpack.c.bf16 %v905, %v905
    %v908 = vrot.slane %v906, 1
    %909 = vrot.lane.b32.xlu0 %v908, 96
    %v910 = vpop.permute.xlu0 %909
    %v912 = vsel %vm72, %v910, 0
    %914 = vmatprep.subr.bf16.mxu0 0
    %915 = vmatpush1.bf16.msra.mxu0 %v134
    %916 = vmatprep.subr.bf16.mxu0 0
    %917 = vmatpush1.bf16.msra.mxu0 0
    %918 = vmatprep.subr.bf16.mxu0 0
    %919 = vmatpush1.bf16.msra.mxu0 0
    %920 = vmatprep.subr.bf16.mxu0 0
    %921 = vmatpush1.bf16.msra.mxu0 0
    %922 = vmatprep.subr.bf16.mxu0 0
    %923 = vmatpush1.bf16.msra.mxu0 0
    %924 = vmatprep.subr.bf16.mxu0 0
    %925 = vmatpush1.bf16.msra.mxu0 0
    %926 = vmatprep.subr.bf16.mxu0 0
    %927 = vmatpush1.bf16.msra.mxu0 0
    %928 = vmatprep.subr.bf16.mxu0 0
    %929 = vmatpush1.bf16.msra.mxu0 0
    %930 = vmatprep.subr.bf16.mxu0 0
    %931 = vmatpush1.bf16.msra.mxu0 0
    %932 = vmatprep.subr.bf16.mxu0 0
    %933 = vmatpush1.bf16.msra.mxu0 0
    %934 = vmatprep.subr.bf16.mxu0 0
    %935 = vmatpush1.bf16.msra.mxu0 0
    %936 = vmatprep.subr.bf16.mxu0 0
    %937 = vmatpush1.bf16.msra.mxu0 0
    %938 = vmatprep.subr.bf16.mxu0 0
    %939 = vmatpush1.bf16.msra.mxu0 0
    %940 = vmatprep.subr.bf16.mxu0 0
    %941 = vmatpush1.bf16.msra.mxu0 0
    %942 = vmatprep.subr.bf16.mxu0 0
    %943 = vmatpush1.bf16.msra.mxu0 0
    %944 = vmatprep.subr.bf16.mxu0 0
    %945 = vmatpush1.bf16.msra.mxu0 0
    %946 = vmatprep.mubr.bf16.mxu0 0
    %947 = vmatmul.mubr.bf16.gmra.mrb[0].mxu0 %v912
    %v948 = vpop.f32.mrb[0].mxu0
    %v949 = vadd.f32 0.0, %v948
    %v950 = vpop.f32.mrb[0].mxu0
    %v951 = vpop.f32.mrb[0].mxu0
    %v952 = vpop.f32.mrb[0].mxu0
    %953 = vdwg.mxu0
    %v955 = vrot.slane %v949, 4
    %v957 = vadd.f32 %v122, %v955
    %v958 = vxor.u32 %v957, 2147483648
    %v959 = vmul.f32 %v958, 1.442695
    %v960 = vpow.pop %v959
    %v961 = vadd.f32 %v960, 1.0
    %v962 = vrcp.pop %v961
    %v963 = vmul.f32 1.0, %v962
    %v964 = vtanh.pop %v957
    %v966 = vrot.slane %v899, 6
    %v968 = vmul.f32 %v963, %v966
    %970 = vrot.lane.b32.xlu0 %v964, 80
    %v971 = vpop.permute.xlu0 %970
    %v973 = vmul.f32 %v963, %v971
    %975 = vrot.lane.b32.xlu0 %v973, 16
    %v976 = vpop.permute.xlu0 %975
    %v978 = vadd.f32 %v968, %v976
    %v979 = vtanh.pop %v978
    %981 = vrot.lane.b32.xlu0 %v979, 16
    %v982 = vpop.permute.xlu0 %981
    %v984 = vmul.f32 %v963, %v982
    %v985 = vpack.c.bf16 %v984, %v984
    %v987 = vrot.slane %v985, 2
    %988 = vrot.lane.b32.xlu0 %v987, 96
    %v989 = vpop.permute.xlu0 %988
    %v991 = vsel %vm72, %v989, 0
    %993 = vmatprep.subr.bf16.mxu0 0
    %994 = vmatpush1.bf16.msra.mxu0 %v134
    %995 = vmatprep.subr.bf16.mxu0 0
    %996 = vmatpush1.bf16.msra.mxu0 0
    %997 = vmatprep.subr.bf16.mxu0 0
    %998 = vmatpush1.bf16.msra.mxu0 0
    %999 = vmatprep.subr.bf16.mxu0 0
    %1000 = vmatpush1.bf16.msra.mxu0 0
    %1001 = vmatprep.subr.bf16.mxu0 0
    %1002 = vmatpush1.bf16.msra.mxu0 0
    %1003 = vmatprep.subr.bf16.mxu0 0
    %1004 = vmatpush1.bf16.msra.mxu0 0
    %1005 = vmatprep.subr.bf16.mxu0 0
    %1006 = vmatpush1.bf16.msra.mxu0 0
    %1007 = vmatprep.subr.bf16.mxu0 0
    %1008 = vmatpush1.bf16.msra.mxu0 0
    %1009 = vmatprep.subr.bf16.mxu0 0
    %1010 = vmatpush1.bf16.msra.mxu0 0
    %1011 = vmatprep.subr.bf16.mxu0 0
    %1012 = vmatpush1.bf16.msra.mxu0 0
    %1013 = vmatprep.subr.bf16.mxu0 0
    %1014 = vmatpush1.bf16.msra.mxu0 0
    %1015 = vmatprep.subr.bf16.mxu0 0
    %1016 = vmatpush1.bf16.msra.mxu0 0
    %1017 = vmatprep.subr.bf16.mxu0 0
    %1018 = vmatpush1.bf16.msra.mxu0 0
    %1019 = vmatprep.subr.bf16.mxu0 0
    %1020 = vmatpush1.bf16.msra.mxu0 0
    %1021 = vmatprep.subr.bf16.mxu0 0
    %1022 = vmatpush1.bf16.msra.mxu0 0
    %1023 = vmatprep.subr.bf16.mxu0 0
    %1024 = vmatpush1.bf16.msra.mxu0 0
    %1025 = vmatprep.mubr.bf16.mxu0 0
    %1026 = vmatmul.mubr.bf16.gmra.mrb[0].mxu0 %v991
    %v1027 = vpop.f32.mrb[0].mxu0
    %v1028 = vadd.f32 0.0, %v1027
    %v1029 = vpop.f32.mrb[0].mxu0
    %v1030 = vpop.f32.mrb[0].mxu0
    %v1031 = vpop.f32.mrb[0].mxu0
    %1032 = vdwg.mxu0
    %v1034 = vrot.slane %v1028, 2
    %v1036 = vadd.f32 %v122, %v1034
    %v1037 = vxor.u32 %v1036, 2147483648
    %v1038 = vmul.f32 %v1037, 1.442695
    %v1039 = vpow.pop %v1038
    %v1040 = vadd.f32 %v1039, 1.0
    %v1041 = vrcp.pop %v1040
    %v1042 = vmul.f32 1.0, %v1041
    %v1043 = vtanh.pop %v1036
    %v1045 = vrot.slane %v978, 6
    %v1047 = vmul.f32 %v1042, %v1045
    %1049 = vrot.lane.b32.xlu0 %v1043, 80
    %v1050 = vpop.permute.xlu0 %1049
    %v1052 = vmul.f32 %v1042, %v1050
    %1054 = vrot.lane.b32.xlu0 %v1052, 16
    %v1055 = vpop.permute.xlu0 %1054
    %v1057 = vadd.f32 %v1047, %v1055
    %v1058 = vtanh.pop %v1057
    %1060 = vrot.lane.b32.xlu0 %v1058, 16
    %v1061 = vpop.permute.xlu0 %1060
    %v1063 = vmul.f32 %v1042, %v1061
    %v1064 = vpack.c.bf16 %v1063, %v1063
    %v1066 = vrot.slane %v1064, 3
    %1067 = vrot.lane.b32.xlu0 %v1066, 96
    %v1068 = vpop.permute.xlu0 %1067
    %v1070 = vsel %vm72, %v1068, 0
    %1072 = vmatprep.subr.bf16.mxu0 0
    %1073 = vmatpush1.bf16.msra.mxu0 %v134
    %1074 = vmatprep.subr.bf16.mxu0 0
    %1075 = vmatpush1.bf16.msra.mxu0 0
    %1076 = vmatprep.subr.bf16.mxu0 0
    %1077 = vmatpush1.bf16.msra.mxu0 0
    %1078 = vmatprep.subr.bf16.mxu0 0
    %1079 = vmatpush1.bf16.msra.mxu0 0
    %1080 = vmatprep.subr.bf16.mxu0 0
    %1081 = vmatpush1.bf16.msra.mxu0 0
    %1082 = vmatprep.subr.bf16.mxu0 0
    %1083 = vmatpush1.bf16.msra.mxu0 0
    %1084 = vmatprep.subr.bf16.mxu0 0
    %1085 = vmatpush1.bf16.msra.mxu0 0
    %1086 = vmatprep.subr.bf16.mxu0 0
    %1087 = vmatpush1.bf16.msra.mxu0 0
    %1088 = vmatprep.subr.bf16.mxu0 0
    %1089 = vmatpush1.bf16.msra.mxu0 0
    %1090 = vmatprep.subr.bf16.mxu0 0
    %1091 = vmatpush1.bf16.msra.mxu0 0
    %1092 = vmatprep.subr.bf16.mxu0 0
    %1093 = vmatpush1.bf16.msra.mxu0 0
    %1094 = vmatprep.subr.bf16.mxu0 0
    %1095 = vmatpush1.bf16.msra.mxu0 0
    %1096 = vmatprep.subr.bf16.mxu0 0
    %1097 = vmatpush1.bf16.msra.mxu0 0
    %1098 = vmatprep.subr.bf16.mxu0 0
    %1099 = vmatpush1.bf16.msra.mxu0 0
    %1100 = vmatprep.subr.bf16.mxu0 0
    %1101 = vmatpush1.bf16.msra.mxu0 0
    %1102 = vmatprep.subr.bf16.mxu0 0
    %1103 = vmatpush1.bf16.msra.mxu0 0
    %1104 = vmatprep.mubr.bf16.mxu0 0
    %1105 = vmatmul.mubr.bf16.gmra.mrb[0].mxu0 %v1070
    %v1106 = vpop.f32.mrb[0].mxu0
    %v1107 = vadd.f32 0.0, %v1106
    %v1108 = vpop.f32.mrb[0].mxu0
    %v1109 = vpop.f32.mrb[0].mxu0
    %v1110 = vpop.f32.mrb[0].mxu0
    %1111 = vdwg.mxu0
    %v1112 = vadd.f32 %v125, %v1107
    %v1113 = vxor.u32 %v1112, 2147483648
    %v1114 = vmul.f32 %v1113, 1.442695
    %v1115 = vpow.pop %v1114
    %v1116 = vadd.f32 %v1115, 1.0
    %v1117 = vrcp.pop %v1116
    %v1118 = vmul.f32 1.0, %v1117
    %v1119 = vtanh.pop %v1112
    %v1121 = vrot.slane %v1057, 6
    %v1123 = vmul.f32 %v1118, %v1121
    %1125 = vrot.lane.b32.xlu0 %v1119, 80
    %v1126 = vpop.permute.xlu0 %1125
    %v1128 = vmul.f32 %v1118, %v1126
    %1130 = vrot.lane.b32.xlu0 %v1128, 16
    %v1131 = vpop.permute.xlu0 %1130
    %v1133 = vadd.f32 %v1123, %v1131
    %v1134 = vtanh.pop %v1133
    %1136 = vrot.lane.b32.xlu0 %v1134, 16
    %v1137 = vpop.permute.xlu0 %1136
    %v1139 = vmul.f32 %v1118, %v1137
    %v1140 = vpack.c.bf16 %v1139, %v1139
    %1142 = vrot.lane.b32.xlu0 %v1140, 96
    %v1143 = vpop.permute.xlu0 %1142
    %v1145 = vsel %vm72, %v1143, 0
    %1147 = vmatprep.subr.bf16.mxu0 0
    %1148 = vmatpush1.bf16.msra.mxu0 %v134
    %1149 = vmatprep.subr.bf16.mxu0 0
    %1150 = vmatpush1.bf16.msra.mxu0 0
    %1151 = vmatprep.subr.bf16.mxu0 0
    %1152 = vmatpush1.bf16.msra.mxu0 0
    %1153 = vmatprep.subr.bf16.mxu0 0
    %1154 = vmatpush1.bf16.msra.mxu0 0
    %1155 = vmatprep.subr.bf16.mxu0 0
    %1156 = vmatpush1.bf16.msra.mxu0 0
    %1157 = vmatprep.subr.bf16.mxu0 0
    %1158 = vmatpush1.bf16.msra.mxu0 0
    %1159 = vmatprep.subr.bf16.mxu0 0
    %1160 = vmatpush1.bf16.msra.mxu0 0
    %1161 = vmatprep.subr.bf16.mxu0 0
    %1162 = vmatpush1.bf16.msra.mxu0 0
    %1163 = vmatprep.subr.bf16.mxu0 0
    %1164 = vmatpush1.bf16.msra.mxu0 0
    %1165 = vmatprep.subr.bf16.mxu0 0
    %1166 = vmatpush1.bf16.msra.mxu0 0
    %1167 = vmatprep.subr.bf16.mxu0 0
    %1168 = vmatpush1.bf16.msra.mxu0 0
    %1169 = vmatprep.subr.bf16.mxu0 0
    %1170 = vmatpush1.bf16.msra.mxu0 0
    %1171 = vmatprep.subr.bf16.mxu0 0
    %1172 = vmatpush1.bf16.msra.mxu0 0
    %1173 = vmatprep.subr.bf16.mxu0 0
    %1174 = vmatpush1.bf16.msra.mxu0 0
    %1175 = vmatprep.subr.bf16.mxu0 0
    %1176 = vmatpush1.bf16.msra.mxu0 0
    %1177 = vmatprep.subr.bf16.mxu0 0
    %1178 = vmatpush1.bf16.msra.mxu0 0
    %1179 = vmatprep.mubr.bf16.mxu0 0
    %1180 = vmatmul.mubr.bf16.gmra.mrb[0].mxu0 %v1145
    %v1181 = vpop.f32.mrb[0].mxu0
    %v1182 = vadd.f32 0.0, %v1181
    %v1183 = vpop.f32.mrb[0].mxu0
    %v1184 = vpop.f32.mrb[0].mxu0
    %v1185 = vpop.f32.mrb[0].mxu0
    %1186 = vdwg.mxu0
    %v1188 = vrot.slane %v1182, 6
    %v1190 = vadd.f32 %v125, %v1188
    %v1191 = vxor.u32 %v1190, 2147483648
    %v1192 = vmul.f32 %v1191, 1.442695
    %v1193 = vpow.pop %v1192
    %v1194 = vadd.f32 %v1193, 1.0
    %v1195 = vrcp.pop %v1194
    %v1196 = vmul.f32 1.0, %v1195
    %v1197 = vtanh.pop %v1190
    %v1199 = vrot.slane %v1133, 6
    %v1201 = vmul.f32 %v1196, %v1199
    %1203 = vrot.lane.b32.xlu0 %v1197, 80
    %v1204 = vpop.permute.xlu0 %1203
    %v1206 = vmul.f32 %v1196, %v1204
    %1208 = vrot.lane.b32.xlu0 %v1206, 16
    %v1209 = vpop.permute.xlu0 %1208
    %v1211 = vadd.f32 %v1201, %v1209
    %v1212 = vtanh.pop %v1211
    %1214 = vrot.lane.b32.xlu0 %v1212, 16
    %v1215 = vpop.permute.xlu0 %1214
    %v1217 = vmul.f32 %v1196, %v1215
    %v1218 = vpack.c.bf16 %v1217, %v1217
    %v1220 = vrot.slane %v1218, 1
    %1221 = vrot.lane.b32.xlu0 %v1220, 96
    %v1222 = vpop.permute.xlu0 %1221
    %v1224 = vsel %vm72, %v1222, 0
    %1226 = vmatprep.subr.bf16.mxu0 0
    %1227 = vmatpush1.bf16.msra.mxu0 %v134
    %1228 = vmatprep.subr.bf16.mxu0 0
    %1229 = vmatpush1.bf16.msra.mxu0 0
    %1230 = vmatprep.subr.bf16.mxu0 0
    %1231 = vmatpush1.bf16.msra.mxu0 0
    %1232 = vmatprep.subr.bf16.mxu0 0
    %1233 = vmatpush1.bf16.msra.mxu0 0
    %1234 = vmatprep.subr.bf16.mxu0 0
    %1235 = vmatpush1.bf16.msra.mxu0 0
    %1236 = vmatprep.subr.bf16.mxu0 0
    %1237 = vmatpush1.bf16.msra.mxu0 0
    %1238 = vmatprep.subr.bf16.mxu0 0
    %1239 = vmatpush1.bf16.msra.mxu0 0
    %1240 = vmatprep.subr.bf16.mxu0 0
    %1241 = vmatpush1.bf16.msra.mxu0 0
    %1242 = vmatprep.subr.bf16.mxu0 0
    %1243 = vmatpush1.bf16.msra.mxu0 0
    %1244 = vmatprep.subr.bf16.mxu0 0
    %1245 = vmatpush1.bf16.msra.mxu0 0
    %1246 = vmatprep.subr.bf16.mxu0 0
    %1247 = vmatpush1.bf16.msra.mxu0 0
    %1248 = vmatprep.subr.bf16.mxu0 0
    %1249 = vmatpush1.bf16.msra.mxu0 0
    %1250 = vmatprep.subr.bf16.mxu0 0
    %1251 = vmatpush1.bf16.msra.mxu0 0
    %1252 = vmatprep.subr.bf16.mxu0 0
    %1253 = vmatpush1.bf16.msra.mxu0 0
    %1254 = vmatprep.subr.bf16.mxu0 0
    %1255 = vmatpush1.bf16.msra.mxu0 0
    %1256 = vmatprep.subr.bf16.mxu0 0
    %1257 = vmatpush1.bf16.msra.mxu0 0
    %1258 = vmatprep.mubr.bf16.mxu0 0
    %1259 = vmatmul.mubr.bf16.gmra.mrb[0].mxu0 %v1224
    %v1260 = vpop.f32.mrb[0].mxu0
    %v1261 = vadd.f32 0.0, %v1260
    %v1262 = vpop.f32.mrb[0].mxu0
    %v1263 = vpop.f32.mrb[0].mxu0
    %v1264 = vpop.f32.mrb[0].mxu0
    %1265 = vdwg.mxu0
    %v1267 = vrot.slane %v1261, 4
    %v1269 = vadd.f32 %v125, %v1267
    %v1270 = vxor.u32 %v1269, 2147483648
    %v1271 = vmul.f32 %v1270, 1.442695
    %v1272 = vpow.pop %v1271
    %v1273 = vadd.f32 %v1272, 1.0
    %v1274 = vrcp.pop %v1273
    %v1275 = vmul.f32 1.0, %v1274
    %v1276 = vtanh.pop %v1269
    %v1278 = vrot.slane %v1211, 6
    %v1280 = vmul.f32 %v1275, %v1278
    %1282 = vrot.lane.b32.xlu0 %v1276, 80
    %v1283 = vpop.permute.xlu0 %1282
    %v1285 = vmul.f32 %v1275, %v1283
    %1287 = vrot.lane.b32.xlu0 %v1285, 16
    %v1288 = vpop.permute.xlu0 %1287
    %v1290 = vadd.f32 %v1280, %v1288
    %v1291 = vtanh.pop %v1290
    %1293 = vrot.lane.b32.xlu0 %v1291, 16
    %v1294 = vpop.permute.xlu0 %1293
    %v1296 = vmul.f32 %v1275, %v1294
    %v1297 = vpack.c.bf16 %v1296, %v1296
    %v1299 = vrot.slane %v1297, 2
    %1300 = vrot.lane.b32.xlu0 %v1299, 96
    %v1301 = vpop.permute.xlu0 %1300
    %v1303 = vsel %vm72, %v1301, 0
    %1305 = vmatprep.subr.bf16.mxu0 0
    %1306 = vmatpush1.bf16.msra.mxu0 %v134
    %1307 = vmatprep.subr.bf16.mxu0 0
    %1308 = vmatpush1.bf16.msra.mxu0 0
    %1309 = vmatprep.subr.bf16.mxu0 0
    %1310 = vmatpush1.bf16.msra.mxu0 0
    %1311 = vmatprep.subr.bf16.mxu0 0
    %1312 = vmatpush1.bf16.msra.mxu0 0
    %1313 = vmatprep.subr.bf16.mxu0 0
    %1314 = vmatpush1.bf16.msra.mxu0 0
    %1315 = vmatprep.subr.bf16.mxu0 0
    %1316 = vmatpush1.bf16.msra.mxu0 0
    %1317 = vmatprep.subr.bf16.mxu0 0
    %1318 = vmatpush1.bf16.msra.mxu0 0
    %1319 = vmatprep.subr.bf16.mxu0 0
    %1320 = vmatpush1.bf16.msra.mxu0 0
    %1321 = vmatprep.subr.bf16.mxu0 0
    %1322 = vmatpush1.bf16.msra.mxu0 0
    %1323 = vmatprep.subr.bf16.mxu0 0
    %1324 = vmatpush1.bf16.msra.mxu0 0
    %1325 = vmatprep.subr.bf16.mxu0 0
    %1326 = vmatpush1.bf16.msra.mxu0 0
    %1327 = vmatprep.subr.bf16.mxu0 0
    %1328 = vmatpush1.bf16.msra.mxu0 0
    %1329 = vmatprep.subr.bf16.mxu0 0
    %1330 = vmatpush1.bf16.msra.mxu0 0
    %1331 = vmatprep.subr.bf16.mxu0 0
    %1332 = vmatpush1.bf16.msra.mxu0 0
    %1333 = vmatprep.subr.bf16.mxu0 0
    %1334 = vmatpush1.bf16.msra.mxu0 0
    %1335 = vmatprep.subr.bf16.mxu0 0
    %1336 = vmatpush1.bf16.msra.mxu0 0
    %1337 = vmatprep.mubr.bf16.mxu0 0
    %1338 = vmatmul.mubr.bf16.gmra.mrb[0].mxu0 %v1303
    %v1339 = vpop.f32.mrb[0].mxu0
    %v1340 = vadd.f32 0.0, %v1339
    %v1341 = vpop.f32.mrb[0].mxu0
    %v1342 = vpop.f32.mrb[0].mxu0
    %v1343 = vpop.f32.mrb[0].mxu0
    %1344 = vdwg.mxu0
    %v1346 = vrot.slane %v1340, 2
    %v1348 = vadd.f32 %v125, %v1346
    %v1349 = vxor.u32 %v1348, 2147483648
    %v1350 = vmul.f32 %v1349, 1.442695
    %v1351 = vpow.pop %v1350
    %v1352 = vadd.f32 %v1351, 1.0
    %v1353 = vrcp.pop %v1352
    %v1354 = vmul.f32 1.0, %v1353
    %v1355 = vtanh.pop %v1348
    %v1357 = vrot.slane %v1290, 6
    %v1359 = vmul.f32 %v1354, %v1357
    %1361 = vrot.lane.b32.xlu0 %v1355, 80
    %v1362 = vpop.permute.xlu0 %1361
    %v1364 = vmul.f32 %v1354, %v1362
    %1366 = vrot.lane.b32.xlu0 %v1364, 16
    %v1367 = vpop.permute.xlu0 %1366
    %v1369 = vadd.f32 %v1359, %v1367
    %v1370 = vtanh.pop %v1369
    %1372 = vrot.lane.b32.xlu0 %v1370, 16
    %v1373 = vpop.permute.xlu0 %1372
    %v1375 = vmul.f32 %v1354, %v1373
    %vm1376 = vcmask 1041408
    %v1377 = vsel %vm1376, %v203, %v281
    %vm1378 = vcmask 1043456
    %v1379 = vsel %vm1378, %v1377, %v360
    %vm1380 = vcmask 1045504
    %v1381 = vsel %vm1380, %v1379, %v439
    %v1382 = vsel %vm1376, %v515, %v593
    %v1383 = vsel %vm1378, %v1382, %v672
    %v1384 = vsel %vm1380, %v1383, %v751
    %v1385 = vsel %vm1376, %v827, %v905
    %v1386 = vsel %vm1378, %v1385, %v984
    %v1387 = vsel %vm1380, %v1386, %v1063
    %v1388 = vsel %vm1376, %v1139, %v1217
    %v1389 = vsel %vm1378, %v1388, %v1296
    %v1390 = vsel %vm1380, %v1389, %v1375
    %v1392 = vrot.slane %v1375, 6
    %v1395 = vrot.slane %v1296, 2
    %v1398 = vrot.slane %v1217, 6
    %v1401 = vrot.slane %v1139, 2
    %v1404 = vrot.slane %v1063, 6
    %v1407 = vrot.slane %v984, 2
    %v1410 = vrot.slane %v905, 6
    %v1413 = vrot.slane %v827, 2
    %v1416 = vrot.slane %v751, 6
    %v1419 = vrot.slane %v672, 2
    %v1422 = vrot.slane %v593, 6
    %v1425 = vrot.slane %v515, 2
    %v1428 = vrot.slane %v439, 6
    %v1431 = vrot.slane %v360, 2
    %v1434 = vrot.slane %v281, 6
    %v1437 = vrot.slane %v203, 2
    %v1439 = vsel %vm1376, %v1392, %v1395
    %v1440 = vsel %vm1378, %v1439, %v1398
    %v1441 = vsel %vm1380, %v1440, %v1401
    %v1442 = vsel %vm1376, %v1404, %v1407
    %v1443 = vsel %vm1378, %v1442, %v1410
    %v1444 = vsel %vm1380, %v1443, %v1413
    %v1445 = vsel %vm1376, %v1416, %v1419
    %v1446 = vsel %vm1378, %v1445, %v1422
    %v1447 = vsel %vm1380, %v1446, %v1425
    %v1448 = vsel %vm1376, %v1428, %v1431
    %v1449 = vsel %vm1378, %v1448, %v1434
    %v1450 = vsel %vm1380, %v1449, %v1437
    %1455 = vrot.lane.b32.xlu0 %v1381, 96
    %v1456 = vpop.permute.xlu0 %1455
    %1457 = vrot.lane.b32.xlu0 %v1384, 96
    %v1458 = vpop.permute.xlu0 %1457
    %1459 = vrot.lane.b32.xlu0 %v1387, 96
    %v1460 = vpop.permute.xlu0 %1459
    %1461 = vrot.lane.b32.xlu0 %v1390, 96
    %v1462 = vpop.permute.xlu0 %1461
    %1471 = vrot.lane.b32.xlu0 %v1441, 96
    %v1472 = vpop.permute.xlu0 %1471
    %1473 = vrot.lane.b32.xlu0 %v1444, 96
    %v1474 = vpop.permute.xlu0 %1473
    %1475 = vrot.lane.b32.xlu0 %v1447, 96
    %v1476 = vpop.permute.xlu0 %1475
    %1477 = vrot.lane.b32.xlu0 %v1450, 96
    %v1478 = vpop.permute.xlu0 %1477
    %vm1483 = vcmask 64512
    %v1484 = vsel %vm1483, %v1456, %v1472
    %v1485 = vsel %vm1483, %v1458, %v1474
    %v1486 = vsel %vm1483, %v1460, %v1476
    %v1487 = vsel %vm1483, %v1462, %v1478
    %v1488 = vpack.c.bf16 %v1485, %v1484
    %v1489 = vpack.c.bf16 %v1487, %v1486
    %v1490 = vld [vmem:[%s5] sm:$0x1]
    %v1491 = vld [vmem:[%s4] sm:$0xf]
    %v1492 = vld [vmem:[%s4 + $0x4] sm:$0xf]
    %s1493 = scalar_lea.vmem %s4, 8
    %v1494 = vld [vmem:[%s1493] sm:$0xf]
    %v1495 = vld [vmem:[%s1493 + $0x4] sm:$0xf]
    %vm1498 = vcmask 1046528
    %v1499 = vrot.slane %v1488, 1
    %v1500 = vrot.slane %v1489, 1
    %v1501 = vsel %vm1498, %v1499, %v1500
    %v1504 = vunpack.c.l.b16 %v1494
    %v1505 = vunpack.c.l.b16 %v1495
    %v1506 = vpack.c.b16 %v1505, %v1504
    %v1509 = vsel %vm72, %v1501, 0
    %v1512 = vsel %vm72, %v1500, 0
    %1514 = vmatprep.subr.bf16.mxu0 0
    %1515 = vmatpush1.bf16.msra.mxu0 %v1506
    %1516 = vmatprep.subr.bf16.mxu0 0
    %1517 = vmatpush1.bf16.msra.mxu0 0
    %1518 = vmatprep.subr.bf16.mxu0 0
    %1519 = vmatpush1.bf16.msra.mxu0 0
    %1520 = vmatprep.subr.bf16.mxu0 0
    %1521 = vmatpush1.bf16.msra.mxu0 0
    %1522 = vmatprep.subr.bf16.mxu0 0
    %1523 = vmatpush1.bf16.msra.mxu0 0
    %1524 = vmatprep.subr.bf16.mxu0 0
    %1525 = vmatpush1.bf16.msra.mxu0 0
    %1526 = vmatprep.subr.bf16.mxu0 0
    %1527 = vmatpush1.bf16.msra.mxu0 0
    %1528 = vmatprep.subr.bf16.mxu0 0
    %1529 = vmatpush1.bf16.msra.mxu0 0
    %1530 = vmatprep.subr.bf16.mxu0 0
    %1531 = vmatpush1.bf16.msra.mxu0 0
    %1532 = vmatprep.subr.bf16.mxu0 0
    %1533 = vmatpush1.bf16.msra.mxu0 0
    %1534 = vmatprep.subr.bf16.mxu0 0
    %1535 = vmatpush1.bf16.msra.mxu0 0
    %1536 = vmatprep.subr.bf16.mxu0 0
    %1537 = vmatpush1.bf16.msra.mxu0 0
    %1538 = vmatprep.subr.bf16.mxu0 0
    %1539 = vmatpush1.bf16.msra.mxu0 0
    %1540 = vmatprep.subr.bf16.mxu0 0
    %1541 = vmatpush1.bf16.msra.mxu0 0
    %1542 = vmatprep.subr.bf16.mxu0 0
    %1543 = vmatpush1.bf16.msra.mxu0 0
    %1544 = vmatprep.subr.bf16.mxu0 0
    %1545 = vmatpush1.bf16.msra.mxu0 0
    %1546 = vmatprep.mubr.bf16.mxu0 0
    %1547 = vmatmul.mubr.bf16.gmra.mrb[0].mxu0 %v1509
    %v1548 = vpop.f32.mrb[0].mxu0
    %v1549 = vadd.f32 0.0, %v1548
    %v1550 = vpop.f32.mrb[0].mxu0
    %v1551 = vpop.f32.mrb[0].mxu0
    %v1552 = vadd.f32 0.0, %v1551
    %v1553 = vpop.f32.mrb[0].mxu0
    %1554 = vmatprep.mubr.bf16.mxu0 0
    %1555 = vmatmul.mubr.bf16.gmra.mrb[0].mxu0 %v1512
    %v1556 = vpop.f32.mrb[0].mxu0
    %v1557 = vadd.f32 0.0, %v1556
    %v1558 = vpop.f32.mrb[0].mxu0
    %v1559 = vpop.f32.mrb[0].mxu0
    %v1560 = vadd.f32 0.0, %v1559
    %v1561 = vpop.f32.mrb[0].mxu0
    %1562 = vdwg.mxu0
    %v1565 = vunpack.c.l.b16 %v1491
    %v1566 = vunpack.c.l.b16 %v1492
    %v1567 = vpack.c.b16 %v1566, %v1565
    %v1570 = vsel %vm72, %v1488, 0
    %v1573 = vsel %vm72, %v1489, 0
    %1575 = vmatprep.subr.bf16.mxu0 0
    %1576 = vmatpush1.bf16.msra.mxu0 %v1567
    %1577 = vmatprep.subr.bf16.mxu0 0
    %1578 = vmatpush1.bf16.msra.mxu0 0
    %1579 = vmatprep.subr.bf16.mxu0 0
    %1580 = vmatpush1.bf16.msra.mxu0 0
    %1581 = vmatprep.subr.bf16.mxu0 0
    %1582 = vmatpush1.bf16.msra.mxu0 0
    %1583 = vmatprep.subr.bf16.mxu0 0
    %1584 = vmatpush1.bf16.msra.mxu0 0
    %1585 = vmatprep.subr.bf16.mxu0 0
    %1586 = vmatpush1.bf16.msra.mxu0 0
    %1587 = vmatprep.subr.bf16.mxu0 0
    %1588 = vmatpush1.bf16.msra.mxu0 0
    %1589 = vmatprep.subr.bf16.mxu0 0
    %1590 = vmatpush1.bf16.msra.mxu0 0
    %1591 = vmatprep.subr.bf16.mxu0 0
    %1592 = vmatpush1.bf16.msra.mxu0 0
    %1593 = vmatprep.subr.bf16.mxu0 0
    %1594 = vmatpush1.bf16.msra.mxu0 0
    %1595 = vmatprep.subr.bf16.mxu0 0
    %1596 = vmatpush1.bf16.msra.mxu0 0
    %1597 = vmatprep.subr.bf16.mxu0 0
    %1598 = vmatpush1.bf16.msra.mxu0 0
    %1599 = vmatprep.subr.bf16.mxu0 0
    %1600 = vmatpush1.bf16.msra.mxu0 0
    %1601 = vmatprep.subr.bf16.mxu0 0
    %1602 = vmatpush1.bf16.msra.mxu0 0
    %1603 = vmatprep.subr.bf16.mxu0 0
    %1604 = vmatpush1.bf16.msra.mxu0 0
    %1605 = vmatprep.subr.bf16.mxu0 0
    %1606 = vmatpush1.bf16.msra.mxu0 0
    %1607 = vmatprep.mubr.bf16.mxu0 0
    %1608 = vmatmul.mubr.bf16.gmra.mrb[0].mxu0 %v1570
    %v1609 = vpop.f32.mrb[0].mxu0
    %v1610 = vadd.f32 %v1549, %v1609
    %v1611 = vpop.f32.mrb[0].mxu0
    %v1612 = vpop.f32.mrb[0].mxu0
    %v1613 = vadd.f32 %v1552, %v1612
    %v1614 = vpop.f32.mrb[0].mxu0
    %1615 = vmatprep.mubr.bf16.mxu0 0
    %1616 = vmatmul.mubr.bf16.gmra.mrb[0].mxu0 %v1573
    %v1617 = vpop.f32.mrb[0].mxu0
    %v1618 = vadd.f32 %v1557, %v1617
    %v1619 = vpop.f32.mrb[0].mxu0
    %v1620 = vpop.f32.mrb[0].mxu0
    %v1621 = vadd.f32 %v1560, %v1620
    %v1622 = vpop.f32.mrb[0].mxu0
    %1623 = vdwg.mxu0
    %s1624 = scalar_lea.vmem %s4, 16
    %v1625 = vld [vmem:[%s1624] sm:$0xf]
    %v1626 = vld [vmem:[%s1624 + $0x4] sm:$0xf]
    %vm1627 = vcmask 1045504
    %v1628 = vrot.slane %v1488, 2
    %v1629 = vrot.slane %v1489, 2
    %v1630 = vsel %vm1627, %v1628, %v1629
    %v1633 = vunpack.c.l.b16 %v1625
    %v1634 = vunpack.c.l.b16 %v1626
    %v1635 = vpack.c.b16 %v1634, %v1633
    %v1638 = vsel %vm72, %v1630, 0
    %v1641 = vsel %vm72, %v1629, 0
    %1643 = vmatprep.subr.bf16.mxu0 0
    %1644 = vmatpush1.bf16.msra.mxu0 %v1635
    %1645 = vmatprep.subr.bf16.mxu0 0
    %1646 = vmatpush1.bf16.msra.mxu0 0
    %1647 = vmatprep.subr.bf16.mxu0 0
    %1648 = vmatpush1.bf16.msra.mxu0 0
    %1649 = vmatprep.subr.bf16.mxu0 0
    %1650 = vmatpush1.bf16.msra.mxu0 0
    %1651 = vmatprep.subr.bf16.mxu0 0
    %1652 = vmatpush1.bf16.msra.mxu0 0
    %1653 = vmatprep.subr.bf16.mxu0 0
    %1654 = vmatpush1.bf16.msra.mxu0 0
    %1655 = vmatprep.subr.bf16.mxu0 0
    %1656 = vmatpush1.bf16.msra.mxu0 0
    %1657 = vmatprep.subr.bf16.mxu0 0
    %1658 = vmatpush1.bf16.msra.mxu0 0
    %1659 = vmatprep.subr.bf16.mxu0 0
    %1660 = vmatpush1.bf16.msra.mxu0 0
    %1661 = vmatprep.subr.bf16.mxu0 0
    %1662 = vmatpush1.bf16.msra.mxu0 0
    %1663 = vmatprep.subr.bf16.mxu0 0
    %1664 = vmatpush1.bf16.msra.mxu0 0
    %1665 = vmatprep.subr.bf16.mxu0 0
    %1666 = vmatpush1.bf16.msra.mxu0 0
    %1667 = vmatprep.subr.bf16.mxu0 0
    %1668 = vmatpush1.bf16.msra.mxu0 0
    %1669 = vmatprep.subr.bf16.mxu0 0
    %1670 = vmatpush1.bf16.msra.mxu0 0
    %1671 = vmatprep.subr.bf16.mxu0 0
    %1672 = vmatpush1.bf16.msra.mxu0 0
    %1673 = vmatprep.subr.bf16.mxu0 0
    %1674 = vmatpush1.bf16.msra.mxu0 0
    %1675 = vmatprep.mubr.bf16.mxu0 0
    %1676 = vmatmul.mubr.bf16.gmra.mrb[0].mxu0 %v1638
    %v1677 = vpop.f32.mrb[0].mxu0
    %v1678 = vadd.f32 0.0, %v1677
    %v1679 = vpop.f32.mrb[0].mxu0
    %v1680 = vpop.f32.mrb[0].mxu0
    %v1681 = vadd.f32 0.0, %v1680
    %v1682 = vpop.f32.mrb[0].mxu0
    %1683 = vmatprep.mubr.bf16.mxu0 0
    %1684 = vmatmul.mubr.bf16.gmra.mrb[0].mxu0 %v1641
    %v1685 = vpop.f32.mrb[0].mxu0
    %v1686 = vadd.f32 0.0, %v1685
    %v1687 = vpop.f32.mrb[0].mxu0
    %v1688 = vpop.f32.mrb[0].mxu0
    %v1689 = vadd.f32 0.0, %v1688
    %v1690 = vpop.f32.mrb[0].mxu0
    %1691 = vdwg.mxu0
    %v1692 = vadd.f32 %v1610, %v1678
    %v1693 = vadd.f32 %v1613, %v1681
    %v1694 = vadd.f32 %v1618, %v1686
    %v1695 = vadd.f32 %v1621, %v1689
    %v1697 = vlaneseq
    %v1698 = vshrl.u32 %v1697, 7
    %v1699 = vsub.s32 0, %v1698
    %v1700 = vrot.slane %v1490, %v1699
    %v1702 = vadd.f32 %v1692, %v1700
    %v1703 = vadd.f32 %v1693, %v1700
    %v1704 = vadd.f32 %v1694, %v1700
    %v1705 = vadd.f32 %v1695, %v1700
    %v1706 = vmax.f32 %v1702, 0.0
    %v1707 = vmax.f32 %v1703, 0.0
    %v1708 = vmax.f32 %v1704, 0.0
    %v1709 = vmax.f32 %v1705, 0.0
    %v1710 = vld [vmem:[%s7] sm:$0x1]
    %v1711 = vld [vmem:[%s6] sm:$0xf]
    %v1712 = vld [vmem:[%s6 + $0x4] sm:$0xf]
    %s1713 = scalar_lea.vmem %s6, 8
    %v1714 = vld [vmem:[%s1713] sm:$0xf]
    %v1715 = vld [vmem:[%s1713 + $0x4] sm:$0xf]
    %v1718 = vunpack.c.l.b16 %v1714
    %v1719 = vunpack.c.l.b16 %v1715
    %v1720 = vpack.c.b16 %v1719, %v1718
    %1722 = vmatprep.subr.bf16.mxu0 0
    %1723 = vmatpush1.bf16.msra.mxu0 %v1720
    %1724 = vmatprep.subr.bf16.mxu0 0
    %1725 = vmatpush1.bf16.msra.mxu0 0
    %1726 = vmatprep.subr.bf16.mxu0 0
    %1727 = vmatpush1.bf16.msra.mxu0 0
    %1728 = vmatprep.subr.bf16.mxu0 0
    %1729 = vmatpush1.bf16.msra.mxu0 0
    %1730 = vmatprep.subr.bf16.mxu0 0
    %1731 = vmatpush1.bf16.msra.mxu0 0
    %1732 = vmatprep.subr.bf16.mxu0 0
    %1733 = vmatpush1.bf16.msra.mxu0 0
    %1734 = vmatprep.subr.bf16.mxu0 0
    %1735 = vmatpush1.bf16.msra.mxu0 0
    %1736 = vmatprep.subr.bf16.mxu0 0
    %1737 = vmatpush1.bf16.msra.mxu0 0
    %1738 = vmatprep.subr.bf16.mxu0 0
    %1739 = vmatpush1.bf16.msra.mxu0 0
    %1740 = vmatprep.subr.bf16.mxu0 0
    %1741 = vmatpush1.bf16.msra.mxu0 0
    %1742 = vmatprep.subr.bf16.mxu0 0
    %1743 = vmatpush1.bf16.msra.mxu0 0
    %1744 = vmatprep.subr.bf16.mxu0 0
    %1745 = vmatpush1.bf16.msra.mxu0 0
    %1746 = vmatprep.subr.bf16.mxu0 0
    %1747 = vmatpush1.bf16.msra.mxu0 0
    %1748 = vmatprep.subr.bf16.mxu0 0
    %1749 = vmatpush1.bf16.msra.mxu0 0
    %1750 = vmatprep.subr.bf16.mxu0 0
    %1751 = vmatpush1.bf16.msra.mxu0 0
    %1752 = vmatprep.subr.bf16.mxu0 0
    %1753 = vmatpush1.bf16.msra.mxu0 0
    %1754 = vmatprep.mubr.bf16.mxu0 0
    %1755 = vmatmul.mubr.bf16.gmra.mrb[0].mxu0 %v1509
    %v1756 = vpop.f32.mrb[0].mxu0
    %v1757 = vadd.f32 0.0, %v1756
    %v1758 = vpop.f32.mrb[0].mxu0
    %v1759 = vpop.f32.mrb[0].mxu0
    %v1760 = vadd.f32 0.0, %v1759
    %v1761 = vpop.f32.mrb[0].mxu0
    %1762 = vmatprep.mubr.bf16.mxu0 0
    %1763 = vmatmul.mubr.bf16.gmra.mrb[0].mxu0 %v1512
    %v1764 = vpop.f32.mrb[0].mxu0
    %v1765 = vadd.f32 0.0, %v1764
    %v1766 = vpop.f32.mrb[0].mxu0
    %v1767 = vpop.f32.mrb[0].mxu0
    %v1768 = vpop.f32.mrb[0].mxu0
    %1769 = vdwg.mxu0
    %v1772 = vunpack.c.l.b16 %v1711
    %v1773 = vunpack.c.l.b16 %v1712
    %v1774 = vpack.c.b16 %v1773, %v1772
    %1776 = vmatprep.subr.bf16.mxu0 0
    %1777 = vmatpush1.bf16.msra.mxu0 %v1774
    %1778 = vmatprep.subr.bf16.mxu0 0
    %1779 = vmatpush1.bf16.msra.mxu0 0
    %1780 = vmatprep.subr.bf16.mxu0 0
    %1781 = vmatpush1.bf16.msra.mxu0 0
    %1782 = vmatprep.subr.bf16.mxu0 0
    %1783 = vmatpush1.bf16.msra.mxu0 0
    %1784 = vmatprep.subr.bf16.mxu0 0
    %1785 = vmatpush1.bf16.msra.mxu0 0
    %1786 = vmatprep.subr.bf16.mxu0 0
    %1787 = vmatpush1.bf16.msra.mxu0 0
    %1788 = vmatprep.subr.bf16.mxu0 0
    %1789 = vmatpush1.bf16.msra.mxu0 0
    %1790 = vmatprep.subr.bf16.mxu0 0
    %1791 = vmatpush1.bf16.msra.mxu0 0
    %1792 = vmatprep.subr.bf16.mxu0 0
    %1793 = vmatpush1.bf16.msra.mxu0 0
    %1794 = vmatprep.subr.bf16.mxu0 0
    %1795 = vmatpush1.bf16.msra.mxu0 0
    %1796 = vmatprep.subr.bf16.mxu0 0
    %1797 = vmatpush1.bf16.msra.mxu0 0
    %1798 = vmatprep.subr.bf16.mxu0 0
    %1799 = vmatpush1.bf16.msra.mxu0 0
    %1800 = vmatprep.subr.bf16.mxu0 0
    %1801 = vmatpush1.bf16.msra.mxu0 0
    %1802 = vmatprep.subr.bf16.mxu0 0
    %1803 = vmatpush1.bf16.msra.mxu0 0
    %1804 = vmatprep.subr.bf16.mxu0 0
    %1805 = vmatpush1.bf16.msra.mxu0 0
    %1806 = vmatprep.subr.bf16.mxu0 0
    %1807 = vmatpush1.bf16.msra.mxu0 0
    %1808 = vmatprep.mubr.bf16.mxu0 0
    %1809 = vmatmul.mubr.bf16.gmra.mrb[0].mxu0 %v1570
    %v1810 = vpop.f32.mrb[0].mxu0
    %v1811 = vadd.f32 %v1757, %v1810
    %v1812 = vpop.f32.mrb[0].mxu0
    %v1813 = vpop.f32.mrb[0].mxu0
    %v1814 = vadd.f32 %v1760, %v1813
    %v1815 = vpop.f32.mrb[0].mxu0
    %1816 = vmatprep.mubr.bf16.mxu0 0
    %1817 = vmatmul.mubr.bf16.gmra.mrb[0].mxu0 %v1573
    %v1818 = vpop.f32.mrb[0].mxu0
    %v1819 = vadd.f32 %v1765, %v1818
    %v1820 = vpop.f32.mrb[0].mxu0
    %v1821 = vpop.f32.mrb[0].mxu0
    %v1822 = vpop.f32.mrb[0].mxu0
    %1823 = vdwg.mxu0
    %s1824 = scalar_lea.vmem %s6, 16
    %v1825 = vld [vmem:[%s1824] sm:$0xf]
    %v1826 = vld [vmem:[%s1824 + $0x4] sm:$0xf]
    %v1829 = vunpack.c.l.b16 %v1825
    %v1830 = vunpack.c.l.b16 %v1826
    %v1831 = vpack.c.b16 %v1830, %v1829
    %1833 = vmatprep.subr.bf16.mxu0 0
    %1834 = vmatpush1.bf16.msra.mxu0 %v1831
    %1835 = vmatprep.subr.bf16.mxu0 0
    %1836 = vmatpush1.bf16.msra.mxu0 0
    %1837 = vmatprep.subr.bf16.mxu0 0
    %1838 = vmatpush1.bf16.msra.mxu0 0
    %1839 = vmatprep.subr.bf16.mxu0 0
    %1840 = vmatpush1.bf16.msra.mxu0 0
    %1841 = vmatprep.subr.bf16.mxu0 0
    %1842 = vmatpush1.bf16.msra.mxu0 0
    %1843 = vmatprep.subr.bf16.mxu0 0
    %1844 = vmatpush1.bf16.msra.mxu0 0
    %1845 = vmatprep.subr.bf16.mxu0 0
    %1846 = vmatpush1.bf16.msra.mxu0 0
    %1847 = vmatprep.subr.bf16.mxu0 0
    %1848 = vmatpush1.bf16.msra.mxu0 0
    %1849 = vmatprep.subr.bf16.mxu0 0
    %1850 = vmatpush1.bf16.msra.mxu0 0
    %1851 = vmatprep.subr.bf16.mxu0 0
    %1852 = vmatpush1.bf16.msra.mxu0 0
    %1853 = vmatprep.subr.bf16.mxu0 0
    %1854 = vmatpush1.bf16.msra.mxu0 0
    %1855 = vmatprep.subr.bf16.mxu0 0
    %1856 = vmatpush1.bf16.msra.mxu0 0
    %1857 = vmatprep.subr.bf16.mxu0 0
    %1858 = vmatpush1.bf16.msra.mxu0 0
    %1859 = vmatprep.subr.bf16.mxu0 0
    %1860 = vmatpush1.bf16.msra.mxu0 0
    %1861 = vmatprep.subr.bf16.mxu0 0
    %1862 = vmatpush1.bf16.msra.mxu0 0
    %1863 = vmatprep.subr.bf16.mxu0 0
    %1864 = vmatpush1.bf16.msra.mxu0 0
    %1865 = vmatprep.mubr.bf16.mxu0 0
    %1866 = vmatmul.mubr.bf16.gmra.mrb[0].mxu0 %v1638
    %v1867 = vpop.f32.mrb[0].mxu0
    %v1868 = vadd.f32 0.0, %v1867
    %v1869 = vpop.f32.mrb[0].mxu0
    %v1870 = vpop.f32.mrb[0].mxu0
    %v1871 = vadd.f32 0.0, %v1870
    %v1872 = vpop.f32.mrb[0].mxu0
    %1873 = vmatprep.mubr.bf16.mxu0 0
    %1874 = vmatmul.mubr.bf16.gmra.mrb[0].mxu0 %v1641
    %v1875 = vpop.f32.mrb[0].mxu0
    %v1876 = vadd.f32 0.0, %v1875
    %v1877 = vpop.f32.mrb[0].mxu0
    %v1878 = vpop.f32.mrb[0].mxu0
    %v1879 = vpop.f32.mrb[0].mxu0
    %1880 = vdwg.mxu0
    %v1881 = vadd.f32 %v1811, %v1868
    %v1882 = vadd.f32 %v1814, %v1871
    %v1883 = vadd.f32 %v1819, %v1876
    %s1884 = scalar_lea.vmem %s6, 24
    %v1885 = vld [vmem:[%s1884] sm:$0xf]
    %v1886 = vld [vmem:[%s1884 + $0x4] sm:$0xf]
    %vm1887 = vcmask 1044480
    %v1888 = vrot.slane %v1488, 3
    %v1889 = vrot.slane %v1489, 3
    %v1890 = vsel %vm1887, %v1888, %v1889
    %v1893 = vunpack.c.l.b16 %v1885
    %v1894 = vunpack.c.l.b16 %v1886
    %v1895 = vpack.c.b16 %v1894, %v1893
    %v1898 = vsel %vm72, %v1890, 0
    %v1901 = vsel %vm72, %v1889, 0
    %1903 = vmatprep.subr.bf16.mxu0 0
    %1904 = vmatpush1.bf16.msra.mxu0 %v1895
    %1905 = vmatprep.subr.bf16.mxu0 0
    %1906 = vmatpush1.bf16.msra.mxu0 0
    %1907 = vmatprep.subr.bf16.mxu0 0
    %1908 = vmatpush1.bf16.msra.mxu0 0
    %1909 = vmatprep.subr.bf16.mxu0 0
    %1910 = vmatpush1.bf16.msra.mxu0 0
    %1911 = vmatprep.subr.bf16.mxu0 0
    %1912 = vmatpush1.bf16.msra.mxu0 0
    %1913 = vmatprep.subr.bf16.mxu0 0
    %1914 = vmatpush1.bf16.msra.mxu0 0
    %1915 = vmatprep.subr.bf16.mxu0 0
    %1916 = vmatpush1.bf16.msra.mxu0 0
    %1917 = vmatprep.subr.bf16.mxu0 0
    %1918 = vmatpush1.bf16.msra.mxu0 0
    %1919 = vmatprep.subr.bf16.mxu0 0
    %1920 = vmatpush1.bf16.msra.mxu0 0
    %1921 = vmatprep.subr.bf16.mxu0 0
    %1922 = vmatpush1.bf16.msra.mxu0 0
    %1923 = vmatprep.subr.bf16.mxu0 0
    %1924 = vmatpush1.bf16.msra.mxu0 0
    %1925 = vmatprep.subr.bf16.mxu0 0
    %1926 = vmatpush1.bf16.msra.mxu0 0
    %1927 = vmatprep.subr.bf16.mxu0 0
    %1928 = vmatpush1.bf16.msra.mxu0 0
    %1929 = vmatprep.subr.bf16.mxu0 0
    %1930 = vmatpush1.bf16.msra.mxu0 0
    %1931 = vmatprep.subr.bf16.mxu0 0
    %1932 = vmatpush1.bf16.msra.mxu0 0
    %1933 = vmatprep.subr.bf16.mxu0 0
    %1934 = vmatpush1.bf16.msra.mxu0 0
    %1935 = vmatprep.mubr.bf16.mxu0 0
    %1936 = vmatmul.mubr.bf16.gmra.mrb[0].mxu0 %v1898
    %v1937 = vpop.f32.mrb[0].mxu0
    %v1938 = vadd.f32 0.0, %v1937
    %v1939 = vpop.f32.mrb[0].mxu0
    %v1940 = vpop.f32.mrb[0].mxu0
    %v1941 = vadd.f32 0.0, %v1940
    %v1942 = vpop.f32.mrb[0].mxu0
    %1943 = vmatprep.mubr.bf16.mxu0 0
    %1944 = vmatmul.mubr.bf16.gmra.mrb[0].mxu0 %v1901
    %v1945 = vpop.f32.mrb[0].mxu0
    %v1946 = vadd.f32 0.0, %v1945
    %v1947 = vpop.f32.mrb[0].mxu0
    %v1948 = vpop.f32.mrb[0].mxu0
    %v1949 = vpop.f32.mrb[0].mxu0
    %1950 = vdwg.mxu0
    %v1951 = vadd.f32 %v1881, %v1938
    %v1952 = vadd.f32 %v1882, %v1941
    %v1953 = vadd.f32 %v1883, %v1946
    %s1954 = scalar_lea.vmem %s6, 32
    %v1955 = vld [vmem:[%s1954] sm:$0xf]
    %v1956 = vld [vmem:[%s1954 + $0x4] sm:$0xf]
    %vm1957 = vcmask 1043456
    %v1958 = vrot.slane %v1488, 4
    %v1959 = vrot.slane %v1489, 4
    %v1960 = vsel %vm1957, %v1958, %v1959
    %v1963 = vunpack.c.l.b16 %v1955
    %v1964 = vunpack.c.l.b16 %v1956
    %v1965 = vpack.c.b16 %v1964, %v1963
    %v1968 = vsel %vm72, %v1960, 0
    %v1971 = vsel %vm72, %v1959, 0
    %1973 = vmatprep.subr.bf16.mxu0 0
    %1974 = vmatpush1.bf16.msra.mxu0 %v1965
    %1975 = vmatprep.subr.bf16.mxu0 0
    %1976 = vmatpush1.bf16.msra.mxu0 0
    %1977 = vmatprep.subr.bf16.mxu0 0
    %1978 = vmatpush1.bf16.msra.mxu0 0
    %1979 = vmatprep.subr.bf16.mxu0 0
    %1980 = vmatpush1.bf16.msra.mxu0 0
    %1981 = vmatprep.subr.bf16.mxu0 0
    %1982 = vmatpush1.bf16.msra.mxu0 0
    %1983 = vmatprep.subr.bf16.mxu0 0
    %1984 = vmatpush1.bf16.msra.mxu0 0
    %1985 = vmatprep.subr.bf16.mxu0 0
    %1986 = vmatpush1.bf16.msra.mxu0 0
    %1987 = vmatprep.subr.bf16.mxu0 0
    %1988 = vmatpush1.bf16.msra.mxu0 0
    %1989 = vmatprep.subr.bf16.mxu0 0
    %1990 = vmatpush1.bf16.msra.mxu0 0
    %1991 = vmatprep.subr.bf16.mxu0 0
    %1992 = vmatpush1.bf16.msra.mxu0 0
    %1993 = vmatprep.subr.bf16.mxu0 0
    %1994 = vmatpush1.bf16.msra.mxu0 0
    %1995 = vmatprep.subr.bf16.mxu0 0
    %1996 = vmatpush1.bf16.msra.mxu0 0
    %1997 = vmatprep.subr.bf16.mxu0 0
    %1998 = vmatpush1.bf16.msra.mxu0 0
    %1999 = vmatprep.subr.bf16.mxu0 0
    %2000 = vmatpush1.bf16.msra.mxu0 0
    %2001 = vmatprep.subr.bf16.mxu0 0
    %2002 = vmatpush1.bf16.msra.mxu0 0
    %2003 = vmatprep.subr.bf16.mxu0 0
    %2004 = vmatpush1.bf16.msra.mxu0 0
    %2005 = vmatprep.mubr.bf16.mxu0 0
    %2006 = vmatmul.mubr.bf16.gmra.mrb[0].mxu0 %v1968
    %v2007 = vpop.f32.mrb[0].mxu0
    %v2008 = vadd.f32 0.0, %v2007
    %v2009 = vpop.f32.mrb[0].mxu0
    %v2010 = vpop.f32.mrb[0].mxu0
    %v2011 = vadd.f32 0.0, %v2010
    %v2012 = vpop.f32.mrb[0].mxu0
    %2013 = vmatprep.mubr.bf16.mxu0 0
    %2014 = vmatmul.mubr.bf16.gmra.mrb[0].mxu0 %v1971
    %v2015 = vpop.f32.mrb[0].mxu0
    %v2016 = vadd.f32 0.0, %v2015
    %v2017 = vpop.f32.mrb[0].mxu0
    %v2018 = vpop.f32.mrb[0].mxu0
    %v2019 = vpop.f32.mrb[0].mxu0
    %2020 = vdwg.mxu0
    %v2021 = vadd.f32 %v1951, %v2008
    %v2022 = vadd.f32 %v1952, %v2011
    %v2023 = vadd.f32 %v1953, %v2016
    %v2025 = vlaneseq
    %v2026 = vshrl.u32 %v2025, 7
    %v2027 = vsub.s32 0, %v2026
    %v2028 = vrot.slane %v1710, %v2027
    %v2030 = vadd.f32 %v2021, %v2028
    %v2031 = vadd.f32 %v2022, %v2028
    %v2032 = vadd.f32 %v2023, %v2028
    %v2033 = vmax.f32 %v2030, 0.0
    %v2034 = vmax.f32 %v2031, 0.0
    %v2035 = vmax.f32 %v2032, 0.0
    %v2037 = vrot.slane %v1706, 2
    %2038 = vrot.lane.b32.xlu0 %v2037, 8
    %v2039 = vpop.permute.xlu0 %2038
    %v2041 = vrot.slane %v1706, 4
    %2042 = vrot.lane.b32.xlu0 %v2041, 16
    %v2043 = vpop.permute.xlu0 %2042
    %v2045 = vrot.slane %v1706, 6
    %2046 = vrot.lane.b32.xlu0 %v2045, 24
    %v2047 = vpop.permute.xlu0 %2046
    %2050 = vrot.lane.b32.xlu0 %v1707, 32
    %v2051 = vpop.permute.xlu0 %2050
    %v2053 = vrot.slane %v1707, 2
    %2054 = vrot.lane.b32.xlu0 %v2053, 40
    %v2055 = vpop.permute.xlu0 %2054
    %v2057 = vrot.slane %v1707, 4
    %2058 = vrot.lane.b32.xlu0 %v2057, 48
    %v2059 = vpop.permute.xlu0 %2058
    %v2061 = vrot.slane %v1707, 6
    %2062 = vrot.lane.b32.xlu0 %v2061, 56
    %v2063 = vpop.permute.xlu0 %2062
    %2066 = vrot.lane.b32.xlu0 %v1708, 64
    %v2067 = vpop.permute.xlu0 %2066
    %v2069 = vrot.slane %v1708, 2
    %2070 = vrot.lane.b32.xlu0 %v2069, 72
    %v2071 = vpop.permute.xlu0 %2070
    %v2073 = vrot.slane %v1708, 4
    %2074 = vrot.lane.b32.xlu0 %v2073, 80
    %v2075 = vpop.permute.xlu0 %2074
    %v2077 = vrot.slane %v1708, 6
    %2078 = vrot.lane.b32.xlu0 %v2077, 88
    %v2079 = vpop.permute.xlu0 %2078
    %2082 = vrot.lane.b32.xlu0 %v1709, 96
    %v2083 = vpop.permute.xlu0 %2082
    %v2085 = vrot.slane %v1709, 2
    %2086 = vrot.lane.b32.xlu0 %v2085, 104
    %v2087 = vpop.permute.xlu0 %2086
    %2090 = vrot.lane.b32.xlu0 %v2033, 112
    %v2091 = vpop.permute.xlu0 %2090
    %v2093 = vrot.slane %v2033, 2
    %2094 = vrot.lane.b32.xlu0 %v2093, 120
    %v2095 = vpop.permute.xlu0 %2094
    %v2097 = vsel %vm1483, %v1706, %v2039
    %v2098 = vsel %vm72, %v2097, %v2043
    %vm2099 = vcmask 195584
    %v2100 = vsel %vm2099, %v2098, %v2047
    %vm2101 = vcmask 261120
    %v2102 = vsel %vm2101, %v2100, %v2051
    %vm2103 = vcmask 326656
    %v2104 = vsel %vm2103, %v2102, %v2055
    %vm2105 = vcmask 392192
    %v2106 = vsel %vm2105, %v2104, %v2059
    %vm2107 = vcmask 457728
    %v2108 = vsel %vm2107, %v2106, %v2063
    %vm2109 = vcmask 523264
    %v2110 = vsel %vm2109, %v2108, %v2067
    %vm2111 = vcmask 588800
    %v2112 = vsel %vm2111, %v2110, %v2071
    %vm2113 = vcmask 654336
    %v2114 = vsel %vm2113, %v2112, %v2075
    %vm2115 = vcmask 719872
    %v2116 = vsel %vm2115, %v2114, %v2079
    %vm2117 = vcmask 785408
    %v2118 = vsel %vm2117, %v2116, %v2083
    %vm2119 = vcmask 850944
    %v2120 = vsel %vm2119, %v2118, %v2087
    %vm2121 = vcmask 916480
    %v2122 = vsel %vm2121, %v2120, %v2091
    %vm2123 = vcmask 982016
    %v2124 = vsel %vm2123, %v2122, %v2095
    %2125 = vrot.lane.b32.xlu0 %v2093, 8
    %v2126 = vpop.permute.xlu0 %2125
    %v2129 = vrot.slane %v2034, 4
    %2130 = vrot.lane.b32.xlu0 %v2129, 16
    %v2131 = vpop.permute.xlu0 %2130
    %v2133 = vrot.slane %v2034, 6
    %2134 = vrot.lane.b32.xlu0 %v2133, 24
    %v2135 = vpop.permute.xlu0 %2134
    %2137 = vrot.lane.b32.xlu0 %v2034, 32
    %v2138 = vpop.permute.xlu0 %2137
    %v2140 = vrot.slane %v2034, 2
    %2141 = vrot.lane.b32.xlu0 %v2140, 40
    %v2142 = vpop.permute.xlu0 %2141
    %v2145 = vrot.slane %v2035, 4
    %2146 = vrot.lane.b32.xlu0 %v2145, 48
    %v2147 = vpop.permute.xlu0 %2146
    %v2149 = vrot.slane %v2035, 6
    %2150 = vrot.lane.b32.xlu0 %v2149, 56
    %v2151 = vpop.permute.xlu0 %2150
    %2153 = vrot.lane.b32.xlu0 %v2035, 64
    %v2154 = vpop.permute.xlu0 %2153
    %v2156 = vrot.slane %v2035, 2
    %2157 = vrot.lane.b32.xlu0 %v2156, 72
    %v2158 = vpop.permute.xlu0 %2157
    %v2160 = vsel %vm1483, %v2033, %v2126
    %v2161 = vsel %vm72, %v2160, %v2131
    %v2162 = vsel %vm2099, %v2161, %v2135
    %v2163 = vsel %vm2101, %v2162, %v2138
    %v2164 = vsel %vm2103, %v2163, %v2142
    %v2165 = vsel %vm2105, %v2164, %v2147
    %v2166 = vsel %vm2107, %v2165, %v2151
    %v2167 = vsel %vm2109, %v2166, %v2154
    %v2168 = vsel %vm2111, %v2167, %v2158
    %v2170 = vrot.slane %v2168, 4
    %v2172 = vpack.c.bf16 %v2124, %v2124
    %v2173 = vpack.c.bf16 %v2170, %v2170
    %v2174 = vld [vmem:[%s8] sm:$0xf]
    %v2175 = vld [vmem:[%s8 + $0x4] sm:$0xf]
    %v2176 = vld [vmem:[%s8 + $0x8] sm:$0xf]
    %v2177 = vld [vmem:[%s8 + $0xc] sm:$0xf]
    %v2178 = vld [vmem:[%s8 + $0x10] sm:$0xf]
    %v2179 = vld [vmem:[%s8 + $0x14] sm:$0xf]
    %v2180 = vld [vmem:[%s8 + $0x18] sm:$0xf]
    %v2181 = vld [vmem:[%s8 + $0x1c] sm:$0xf]
    %v2182 = vld [vmem:[%s8 + $0x20] sm:$0xf]
    %v2183 = vld [vmem:[%s8 + $0x24] sm:$0xf]
    %v2184 = vld [vmem:[%s8 + $0x28] sm:$0xf]
    %v2185 = vld [vmem:[%s8 + $0x2c] sm:$0xf]
    %v2186 = vld [vmem:[%s8 + $0x30] sm:$0xf]
    %v2187 = vld [vmem:[%s8 + $0x34] sm:$0xf]
    %v2188 = vld [vmem:[%s8 + $0x38] sm:$0xf]
    %v2189 = vld [vmem:[%s8 + $0x3c] sm:$0xf]
    %v2190 = vld [vmem:[%s8 + $0x40] sm:$0xf]
    %v2191 = vld [vmem:[%s8 + $0x44] sm:$0xf]
    %v2192 = vld [vmem:[%s8 + $0x48] sm:$0xf]
    %v2193 = vld [vmem:[%s8 + $0x4c] sm:$0xf]
    %v2194 = vld [vmem:[%s8 + $0x50] sm:$0xf]
    %v2195 = vld [vmem:[%s8 + $0x54] sm:$0xf]
    %v2196 = vld [vmem:[%s8 + $0x58] sm:$0xf]
    %v2197 = vld [vmem:[%s8 + $0x5c] sm:$0xf]
    %v2198 = vld [vmem:[%s8 + $0x60] sm:$0xf]
    %v2199 = vld [vmem:[%s8 + $0x64] sm:$0xf]
    %v2200 = vld [vmem:[%s9] sm:$0x1]
    %v2202 = vlaneseq
    %v2203 = vshrl.u32 %v2202, 7
    %v2204 = vsub.s32 0, %v2203
    %v2205 = vrot.slane %v2200, %v2204
    %v2233 = vunpack.c.l.b16 %v2174
    %v2234 = vunpack.c.l.b16 %v2175
    %v2235 = vunpack.c.l.b16 %v2176
    %v2236 = vunpack.c.l.b16 %v2177
    %v2237 = vunpack.c.l.b16 %v2178
    %v2238 = vunpack.c.l.b16 %v2179
    %v2239 = vunpack.c.l.b16 %v2180
    %v2240 = vunpack.c.l.b16 %v2181
    %v2241 = vunpack.c.l.b16 %v2182
    %v2242 = vunpack.c.l.b16 %v2183
    %v2243 = vunpack.c.l.b16 %v2184
    %v2244 = vunpack.c.l.b16 %v2185
    %v2245 = vunpack.c.l.b16 %v2186
    %v2246 = vunpack.c.l.b16 %v2187
    %v2247 = vunpack.c.l.b16 %v2188
    %v2248 = vunpack.c.l.b16 %v2189
    %v2249 = vunpack.c.l.b16 %v2190
    %v2250 = vunpack.c.l.b16 %v2191
    %v2251 = vunpack.c.l.b16 %v2192
    %v2252 = vunpack.c.l.b16 %v2193
    %v2253 = vunpack.c.l.b16 %v2194
    %v2254 = vunpack.c.l.b16 %v2195
    %v2255 = vunpack.c.l.b16 %v2196
    %v2256 = vunpack.c.l.b16 %v2197
    %v2257 = vunpack.c.l.b16 %v2198
    %v2258 = vunpack.c.l.b16 %v2199
    %v2259 = vpack.c.b16 %v2234, %v2233
    %v2260 = vpack.c.b16 %v2236, %v2235
    %v2261 = vpack.c.b16 %v2238, %v2237
    %v2262 = vpack.c.b16 %v2240, %v2239
    %v2263 = vpack.c.b16 %v2242, %v2241
    %v2264 = vpack.c.b16 %v2244, %v2243
    %v2265 = vpack.c.b16 %v2246, %v2245
    %v2266 = vpack.c.b16 %v2248, %v2247
    %v2267 = vpack.c.b16 %v2250, %v2249
    %v2268 = vpack.c.b16 %v2252, %v2251
    %v2269 = vpack.c.b16 %v2254, %v2253
    %v2270 = vpack.c.b16 %v2256, %v2255
    %v2271 = vpack.c.b16 %v2258, %v2257
    %v2286 = vsel %vm2113, %v2173, 0
    %2288 = vmatprep.subr.bf16.mxu0 0
    %2289 = vmatpush1.bf16.msra.mxu0 %v2259
    %2290 = vmatprep.subr.bf16.mxu0 0
    %2291 = vmatpush1.bf16.msra.mxu0 %v2260
    %2292 = vmatprep.subr.bf16.mxu0 0
    %2293 = vmatpush1.bf16.msra.mxu0 %v2261
    %2294 = vmatprep.subr.bf16.mxu0 0
    %2295 = vmatpush1.bf16.msra.mxu0 %v2262
    %2296 = vmatprep.subr.bf16.mxu0 0
    %2297 = vmatpush1.bf16.msra.mxu0 %v2263
    %2298 = vmatprep.subr.bf16.mxu0 0
    %2299 = vmatpush1.bf16.msra.mxu0 %v2264
    %2300 = vmatprep.subr.bf16.mxu0 0
    %2301 = vmatpush1.bf16.msra.mxu0 %v2265
    %2302 = vmatprep.subr.bf16.mxu0 0
    %2303 = vmatpush1.bf16.msra.mxu0 %v2266
    %2304 = vmatprep.subr.bf16.mxu0 0
    %2305 = vmatpush1.bf16.msra.mxu0 %v2267
    %2306 = vmatprep.subr.bf16.mxu0 0
    %2307 = vmatpush1.bf16.msra.mxu0 %v2268
    %2308 = vmatprep.subr.bf16.mxu0 0
    %2309 = vmatpush1.bf16.msra.mxu0 %v2269
    %2310 = vmatprep.subr.bf16.mxu0 0
    %2311 = vmatpush1.bf16.msra.mxu0 %v2270
    %2312 = vmatprep.subr.bf16.mxu0 0
    %2313 = vmatpush1.bf16.msra.mxu0 %v2271
    %2314 = vmatprep.subr.bf16.mxu0 0
    %2315 = vmatpush1.bf16.msra.mxu0 0
    %2316 = vmatprep.subr.bf16.mxu0 0
    %2317 = vmatpush1.bf16.msra.mxu0 0
    %2318 = vmatprep.subr.bf16.mxu0 0
    %2319 = vmatpush1.bf16.msra.mxu0 0
    %2320 = vmatprep.mubr.bf16.mxu0 %v2286
    %2321 = vmatmul.mubr.bf16.gmra.mrb[0].mxu0 %v2172
    %v2322 = vpop.f32.mrb[0].mxu0
    %v2323 = vadd.f32 %v2205, %v2322
    %v2324 = vpop.f32.mrb[0].mxu0
    %v2325 = vpop.f32.mrb[0].mxu0
    %v2326 = vpop.f32.mrb[0].mxu0
    %2327 = vdwg.mxu0
    %v2328 = vpack.c.bf16 %v2323, %v2323
    %v2329 = vld [vmem:[%s10] sm:$0xf]
    %v2330 = vld [vmem:[%s10 + $0x4] sm:$0xf]
    %v2331 = vld [vmem:[%s10 + $0x8] sm:$0xf]
    %v2332 = vld [vmem:[%s10 + $0xc] sm:$0xf]
    %v2333 = vld [vmem:[%s11] sm:$0x1]
    %v2335 = vlaneseq
    %v2336 = vshrl.u32 %v2335, 7
    %v2337 = vsub.s32 0, %v2336
    %v2338 = vrot.slane %v2333, %v2337
    %v2344 = vunpack.c.l.b16 %v2329
    %v2345 = vunpack.c.l.b16 %v2330
    %v2346 = vunpack.c.l.b16 %v2331
    %v2347 = vunpack.c.l.b16 %v2332
    %v2348 = vpack.c.b16 %v2345, %v2344
    %v2349 = vpack.c.b16 %v2347, %v2346
    %v2353 = vsel %vm2101, %v2328, 0
    %2355 = vmatprep.subr.bf16.mxu0 0
    %2356 = vmatpush1.bf16.msra.mxu0 %v2348
    %2357 = vmatprep.subr.bf16.mxu0 0
    %2358 = vmatpush1.bf16.msra.mxu0 %v2349
    %2359 = vmatprep.subr.bf16.mxu0 0
    %2360 = vmatpush1.bf16.msra.mxu0 0
    %2361 = vmatprep.subr.bf16.mxu0 0
    %2362 = vmatpush1.bf16.msra.mxu0 0
    %2363 = vmatprep.subr.bf16.mxu0 0
    %2364 = vmatpush1.bf16.msra.mxu0 0
    %2365 = vmatprep.subr.bf16.mxu0 0
    %2366 = vmatpush1.bf16.msra.mxu0 0
    %2367 = vmatprep.subr.bf16.mxu0 0
    %2368 = vmatpush1.bf16.msra.mxu0 0
    %2369 = vmatprep.subr.bf16.mxu0 0
    %2370 = vmatpush1.bf16.msra.mxu0 0
    %2371 = vmatprep.subr.bf16.mxu0 0
    %2372 = vmatpush1.bf16.msra.mxu0 0
    %2373 = vmatprep.subr.bf16.mxu0 0
    %2374 = vmatpush1.bf16.msra.mxu0 0
    %2375 = vmatprep.subr.bf16.mxu0 0
    %2376 = vmatpush1.bf16.msra.mxu0 0
    %2377 = vmatprep.subr.bf16.mxu0 0
    %2378 = vmatpush1.bf16.msra.mxu0 0
    %2379 = vmatprep.subr.bf16.mxu0 0
    %2380 = vmatpush1.bf16.msra.mxu0 0
    %2381 = vmatprep.subr.bf16.mxu0 0
    %2382 = vmatpush1.bf16.msra.mxu0 0
    %2383 = vmatprep.subr.bf16.mxu0 0
    %2384 = vmatpush1.bf16.msra.mxu0 0
    %2385 = vmatprep.subr.bf16.mxu0 0
    %2386 = vmatpush1.bf16.msra.mxu0 0
    %2387 = vmatprep.mubr.bf16.mxu0 0
    %2388 = vmatmul.mubr.bf16.gmra.mrb[0].mxu0 %v2353
    %v2389 = vpop.f32.mrb[0].mxu0
    %v2390 = vadd.f32 %v2338, %v2389
    %v2391 = vpop.f32.mrb[0].mxu0
    %v2392 = vpop.f32.mrb[0].mxu0
    %v2393 = vpop.f32.mrb[0].mxu0
    %2394 = vdwg.mxu0
    %vm2395 = vcmask 25600
    %2396 = vst.msk [vmem:[#allocation2] sm:$0x3] %vm2395, %v2390
    // Predicated region
    $region50: #{_lambda_.1} parent=1 // pred_check
      _
    $region51: #{_lambda_.1} parent=1 // pred_check_branch
      %2398 = sbr.rel (0) target = $region53
    $region52: #{_lambda_.1} parent=1 // pred_region
      %s2400 = ssub.s32 32, 32
      %2401 = vsyncadd [#allocation3], %s2400
      %s2403 = sshll.u32 [#allocation2], 4
      %s2404 = int_to_ptr.vmem [resolvable:$true] %s2403
      %2406 = dma.vmem_to_hbm [thread:$0]  %s2404, 32, %s12, [#allocation3]
    $region53: #{_lambda_.1} parent=1 // pred_fallthru
      _
    // Predicated region
    $region54: #{_lambda_.1} parent=1 // pred_check
      _
    $region55: #{_lambda_.1} parent=1 // pred_check_branch
      %2408 = sbr.rel (0) target = $region57
    $region56: #{_lambda_.1} parent=1 // pred_region
      %2409 = dma.done [#allocation3], 32
    $region57: #{_lambda_.1} parent=1 // pred_fallthru
      _
    %2410 = vsyncpa [#allocation3], 1

</llo_original>
